<compile_context>
chip_gen: v6e
topology: v6e:2x2x1
jax: 0.10.0
libtpu: 0.0.40
codegen_flags: <defaults>
</compile_context>

<pallas_src>
import functools
import math

import jax
import jax.numpy as jnp
from jax.experimental import pallas as pl
from jax.experimental.pallas import tpu as pltpu


# ----------------------------------------------------------------------------
# Batched-per-graph pallas_call plumbing: grid=(B,), per-graph blocks with the
# batch dim squeezed, shared weights broadcast via constant index maps.
# Per-graph blocks equal the trailing array dims (always a legal block shape).
# ----------------------------------------------------------------------------
def _per_graph_call(kernel, batched, shared, out_shapes_dtypes):
    B = batched[0].shape[0]

    def bspec(inner_shape):
        nd = len(inner_shape)
        return pl.BlockSpec(
            (None,) + tuple(inner_shape),
            lambda b, _nd=nd: (b,) + (0,) * _nd,
        )

    def sspec(shape):
        nd = len(shape)
        return pl.BlockSpec(tuple(shape), lambda b, _nd=nd: (0,) * _nd)

    in_specs = [bspec(a.shape[1:]) for a in batched] + [sspec(a.shape) for a in shared]
    out_specs = tuple(bspec(s) for s, _ in out_shapes_dtypes)
    out_shape = tuple(
        jax.ShapeDtypeStruct((B,) + tuple(s), dt) for s, dt in out_shapes_dtypes
    )
    return pl.pallas_call(
        kernel,
        grid=(B,),
        in_specs=in_specs,
        out_specs=out_specs,
        out_shape=out_shape,
        compiler_params=pltpu.CompilerParams(
            dimension_semantics=("parallel",),      # split graphs across TCs (v7x)
            vmem_limit_bytes=32 * 1024 * 1024,      # explicit (v5e default is 16 MiB)
        ),
    )(*batched, *shared)


# ----------------------------------------------------------------------------
# In-kernel helpers
# ----------------------------------------------------------------------------
def _row_degrees(g, mxu_dtype):
    """deg[0, j] = sum_k g[j, k]  (torch norm_g divides column j by this)."""
    n = g.shape[0]
    ones = jnp.ones((1, n), mxu_dtype)
    return jax.lax.dot_general(
        ones, g.astype(mxu_dtype), (((1,), (1,)), ((), ())),
        preferred_element_type=jnp.float32,
    )                                                               # (1, N) f32


def _gcn_layernorm(gn, h, w_ref, b_ref, gamma_ref, beta_ref, out_dtype):
    """relu((gn @ h) @ W + b) -> LayerNorm.  W is pre-cast bf16; stats in f32."""
    gh = jnp.dot(gn.astype(jnp.bfloat16), h.astype(jnp.bfloat16),
                 preferred_element_type=jnp.float32)
    z = jnp.dot(gh.astype(jnp.bfloat16), w_ref[...],
                preferred_element_type=jnp.float32) + b_ref[...]
    h1 = jnp.maximum(z, 0.0)
    mu = jnp.mean(h1, axis=-1, keepdims=True)
    var = jnp.mean((h1 - mu) ** 2, axis=-1, keepdims=True)
    y = (h1 - mu) * jax.lax.rsqrt(var + 1e-5) * gamma_ref[...] + beta_ref[...]
    return y.astype(out_dtype)


# ----------------------------------------------------------------------------
# Kernels
# ----------------------------------------------------------------------------
def _head_kernel(g_ref, h_ref, w_ref, b_ref, gamma_ref, beta_ref,
                 gn_ref, h_out_ref):
    """norm_g(g) -> s_gcn -> s_ln.  Emits normalized g for the encoder levels."""
    g = g_ref[...]                                       # (N, N) f32, 0/1 adjacency
    deg = _row_degrees(g, jnp.bfloat16)                  # exact: 0/1 values, f32 acc
    gn = g * pl.reciprocal(deg, approx=True)
    gn_ref[...] = gn
    h_out_ref[...] = _gcn_layernorm(gn, h_ref[...], w_ref, b_ref,
                                    gamma_ref, beta_ref, h_out_ref.dtype)


def _tail_kernel(g_ref, h_ref, w_ref, b_ref, gamma_ref, beta_ref, h_out_ref):
    """norm_g(g) -> bot_gcn -> bot_ln.  No normalized-g output (it is unused)."""
    g = g_ref[...]                                       # (Nf, Nf) f32 (already normalized once)
    deg = _row_degrees(g, jnp.float32)                   # g is non-0/1 here: keep f32
    gn = g * pl.reciprocal(deg, approx=True)
    h_out_ref[...] = _gcn_layernorm(gn, h_ref[...], w_ref, b_ref,
                                    gamma_ref, beta_ref, h_out_ref.dtype)


def _level_kernel(g_ref, h_ref, w_ref, b_ref, pw_ref, pb_ref,
                  g_out_ref, h_out_ref, *, k_nodes):
    """One encoder level, fully fused:
         h1     = relu((g @ h) @ W + b)
         scores = sigmoid(h1 @ pw^T + pb)              (lane-dense (1, N) row, VMEM only)
         idx    = top-k(scores)                        (iterative argmax, K static)
         un_g   = ((g != 0) @ (g != 0)) > 0
         new_g  = norm_g(un_g[idx][:, idx])            (selection as one-hot matmuls)
         new_h  = h1[idx] * scores[idx, None]
    """
    g = g_ref[...]                                       # (N, N) f32
    n = g.shape[0]

    # --- GCN -----------------------------------------------------------------
    gh = jnp.dot(g.astype(jnp.bfloat16), h_ref[...].astype(jnp.bfloat16),
                 preferred_element_type=jnp.float32)
    z = jnp.dot(gh.astype(jnp.bfloat16), w_ref[...],
                preferred_element_type=jnp.float32) + b_ref[...]
    h1 = jnp.maximum(z, 0.0)                             # (N, D) f32

    # --- pool scores: (1, N) row ----------------------------------------------
    zsc = jax.lax.dot_general(
        pw_ref[...], h1, (((1,), (1,)), ((), ())),
        preferred_element_type=jnp.float32,
    ) + pb_ref[...]
    scores = jax.nn.sigmoid(zsc)                         # (1, N) f32, values in (0, 1)

    # --- in-kernel top-k: K iterations of argmax + mask -> one-hot rows -------
    lane_iota = jax.lax.broadcasted_iota(jnp.int32, (1, n), 1)
    row_iota = jax.lax.broadcasted_iota(jnp.int32, (k_nodes, 1), 0)

    def select(j, carry):
        sc, sel = carry
        m = jnp.max(sc, axis=1, keepdims=True)                       # (1, 1)
        cand = jnp.where(sc >= m, lane_iota, n)
        idx = jnp.min(cand, axis=1, keepdims=True)                   # first max index
        onehot = (lane_iota == idx).astype(jnp.float32)              # (1, N)
        sel = jnp.where(row_iota == j, onehot, sel)                  # write row j
        sc = jnp.where(lane_iota == idx, -1.0, sc)                   # mask selected
        return sc, sel

    _, sel = jax.lax.fori_loop(
        0, k_nodes, select,
        (scores, jnp.zeros((k_nodes, n), jnp.float32)),
        unroll=True,
    )                                                                # sel: (K, N) one-hot

    # --- gather h / scores via one-hot matmuls (f32, exact) -------------------
    hh = jnp.dot(sel, h1, preferred_element_type=jnp.float32)        # (K, D) == h1[idx]
    vals = jax.lax.dot_general(
        sel, scores, (((1,), (1,)), ((), ())),
        preferred_element_type=jnp.float32,
    )                                                                # (K, 1) == scores[idx]
    h_out_ref[...] = (hh * vals).astype(h_out_ref.dtype)

    # --- graph power + selection + norm_g (all 0/1 values -> bf16 MXU) --------
    gb = (g != 0.0).astype(jnp.bfloat16)
    gg = jnp.dot(gb, gb, preferred_element_type=jnp.float32)         # (N, N)
    un_g = (gg > 0.0).astype(jnp.bfloat16)
    sel_b = sel.astype(jnp.bfloat16)
    su = jnp.dot(sel_b, un_g, preferred_element_type=jnp.float32)    # (K, N), 0/1
    sub = jax.lax.dot_general(
        su.astype(jnp.bfloat16), sel_b, (((1,), (1,)), ((), ())),
        preferred_element_type=jnp.float32,
    )                                                                # (K, K), 0/1
    deg = _row_degrees(sub, jnp.bfloat16)                            # exact counts
    g_out_ref[...] = sub * pl.reciprocal(deg, approx=True)


# ----------------------------------------------------------------------------
# Forward pass
# ----------------------------------------------------------------------------
def cls_encoder_forward(params, gs, hs, ks):
    if isinstance(gs, (list, tuple)):
        gs = jnp.stack(gs)
    if isinstance(hs, (list, tuple)):
        hs = jnp.stack(hs)
    gs = gs.astype(jnp.float32)
    hs = hs.astype(jnp.float32)
    _, n, _ = gs.shape
    d = params["s_gcn"][0].shape[1]

    # head: norm_g -> s_gcn -> s_ln (one fused batched kernel)
    sw, sb = params["s_gcn"]
    s_gamma, s_beta = params["s_ln"]
    g, h = _per_graph_call(
        _head_kernel,
        [gs, hs],
        [sw.astype(jnp.bfloat16), sb, s_gamma, s_beta],
        [((n, n), jnp.float32), ((n, d), jnp.bfloat16)],
    )

    # encoder down path: one fused kernel per level (GCN + scores + top-k + pool)
    for i, k in enumerate(ks):
        gw, gb = params["enc_gcn"][i]
        pw_row, pb = params["enc_pool"][i]               # pw_row: (1, D), pb: (1, 1)
        n = g.shape[1]
        k_nodes = max(2, int(k * n))                     # static per level
        g, h = _per_graph_call(
            functools.partial(_level_kernel, k_nodes=k_nodes),
            [g, h],
            [gw.astype(jnp.bfloat16), gb, pw_row, pb],
            [((k_nodes, k_nodes), jnp.float32), ((k_nodes, d), jnp.bfloat16)],
        )

    # tail: norm_g -> bot_gcn -> bot_ln (no gn output)
    bw, bb = params["bot_gcn"]
    b_gamma, b_beta = params["bot_ln"]
    nf = g.shape[1]
    h = _per_graph_call(
        _tail_kernel,
        [g, h],
        [bw.astype(jnp.bfloat16), bb, b_gamma, b_beta],
        [((nf, d), jnp.float32)],
    )[0]
    return h                                             # (B, N_final, dim)


# ----------------------------------------------------------------------------
# Deterministic parameter init (PyTorch nn.Linear-style uniform bounds)
# ----------------------------------------------------------------------------
def _linear_init(key, fan_in, fan_out):
    kw, kb = jax.random.split(key)
    bound = 1.0 / math.sqrt(fan_in)
    w = jax.random.uniform(kw, (fan_in, fan_out), jnp.float32, -bound, bound)
    b = jax.random.uniform(kb, (1, fan_out), jnp.float32, -bound, bound)
    return w, b


def _pool_linear_init(key, dim):
    w, b = _linear_init(key, dim, 1)
    return jnp.transpose(w), b                           # weight stored as (1, D) row


def init_params(key, in_dim, dim, ks):
    keys = jax.random.split(key, 2 + 2 * len(ks))
    return {
        "s_gcn": _linear_init(keys[0], in_dim, dim),
        "s_ln": (jnp.ones((1, dim), jnp.float32), jnp.zeros((1, dim), jnp.float32)),
        "bot_gcn": _linear_init(keys[1], dim, dim),
        "bot_ln": (jnp.ones((1, dim), jnp.float32), jnp.zeros((1, dim), jnp.float32)),
        "enc_gcn": [_linear_init(keys[2 + 2 * i], dim, dim) for i in range(len(ks))],
        "enc_pool": [_pool_linear_init(keys[3 + 2 * i], dim) for i in range(len(ks))],
    }


if __name__ == "__main__":
    key = jax.random.PRNGKey(0)
    B, N, in_dim, dim = 2, 16, 8, 32
    ks = [0.8, 0.6]

    kp, kg, kh = jax.random.split(key, 3)
    params = init_params(kp, in_dim, dim, ks)

    # symmetric adjacency with self loops
    adj = (jax.random.uniform(kg, (B, N, N)) > 0.6).astype(jnp.float32)
    adj = jnp.maximum(adj, jnp.transpose(adj, (0, 2, 1)))
    adj = jnp.maximum(adj, jnp.eye(N, dtype=jnp.float32)[None])
    h_all = jax.random.normal(kh, (B, N, in_dim), jnp.float32)

    fwd = jax.jit(lambda p, g, h: cls_encoder_forward(p, g, h, ks))
    out = jax.block_until_ready(fwd(params, adj, h_all))

    n1 = max(2, int(ks[0] * N))
    n2 = max(2, int(ks[1] * n1))
    assert out.shape == (B, n2, dim), out.shape
    assert bool(jnp.all(jnp.isfinite(out)))
    print("KERNEL_OK")
</pallas_src>

<mosaic_0001>
module attributes {stable_mosaic.version = 11 : i64} {
  func.func @_head_kernel(%arg0: i32, %arg1: memref<1x16x16xf32, #tpu.memory_space<vmem>>, %arg2: memref<1x16x8xf32, #tpu.memory_space<vmem>>, %arg3: memref<8x32xbf16, #tpu.memory_space<vmem>>, %arg4: memref<1x32xf32, #tpu.memory_space<vmem>>, %arg5: memref<1x32xf32, #tpu.memory_space<vmem>>, %arg6: memref<1x32xf32, #tpu.memory_space<vmem>>, %arg7: memref<1x16x16xf32, #tpu.memory_space<vmem>>, %arg8: memref<1x16x32xbf16, #tpu.memory_space<vmem>>) attributes {dimension_semantics = [#tpu.dimension_semantics<parallel>], iteration_bounds = array<i64: 2>, scalar_prefetch = 0 : i64, scratch_operands = 0 : i64, tpu.core_type = #tpu.core_type<tc>, window_params = [{transform_indices = @transform_0, window_bounds = array<i64: 1, 16, 16>}, {transform_indices = @transform_1, window_bounds = array<i64: 1, 16, 8>}, {pipeline_mode = #tpu.pipeline_mode<synchronous>, transform_indices = @transform_2, window_bounds = array<i64: 8, 32>}, {pipeline_mode = #tpu.pipeline_mode<synchronous>, transform_indices = @transform_3, window_bounds = array<i64: 1, 32>}, {pipeline_mode = #tpu.pipeline_mode<synchronous>, transform_indices = @transform_4, window_bounds = array<i64: 1, 32>}, {pipeline_mode = #tpu.pipeline_mode<synchronous>, transform_indices = @transform_5, window_bounds = array<i64: 1, 32>}, {transform_indices = @transform_6, window_bounds = array<i64: 1, 16, 16>}, {transform_indices = @transform_7, window_bounds = array<i64: 1, 16, 32>}]} {
    %c0 = arith.constant 0 : index
    %c0_0 = arith.constant 0 : index
    %c0_1 = arith.constant 0 : index
    %0 = vector.load %arg1[%c0, %c0_0, %c0_1] : memref<1x16x16xf32, #tpu.memory_space<vmem>>, vector<1x16x16xf32>
    %1 = vector.shape_cast %0 : vector<1x16x16xf32> to vector<16x16xf32>
    %cst = arith.constant 1.000000e+00 : bf16
    %2 = vector.broadcast %cst : bf16 to vector<1x16xbf16>
    %3 = arith.truncf %1 : vector<16x16xf32> to vector<16x16xbf16>
    %cst_2 = arith.constant dense<0.000000e+00> : vector<1x16xf32>
    %4 = tpu.matmul %2, %3, %cst_2 {dimension_numbers = #tpu.dot_dimension_numbers<[1], [1], [0], [0], [0, 0, 1, 0], [], []>} : vector<1x16xbf16>, vector<16x16xbf16>, vector<1x16xf32> -> vector<1x16xf32>
    %5 = tpu.reciprocal %4 {approx = true} : vector<1x16xf32> -> vector<1x16xf32>
    %6 = vector.broadcast %5 : vector<1x16xf32> to vector<16x16xf32>
    %7 = arith.mulf %1, %6 : vector<16x16xf32>
    %c0_3 = arith.constant 0 : index
    %c0_4 = arith.constant 0 : index
    %c0_5 = arith.constant 0 : index
    %8 = vector.load %arg7[%c0_3, %c0_4, %c0_5] : memref<1x16x16xf32, #tpu.memory_space<vmem>>, vector<1x16x16xf32>
    %9 = vector.shape_cast %8 : vector<1x16x16xf32> to vector<16x16xf32>
    %10 = vector.shape_cast %7 : vector<16x16xf32> to vector<1x16x16xf32>
    tpu.vector_store %arg7[%c0_3, %c0_4, %c0_5], %10 {strides = array<i32>} : memref<1x16x16xf32, #tpu.memory_space<vmem>>, vector<1x16x16xf32>,
    %c0_6 = arith.constant 0 : index
    %c0_7 = arith.constant 0 : index
    %c0_8 = arith.constant 0 : index
    %11 = vector.load %arg2[%c0_6, %c0_7, %c0_8] : memref<1x16x8xf32, #tpu.memory_space<vmem>>, vector<1x16x8xf32>
    %12 = vector.shape_cast %11 : vector<1x16x8xf32> to vector<16x8xf32>
    %13 = arith.truncf %7 : vector<16x16xf32> to vector<16x16xbf16>
    %14 = arith.truncf %12 : vector<16x8xf32> to vector<16x8xbf16>
    %cst_9 = arith.constant dense<0.000000e+00> : vector<16x8xf32>
    %15 = tpu.matmul %13, %14, %cst_9 {dimension_numbers = #tpu.dot_dimension_numbers<[1], [0], [0], [1], [0, 0, 1, 1], [], []>} : vector<16x16xbf16>, vector<16x8xbf16>, vector<16x8xf32> -> vector<16x8xf32>
    %16 = arith.truncf %15 : vector<16x8xf32> to vector<16x8xbf16>
    %c0_10 = arith.constant 0 : index
    %c0_11 = arith.constant 0 : index
    %17 = vector.load %arg3[%c0_10, %c0_11] : memref<8x32xbf16, #tpu.memory_space<vmem>>, vector<8x32xbf16>
    %cst_12 = arith.constant dense<0.000000e+00> : vector<16x32xf32>
    %18 = tpu.matmul %16, %17, %cst_12 {dimension_numbers = #tpu.dot_dimension_numbers<[1], [0], [0], [1], [0, 0, 1, 1], [], []>} : vector<16x8xbf16>, vector<8x32xbf16>, vector<16x32xf32> -> vector<16x32xf32>
    %c0_13 = arith.constant 0 : index
    %c0_14 = arith.constant 0 : index
    %19 = vector.load %arg4[%c0_13, %c0_14] : memref<1x32xf32, #tpu.memory_space<vmem>>, vector<1x32xf32>
    %20 = vector.broadcast %19 : vector<1x32xf32> to vector<16x32xf32>
    %21 = arith.addf %18, %20 : vector<16x32xf32>
    %cst_15 = arith.constant 0.000000e+00 : f32
    %22 = vector.broadcast %cst_15 : f32 to vector<16x32xf32>
    %23 = arith.maximumf %21, %22 : vector<16x32xf32>
    %cst_16 = arith.constant dense<0.000000e+00> : vector<16xf32>
    %24 = vector.multi_reduction <add>, %23, %cst_16 [1] : vector<16x32xf32> to vector<16xf32>
    %25 = vector.shape_cast %24 : vector<16xf32> to vector<16x1xf32>
    %cst_17 = arith.constant 3.200000e+01 : f32
    %26 = vector.broadcast %cst_17 : f32 to vector<16x1xf32>
    %27 = arith.divf %25, %26 : vector<16x1xf32>
    %28 = vector.broadcast %27 : vector<16x1xf32> to vector<16x32xf32>
    %29 = arith.subf %23, %28 : vector<16x32xf32>
    %30 = arith.mulf %29, %29 : vector<16x32xf32>
    %cst_18 = arith.constant dense<0.000000e+00> : vector<16xf32>
    %31 = vector.multi_reduction <add>, %30, %cst_18 [1] : vector<16x32xf32> to vector<16xf32>
    %32 = vector.shape_cast %31 : vector<16xf32> to vector<16x1xf32>
    %cst_19 = arith.constant 3.200000e+01 : f32
    %33 = vector.broadcast %cst_19 : f32 to vector<16x1xf32>
    %34 = arith.divf %32, %33 : vector<16x1xf32>
    %35 = vector.broadcast %27 : vector<16x1xf32> to vector<16x32xf32>
    %36 = arith.subf %23, %35 : vector<16x32xf32>
    %cst_20 = arith.constant 9.99999974E-6 : f32
    %37 = vector.broadcast %cst_20 : f32 to vector<16x1xf32>
    %38 = arith.addf %34, %37 : vector<16x1xf32>
    %39 = math.rsqrt %38 : vector<16x1xf32>
    %40 = vector.broadcast %39 : vector<16x1xf32> to vector<16x32xf32>
    %41 = arith.mulf %36, %40 : vector<16x32xf32>
    %c0_21 = arith.constant 0 : index
    %c0_22 = arith.constant 0 : index
    %42 = vector.load %arg5[%c0_21, %c0_22] : memref<1x32xf32, #tpu.memory_space<vmem>>, vector<1x32xf32>
    %43 = vector.broadcast %42 : vector<1x32xf32> to vector<16x32xf32>
    %44 = arith.mulf %41, %43 : vector<16x32xf32>
    %c0_23 = arith.constant 0 : index
    %c0_24 = arith.constant 0 : index
    %45 = vector.load %arg6[%c0_23, %c0_24] : memref<1x32xf32, #tpu.memory_space<vmem>>, vector<1x32xf32>
    %46 = vector.broadcast %45 : vector<1x32xf32> to vector<16x32xf32>
    %47 = arith.addf %44, %46 : vector<16x32xf32>
    %48 = arith.truncf %47 : vector<16x32xf32> to vector<16x32xbf16>
    %c0_25 = arith.constant 0 : index
    %c0_26 = arith.constant 0 : index
    %c0_27 = arith.constant 0 : index
    %49 = vector.load %arg8[%c0_25, %c0_26, %c0_27] : memref<1x16x32xbf16, #tpu.memory_space<vmem>>, vector<1x16x32xbf16>
    %50 = vector.shape_cast %49 : vector<1x16x32xbf16> to vector<16x32xbf16>
    %51 = vector.shape_cast %48 : vector<16x32xbf16> to vector<1x16x32xbf16>
    tpu.vector_store %arg8[%c0_25, %c0_26, %c0_27], %51 {strides = array<i32>} : memref<1x16x32xbf16, #tpu.memory_space<vmem>>, vector<1x16x32xbf16>,
    return
  }
  func.func @transform_0(%arg0: i32) -> (i32, i32, i32) {
    %c0_i32 = arith.constant 0 : i32
    %c0_i32_0 = arith.constant 0 : i32
    %c0_i32_1 = arith.constant 0 : i32
    return %arg0, %c0_i32, %c0_i32_0 : i32, i32, i32
  }
  func.func @transform_1(%arg0: i32) -> (i32, i32, i32) {
    %c0_i32 = arith.constant 0 : i32
    %c0_i32_0 = arith.constant 0 : i32
    %c0_i32_1 = arith.constant 0 : i32
    return %arg0, %c0_i32, %c0_i32_0 : i32, i32, i32
  }
  func.func @transform_2(%arg0: i32) -> (i32, i32) {
    %c0_i32 = arith.constant 0 : i32
    %c0_i32_0 = arith.constant 0 : i32
    %c0_i32_1 = arith.constant 0 : i32
    return %c0_i32, %c0_i32_0 : i32, i32
  }
  func.func @transform_3(%arg0: i32) -> (i32, i32) {
    %c0_i32 = arith.constant 0 : i32
    %c0_i32_0 = arith.constant 0 : i32
    %c0_i32_1 = arith.constant 0 : i32
    return %c0_i32, %c0_i32_0 : i32, i32
  }
  func.func @transform_4(%arg0: i32) -> (i32, i32) {
    %c0_i32 = arith.constant 0 : i32
    %c0_i32_0 = arith.constant 0 : i32
    %c0_i32_1 = arith.constant 0 : i32
    return %c0_i32, %c0_i32_0 : i32, i32
  }
  func.func @transform_5(%arg0: i32) -> (i32, i32) {
    %c0_i32 = arith.constant 0 : i32
    %c0_i32_0 = arith.constant 0 : i32
    %c0_i32_1 = arith.constant 0 : i32
    return %c0_i32, %c0_i32_0 : i32, i32
  }
  func.func @transform_6(%arg0: i32) -> (i32, i32, i32) {
    %c0_i32 = arith.constant 0 : i32
    %c0_i32_0 = arith.constant 0 : i32
    %c0_i32_1 = arith.constant 0 : i32
    return %arg0, %c0_i32, %c0_i32_0 : i32, i32, i32
  }
  func.func @transform_7(%arg0: i32) -> (i32, i32, i32) {
    %c0_i32 = arith.constant 0 : i32
    %c0_i32_0 = arith.constant 0 : i32
    %c0_i32_1 = arith.constant 0 : i32
    return %arg0, %c0_i32, %c0_i32_0 : i32, i32, i32
  }
}

module attributes {stable_mosaic.version = 11 : i64} {
  func.func @_tail_kernel(%arg0: i32, %arg1: memref<1x7x7xf32, #tpu.memory_space<vmem>>, %arg2: memref<1x7x32xbf16, #tpu.memory_space<vmem>>, %arg3: memref<32x32xbf16, #tpu.memory_space<vmem>>, %arg4: memref<1x32xf32, #tpu.memory_space<vmem>>, %arg5: memref<1x32xf32, #tpu.memory_space<vmem>>, %arg6: memref<1x32xf32, #tpu.memory_space<vmem>>, %arg7: memref<1x7x32xf32, #tpu.memory_space<vmem>>) attributes {dimension_semantics = [#tpu.dimension_semantics<parallel>], iteration_bounds = array<i64: 2>, scalar_prefetch = 0 : i64, scratch_operands = 0 : i64, tpu.core_type = #tpu.core_type<tc>, window_params = [{transform_indices = @transform_0, window_bounds = array<i64: 1, 7, 7>}, {transform_indices = @transform_1, window_bounds = array<i64: 1, 7, 32>}, {pipeline_mode = #tpu.pipeline_mode<synchronous>, transform_indices = @transform_2, window_bounds = array<i64: 32, 32>}, {pipeline_mode = #tpu.pipeline_mode<synchronous>, transform_indices = @transform_3, window_bounds = array<i64: 1, 32>}, {pipeline_mode = #tpu.pipeline_mode<synchronous>, transform_indices = @transform_4, window_bounds = array<i64: 1, 32>}, {pipeline_mode = #tpu.pipeline_mode<synchronous>, transform_indices = @transform_5, window_bounds = array<i64: 1, 32>}, {transform_indices = @transform_6, window_bounds = array<i64: 1, 7, 32>}]} {
    %c0 = arith.constant 0 : index
    %c0_0 = arith.constant 0 : index
    %c0_1 = arith.constant 0 : index
    %0 = vector.load %arg1[%c0, %c0_0, %c0_1] : memref<1x7x7xf32, #tpu.memory_space<vmem>>, vector<1x7x7xf32>
    %1 = vector.shape_cast %0 : vector<1x7x7xf32> to vector<7x7xf32>
    %cst = arith.constant 1.000000e+00 : f32
    %2 = vector.broadcast %cst : f32 to vector<1x7xf32>
    %cst_2 = arith.constant dense<0.000000e+00> : vector<1x7xf32>
    %3 = tpu.matmul %2, %1, %cst_2 {dimension_numbers = #tpu.dot_dimension_numbers<[1], [1], [0], [0], [0, 0, 1, 0], [], []>} : vector<1x7xf32>, vector<7x7xf32>, vector<1x7xf32> -> vector<1x7xf32>
    %4 = tpu.reciprocal %3 {approx = true} : vector<1x7xf32> -> vector<1x7xf32>
    %5 = vector.broadcast %4 : vector<1x7xf32> to vector<7x7xf32>
    %6 = arith.mulf %1, %5 : vector<7x7xf32>
    %c0_3 = arith.constant 0 : index
    %c0_4 = arith.constant 0 : index
    %c0_5 = arith.constant 0 : index
    %7 = vector.load %arg2[%c0_3, %c0_4, %c0_5] : memref<1x7x32xbf16, #tpu.memory_space<vmem>>, vector<1x7x32xbf16>
    %8 = vector.shape_cast %7 : vector<1x7x32xbf16> to vector<7x32xbf16>
    %9 = arith.truncf %6 : vector<7x7xf32> to vector<7x7xbf16>
    %cst_6 = arith.constant dense<0.000000e+00> : vector<7x32xf32>
    %10 = tpu.matmul %9, %8, %cst_6 {dimension_numbers = #tpu.dot_dimension_numbers<[1], [0], [0], [1], [0, 0, 1, 1], [], []>} : vector<7x7xbf16>, vector<7x32xbf16>, vector<7x32xf32> -> vector<7x32xf32>
    %11 = arith.truncf %10 : vector<7x32xf32> to vector<7x32xbf16>
    %c0_7 = arith.constant 0 : index
    %c0_8 = arith.constant 0 : index
    %12 = vector.load %arg3[%c0_7, %c0_8] : memref<32x32xbf16, #tpu.memory_space<vmem>>, vector<32x32xbf16>
    %cst_9 = arith.constant dense<0.000000e+00> : vector<7x32xf32>
    %13 = tpu.matmul %11, %12, %cst_9 {dimension_numbers = #tpu.dot_dimension_numbers<[1], [0], [0], [1], [0, 0, 1, 1], [], []>} : vector<7x32xbf16>, vector<32x32xbf16>, vector<7x32xf32> -> vector<7x32xf32>
    %c0_10 = arith.constant 0 : index
    %c0_11 = arith.constant 0 : index
    %14 = vector.load %arg4[%c0_10, %c0_11] : memref<1x32xf32, #tpu.memory_space<vmem>>, vector<1x32xf32>
    %15 = vector.broadcast %14 : vector<1x32xf32> to vector<7x32xf32>
    %16 = arith.addf %13, %15 : vector<7x32xf32>
    %cst_12 = arith.constant 0.000000e+00 : f32
    %17 = vector.broadcast %cst_12 : f32 to vector<7x32xf32>
    %18 = arith.maximumf %16, %17 : vector<7x32xf32>
    %cst_13 = arith.constant dense<0.000000e+00> : vector<7xf32>
    %19 = vector.multi_reduction <add>, %18, %cst_13 [1] : vector<7x32xf32> to vector<7xf32>
    %20 = vector.shape_cast %19 : vector<7xf32> to vector<7x1xf32>
    %cst_14 = arith.constant 3.200000e+01 : f32
    %21 = vector.broadcast %cst_14 : f32 to vector<7x1xf32>
    %22 = arith.divf %20, %21 : vector<7x1xf32>
    %23 = vector.broadcast %22 : vector<7x1xf32> to vector<7x32xf32>
    %24 = arith.subf %18, %23 : vector<7x32xf32>
    %25 = arith.mulf %24, %24 : vector<7x32xf32>
    %cst_15 = arith.constant dense<0.000000e+00> : vector<7xf32>
    %26 = vector.multi_reduction <add>, %25, %cst_15 [1] : vector<7x32xf32> to vector<7xf32>
    %27 = vector.shape_cast %26 : vector<7xf32> to vector<7x1xf32>
    %cst_16 = arith.constant 3.200000e+01 : f32
    %28 = vector.broadcast %cst_16 : f32 to vector<7x1xf32>
    %29 = arith.divf %27, %28 : vector<7x1xf32>
    %30 = vector.broadcast %22 : vector<7x1xf32> to vector<7x32xf32>
    %31 = arith.subf %18, %30 : vector<7x32xf32>
    %cst_17 = arith.constant 9.99999974E-6 : f32
    %32 = vector.broadcast %cst_17 : f32 to vector<7x1xf32>
    %33 = arith.addf %29, %32 : vector<7x1xf32>
    %34 = math.rsqrt %33 : vector<7x1xf32>
    %35 = vector.broadcast %34 : vector<7x1xf32> to vector<7x32xf32>
    %36 = arith.mulf %31, %35 : vector<7x32xf32>
    %c0_18 = arith.constant 0 : index
    %c0_19 = arith.constant 0 : index
    %37 = vector.load %arg5[%c0_18, %c0_19] : memref<1x32xf32, #tpu.memory_space<vmem>>, vector<1x32xf32>
    %38 = vector.broadcast %37 : vector<1x32xf32> to vector<7x32xf32>
    %39 = arith.mulf %36, %38 : vector<7x32xf32>
    %c0_20 = arith.constant 0 : index
    %c0_21 = arith.constant 0 : index
    %40 = vector.load %arg6[%c0_20, %c0_21] : memref<1x32xf32, #tpu.memory_space<vmem>>, vector<1x32xf32>
    %41 = vector.broadcast %40 : vector<1x32xf32> to vector<7x32xf32>
    %42 = arith.addf %39, %41 : vector<7x32xf32>
    %c0_22 = arith.constant 0 : index
    %c0_23 = arith.constant 0 : index
    %c0_24 = arith.constant 0 : index
    %43 = vector.load %arg7[%c0_22, %c0_23, %c0_24] : memref<1x7x32xf32, #tpu.memory_space<vmem>>, vector<1x7x32xf32>
    %44 = vector.shape_cast %43 : vector<1x7x32xf32> to vector<7x32xf32>
    %45 = vector.shape_cast %42 : vector<7x32xf32> to vector<1x7x32xf32>
    tpu.vector_store %arg7[%c0_22, %c0_23, %c0_24], %45 {strides = array<i32>} : memref<1x7x32xf32, #tpu.memory_space<vmem>>, vector<1x7x32xf32>,
    return
  }
  func.func @transform_0(%arg0: i32) -> (i32, i32, i32) {
    %c0_i32 = arith.constant 0 : i32
    %c0_i32_0 = arith.constant 0 : i32
    %c0_i32_1 = arith.constant 0 : i32
    return %arg0, %c0_i32, %c0_i32_0 : i32, i32, i32
  }
  func.func @transform_1(%arg0: i32) -> (i32, i32, i32) {
    %c0_i32 = arith.constant 0 : i32
    %c0_i32_0 = arith.constant 0 : i32
    %c0_i32_1 = arith.constant 0 : i32
    return %arg0, %c0_i32, %c0_i32_0 : i32, i32, i32
  }
  func.func @transform_2(%arg0: i32) -> (i32, i32) {
    %c0_i32 = arith.constant 0 : i32
    %c0_i32_0 = arith.constant 0 : i32
    %c0_i32_1 = arith.constant 0 : i32
    return %c0_i32, %c0_i32_0 : i32, i32
  }
  func.func @transform_3(%arg0: i32) -> (i32, i32) {
    %c0_i32 = arith.constant 0 : i32
    %c0_i32_0 = arith.constant 0 : i32
    %c0_i32_1 = arith.constant 0 : i32
    return %c0_i32, %c0_i32_0 : i32, i32
  }
  func.func @transform_4(%arg0: i32) -> (i32, i32) {
    %c0_i32 = arith.constant 0 : i32
    %c0_i32_0 = arith.constant 0 : i32
    %c0_i32_1 = arith.constant 0 : i32
    return %c0_i32, %c0_i32_0 : i32, i32
  }
  func.func @transform_5(%arg0: i32) -> (i32, i32) {
    %c0_i32 = arith.constant 0 : i32
    %c0_i32_0 = arith.constant 0 : i32
    %c0_i32_1 = arith.constant 0 : i32
    return %c0_i32, %c0_i32_0 : i32, i32
  }
  func.func @transform_6(%arg0: i32) -> (i32, i32, i32) {
    %c0_i32 = arith.constant 0 : i32
    %c0_i32_0 = arith.constant 0 : i32
    %c0_i32_1 = arith.constant 0 : i32
    return %arg0, %c0_i32, %c0_i32_0 : i32, i32, i32
  }
}

module attributes {stable_mosaic.version = 11 : i64} {
  func.func @_level_kernel(%arg0: i32, %arg1: memref<1x12x12xf32, #tpu.memory_space<vmem>>, %arg2: memref<1x12x32xbf16, #tpu.memory_space<vmem>>, %arg3: memref<32x32xbf16, #tpu.memory_space<vmem>>, %arg4: memref<1x32xf32, #tpu.memory_space<vmem>>, %arg5: memref<1x32xf32, #tpu.memory_space<vmem>>, %arg6: memref<1x1xf32, #tpu.memory_space<vmem>>, %arg7: memref<1x7x7xf32, #tpu.memory_space<vmem>>, %arg8: memref<1x7x32xbf16, #tpu.memory_space<vmem>>) attributes {dimension_semantics = [#tpu.dimension_semantics<parallel>], iteration_bounds = array<i64: 2>, scalar_prefetch = 0 : i64, scratch_operands = 0 : i64, tpu.core_type = #tpu.core_type<tc>, window_params = [{transform_indices = @transform_0, window_bounds = array<i64: 1, 12, 12>}, {transform_indices = @transform_1, window_bounds = array<i64: 1, 12, 32>}, {pipeline_mode = #tpu.pipeline_mode<synchronous>, transform_indices = @transform_2, window_bounds = array<i64: 32, 32>}, {pipeline_mode = #tpu.pipeline_mode<synchronous>, transform_indices = @transform_3, window_bounds = array<i64: 1, 32>}, {pipeline_mode = #tpu.pipeline_mode<synchronous>, transform_indices = @transform_4, window_bounds = array<i64: 1, 32>}, {pipeline_mode = #tpu.pipeline_mode<synchronous>, transform_indices = @transform_5, window_bounds = array<i64: 1, 1>}, {transform_indices = @transform_6, window_bounds = array<i64: 1, 7, 7>}, {transform_indices = @transform_7, window_bounds = array<i64: 1, 7, 32>}]} {
    %c0 = arith.constant 0 : index
    %c0_0 = arith.constant 0 : index
    %c0_1 = arith.constant 0 : index
    %0 = vector.load %arg1[%c0, %c0_0, %c0_1] : memref<1x12x12xf32, #tpu.memory_space<vmem>>, vector<1x12x12xf32>
    %1 = vector.shape_cast %0 : vector<1x12x12xf32> to vector<12x12xf32>
    %2 = arith.truncf %1 : vector<12x12xf32> to vector<12x12xbf16>
    %c0_2 = arith.constant 0 : index
    %c0_3 = arith.constant 0 : index
    %c0_4 = arith.constant 0 : index
    %3 = vector.load %arg2[%c0_2, %c0_3, %c0_4] : memref<1x12x32xbf16, #tpu.memory_space<vmem>>, vector<1x12x32xbf16>
    %4 = vector.shape_cast %3 : vector<1x12x32xbf16> to vector<12x32xbf16>
    %cst = arith.constant dense<0.000000e+00> : vector<12x32xf32>
    %5 = tpu.matmul %2, %4, %cst {dimension_numbers = #tpu.dot_dimension_numbers<[1], [0], [0], [1], [0, 0, 1, 1], [], []>} : vector<12x12xbf16>, vector<12x32xbf16>, vector<12x32xf32> -> vector<12x32xf32>
    %6 = arith.truncf %5 : vector<12x32xf32> to vector<12x32xbf16>
    %c0_5 = arith.constant 0 : index
    %c0_6 = arith.constant 0 : index
    %7 = vector.load %arg3[%c0_5, %c0_6] : memref<32x32xbf16, #tpu.memory_space<vmem>>, vector<32x32xbf16>
    %cst_7 = arith.constant dense<0.000000e+00> : vector<12x32xf32>
    %8 = tpu.matmul %6, %7, %cst_7 {dimension_numbers = #tpu.dot_dimension_numbers<[1], [0], [0], [1], [0, 0, 1, 1], [], []>} : vector<12x32xbf16>, vector<32x32xbf16>, vector<12x32xf32> -> vector<12x32xf32>
    %c0_8 = arith.constant 0 : index
    %c0_9 = arith.constant 0 : index
    %9 = vector.load %arg4[%c0_8, %c0_9] : memref<1x32xf32, #tpu.memory_space<vmem>>, vector<1x32xf32>
    %10 = vector.broadcast %9 : vector<1x32xf32> to vector<12x32xf32>
    %11 = arith.addf %8, %10 : vector<12x32xf32>
    %cst_10 = arith.constant 0.000000e+00 : f32
    %12 = vector.broadcast %cst_10 : f32 to vector<12x32xf32>
    %13 = arith.maximumf %11, %12 : vector<12x32xf32>
    %c0_11 = arith.constant 0 : index
    %c0_12 = arith.constant 0 : index
    %14 = vector.load %arg5[%c0_11, %c0_12] : memref<1x32xf32, #tpu.memory_space<vmem>>, vector<1x32xf32>
    %cst_13 = arith.constant dense<0.000000e+00> : vector<1x12xf32>
    %15 = tpu.matmul %14, %13, %cst_13 {dimension_numbers = #tpu.dot_dimension_numbers<[1], [1], [0], [0], [0, 0, 1, 0], [], []>} : vector<1x32xf32>, vector<12x32xf32>, vector<1x12xf32> -> vector<1x12xf32>
    %c0_14 = arith.constant 0 : index
    %c0_15 = arith.constant 0 : index
    %16 = vector.load %arg6[%c0_14, %c0_15] : memref<1x1xf32, #tpu.memory_space<vmem>>, vector<1x1xf32>
    %17 = vector.broadcast %16 : vector<1x1xf32> to vector<1x12xf32>
    %18 = arith.addf %15, %17 : vector<1x12xf32>
    %19 = arith.negf %18 : vector<1x12xf32>
    %20 = math.exp %19 : vector<1x12xf32>
    %cst_16 = arith.constant 1.000000e+00 : f32
    %21 = vector.broadcast %cst_16 : f32 to vector<1x12xf32>
    %22 = arith.addf %21, %20 : vector<1x12xf32>
    %23 = arith.divf %21, %22 : vector<1x12xf32>
    %24 = tpu.iota {dimensions = array<i32: 1>} : vector<1x12xi32>
    %25 = tpu.iota {dimensions = array<i32: 0>} : vector<7x1xi32>
    %cst_17 = arith.constant 0.000000e+00 : f32
    %26 = vector.broadcast %cst_17 : f32 to vector<7x12xf32>
    %c0_i32 = arith.constant 0 : i32
    %cst_18 = arith.constant dense<0xFF800000> : vector<1xf32>
    %27 = vector.multi_reduction <maximumf>, %23, %cst_18 [1] : vector<1x12xf32> to vector<1xf32>
    %28 = vector.shape_cast %27 : vector<1xf32> to vector<1x1xf32>
    %29 = vector.broadcast %28 : vector<1x1xf32> to vector<1x12xf32>
    %30 = arith.cmpf oge, %23, %29 : vector<1x12xf32>
    %c12_i32 = arith.constant 12 : i32
    %31 = vector.broadcast %c12_i32 : i32 to vector<1x12xi32>
    %32 = arith.select %30, %24, %31 : vector<1x12xi1>, vector<1x12xi32>
    %cst_19 = arith.constant dense<2147483647> : vector<1xi32>
    %33 = vector.multi_reduction <minsi>, %32, %cst_19 [1] : vector<1x12xi32> to vector<1xi32>
    %34 = vector.shape_cast %33 : vector<1xi32> to vector<1x1xi32>
    %35 = vector.broadcast %34 : vector<1x1xi32> to vector<1x12xi32>
    %36 = arith.cmpi eq, %24, %35 : vector<1x12xi32>
    %37 = arith.extui %36 : vector<1x12xi1> to vector<1x12xi32>
    %38 = arith.sitofp %37 : vector<1x12xi32> to vector<1x12xf32>
    %39 = vector.broadcast %c0_i32 : i32 to vector<7x1xi32>
    %40 = arith.cmpi eq, %25, %39 : vector<7x1xi32>
    %41 = vector.shape_cast %40 : vector<7x1xi1> to vector<7x1xi1>
    %42 = vector.broadcast %41 : vector<7x1xi1> to vector<7x12xi1>
    %43 = vector.shape_cast %38 : vector<1x12xf32> to vector<1x12xf32>
    %44 = vector.broadcast %43 : vector<1x12xf32> to vector<7x12xf32>
    %45 = arith.select %42, %44, %26 : vector<7x12xi1>, vector<7x12xf32>
    %46 = vector.broadcast %34 : vector<1x1xi32> to vector<1x12xi32>
    %47 = arith.cmpi eq, %24, %46 : vector<1x12xi32>
    %cst_20 = arith.constant -1.000000e+00 : f32
    %48 = vector.broadcast %cst_20 : f32 to vector<1x12xf32>
    %49 = arith.select %47, %48, %23 : vector<1x12xi1>, vector<1x12xf32>
    %c1_i32 = arith.constant 1 : i32
    %cst_21 = arith.constant dense<0xFF800000> : vector<1xf32>
    %50 = vector.multi_reduction <maximumf>, %49, %cst_21 [1] : vector<1x12xf32> to vector<1xf32>
    %51 = vector.shape_cast %50 : vector<1xf32> to vector<1x1xf32>
    %52 = vector.broadcast %51 : vector<1x1xf32> to vector<1x12xf32>
    %53 = arith.cmpf oge, %49, %52 : vector<1x12xf32>
    %c12_i32_22 = arith.constant 12 : i32
    %54 = vector.broadcast %c12_i32_22 : i32 to vector<1x12xi32>
    %55 = arith.select %53, %24, %54 : vector<1x12xi1>, vector<1x12xi32>
    %cst_23 = arith.constant dense<2147483647> : vector<1xi32>
    %56 = vector.multi_reduction <minsi>, %55, %cst_23 [1] : vector<1x12xi32> to vector<1xi32>
    %57 = vector.shape_cast %56 : vector<1xi32> to vector<1x1xi32>
    %58 = vector.broadcast %57 : vector<1x1xi32> to vector<1x12xi32>
    %59 = arith.cmpi eq, %24, %58 : vector<1x12xi32>
    %60 = arith.extui %59 : vector<1x12xi1> to vector<1x12xi32>
    %61 = arith.sitofp %60 : vector<1x12xi32> to vector<1x12xf32>
    %62 = vector.broadcast %c1_i32 : i32 to vector<7x1xi32>
    %63 = arith.cmpi eq, %25, %62 : vector<7x1xi32>
    %64 = vector.shape_cast %63 : vector<7x1xi1> to vector<7x1xi1>
    %65 = vector.broadcast %64 : vector<7x1xi1> to vector<7x12xi1>
    %66 = vector.shape_cast %61 : vector<1x12xf32> to vector<1x12xf32>
    %67 = vector.broadcast %66 : vector<1x12xf32> to vector<7x12xf32>
    %68 = arith.select %65, %67, %45 : vector<7x12xi1>, vector<7x12xf32>
    %69 = vector.broadcast %57 : vector<1x1xi32> to vector<1x12xi32>
    %70 = arith.cmpi eq, %24, %69 : vector<1x12xi32>
    %cst_24 = arith.constant -1.000000e+00 : f32
    %71 = vector.broadcast %cst_24 : f32 to vector<1x12xf32>
    %72 = arith.select %70, %71, %49 : vector<1x12xi1>, vector<1x12xf32>
    %c2_i32 = arith.constant 2 : i32
    %cst_25 = arith.constant dense<0xFF800000> : vector<1xf32>
    %73 = vector.multi_reduction <maximumf>, %72, %cst_25 [1] : vector<1x12xf32> to vector<1xf32>
    %74 = vector.shape_cast %73 : vector<1xf32> to vector<1x1xf32>
    %75 = vector.broadcast %74 : vector<1x1xf32> to vector<1x12xf32>
    %76 = arith.cmpf oge, %72, %75 : vector<1x12xf32>
    %c12_i32_26 = arith.constant 12 : i32
    %77 = vector.broadcast %c12_i32_26 : i32 to vector<1x12xi32>
    %78 = arith.select %76, %24, %77 : vector<1x12xi1>, vector<1x12xi32>
    %cst_27 = arith.constant dense<2147483647> : vector<1xi32>
    %79 = vector.multi_reduction <minsi>, %78, %cst_27 [1] : vector<1x12xi32> to vector<1xi32>
    %80 = vector.shape_cast %79 : vector<1xi32> to vector<1x1xi32>
    %81 = vector.broadcast %80 : vector<1x1xi32> to vector<1x12xi32>
    %82 = arith.cmpi eq, %24, %81 : vector<1x12xi32>
    %83 = arith.extui %82 : vector<1x12xi1> to vector<1x12xi32>
    %84 = arith.sitofp %83 : vector<1x12xi32> to vector<1x12xf32>
    %85 = vector.broadcast %c2_i32 : i32 to vector<7x1xi32>
    %86 = arith.cmpi eq, %25, %85 : vector<7x1xi32>
    %87 = vector.shape_cast %86 : vector<7x1xi1> to vector<7x1xi1>
    %88 = vector.broadcast %87 : vector<7x1xi1> to vector<7x12xi1>
    %89 = vector.shape_cast %84 : vector<1x12xf32> to vector<1x12xf32>
    %90 = vector.broadcast %89 : vector<1x12xf32> to vector<7x12xf32>
    %91 = arith.select %88, %90, %68 : vector<7x12xi1>, vector<7x12xf32>
    %92 = vector.broadcast %80 : vector<1x1xi32> to vector<1x12xi32>
    %93 = arith.cmpi eq, %24, %92 : vector<1x12xi32>
    %cst_28 = arith.constant -1.000000e+00 : f32
    %94 = vector.broadcast %cst_28 : f32 to vector<1x12xf32>
    %95 = arith.select %93, %94, %72 : vector<1x12xi1>, vector<1x12xf32>
    %c3_i32 = arith.constant 3 : i32
    %cst_29 = arith.constant dense<0xFF800000> : vector<1xf32>
    %96 = vector.multi_reduction <maximumf>, %95, %cst_29 [1] : vector<1x12xf32> to vector<1xf32>
    %97 = vector.shape_cast %96 : vector<1xf32> to vector<1x1xf32>
    %98 = vector.broadcast %97 : vector<1x1xf32> to vector<1x12xf32>
    %99 = arith.cmpf oge, %95, %98 : vector<1x12xf32>
    %c12_i32_30 = arith.constant 12 : i32
    %100 = vector.broadcast %c12_i32_30 : i32 to vector<1x12xi32>
    %101 = arith.select %99, %24, %100 : vector<1x12xi1>, vector<1x12xi32>
    %cst_31 = arith.constant dense<2147483647> : vector<1xi32>
    %102 = vector.multi_reduction <minsi>, %101, %cst_31 [1] : vector<1x12xi32> to vector<1xi32>
    %103 = vector.shape_cast %102 : vector<1xi32> to vector<1x1xi32>
    %104 = vector.broadcast %103 : vector<1x1xi32> to vector<1x12xi32>
    %105 = arith.cmpi eq, %24, %104 : vector<1x12xi32>
    %106 = arith.extui %105 : vector<1x12xi1> to vector<1x12xi32>
    %107 = arith.sitofp %106 : vector<1x12xi32> to vector<1x12xf32>
    %108 = vector.broadcast %c3_i32 : i32 to vector<7x1xi32>
    %109 = arith.cmpi eq, %25, %108 : vector<7x1xi32>
    %110 = vector.shape_cast %109 : vector<7x1xi1> to vector<7x1xi1>
    %111 = vector.broadcast %110 : vector<7x1xi1> to vector<7x12xi1>
    %112 = vector.shape_cast %107 : vector<1x12xf32> to vector<1x12xf32>
    %113 = vector.broadcast %112 : vector<1x12xf32> to vector<7x12xf32>
    %114 = arith.select %111, %113, %91 : vector<7x12xi1>, vector<7x12xf32>
    %115 = vector.broadcast %103 : vector<1x1xi32> to vector<1x12xi32>
    %116 = arith.cmpi eq, %24, %115 : vector<1x12xi32>
    %cst_32 = arith.constant -1.000000e+00 : f32
    %117 = vector.broadcast %cst_32 : f32 to vector<1x12xf32>
    %118 = arith.select %116, %117, %95 : vector<1x12xi1>, vector<1x12xf32>
    %c4_i32 = arith.constant 4 : i32
    %cst_33 = arith.constant dense<0xFF800000> : vector<1xf32>
    %119 = vector.multi_reduction <maximumf>, %118, %cst_33 [1] : vector<1x12xf32> to vector<1xf32>
    %120 = vector.shape_cast %119 : vector<1xf32> to vector<1x1xf32>
    %121 = vector.broadcast %120 : vector<1x1xf32> to vector<1x12xf32>
    %122 = arith.cmpf oge, %118, %121 : vector<1x12xf32>
    %c12_i32_34 = arith.constant 12 : i32
    %123 = vector.broadcast %c12_i32_34 : i32 to vector<1x12xi32>
    %124 = arith.select %122, %24, %123 : vector<1x12xi1>, vector<1x12xi32>
    %cst_35 = arith.constant dense<2147483647> : vector<1xi32>
    %125 = vector.multi_reduction <minsi>, %124, %cst_35 [1] : vector<1x12xi32> to vector<1xi32>
    %126 = vector.shape_cast %125 : vector<1xi32> to vector<1x1xi32>
    %127 = vector.broadcast %126 : vector<1x1xi32> to vector<1x12xi32>
    %128 = arith.cmpi eq, %24, %127 : vector<1x12xi32>
    %129 = arith.extui %128 : vector<1x12xi1> to vector<1x12xi32>
    %130 = arith.sitofp %129 : vector<1x12xi32> to vector<1x12xf32>
    %131 = vector.broadcast %c4_i32 : i32 to vector<7x1xi32>
    %132 = arith.cmpi eq, %25, %131 : vector<7x1xi32>
    %133 = vector.shape_cast %132 : vector<7x1xi1> to vector<7x1xi1>
    %134 = vector.broadcast %133 : vector<7x1xi1> to vector<7x12xi1>
    %135 = vector.shape_cast %130 : vector<1x12xf32> to vector<1x12xf32>
    %136 = vector.broadcast %135 : vector<1x12xf32> to vector<7x12xf32>
    %137 = arith.select %134, %136, %114 : vector<7x12xi1>, vector<7x12xf32>
    %138 = vector.broadcast %126 : vector<1x1xi32> to vector<1x12xi32>
    %139 = arith.cmpi eq, %24, %138 : vector<1x12xi32>
    %cst_36 = arith.constant -1.000000e+00 : f32
    %140 = vector.broadcast %cst_36 : f32 to vector<1x12xf32>
    %141 = arith.select %139, %140, %118 : vector<1x12xi1>, vector<1x12xf32>
    %c5_i32 = arith.constant 5 : i32
    %cst_37 = arith.constant dense<0xFF800000> : vector<1xf32>
    %142 = vector.multi_reduction <maximumf>, %141, %cst_37 [1] : vector<1x12xf32> to vector<1xf32>
    %143 = vector.shape_cast %142 : vector<1xf32> to vector<1x1xf32>
    %144 = vector.broadcast %143 : vector<1x1xf32> to vector<1x12xf32>
    %145 = arith.cmpf oge, %141, %144 : vector<1x12xf32>
    %c12_i32_38 = arith.constant 12 : i32
    %146 = vector.broadcast %c12_i32_38 : i32 to vector<1x12xi32>
    %147 = arith.select %145, %24, %146 : vector<1x12xi1>, vector<1x12xi32>
    %cst_39 = arith.constant dense<2147483647> : vector<1xi32>
    %148 = vector.multi_reduction <minsi>, %147, %cst_39 [1] : vector<1x12xi32> to vector<1xi32>
    %149 = vector.shape_cast %148 : vector<1xi32> to vector<1x1xi32>
    %150 = vector.broadcast %149 : vector<1x1xi32> to vector<1x12xi32>
    %151 = arith.cmpi eq, %24, %150 : vector<1x12xi32>
    %152 = arith.extui %151 : vector<1x12xi1> to vector<1x12xi32>
    %153 = arith.sitofp %152 : vector<1x12xi32> to vector<1x12xf32>
    %154 = vector.broadcast %c5_i32 : i32 to vector<7x1xi32>
    %155 = arith.cmpi eq, %25, %154 : vector<7x1xi32>
    %156 = vector.shape_cast %155 : vector<7x1xi1> to vector<7x1xi1>
    %157 = vector.broadcast %156 : vector<7x1xi1> to vector<7x12xi1>
    %158 = vector.shape_cast %153 : vector<1x12xf32> to vector<1x12xf32>
    %159 = vector.broadcast %158 : vector<1x12xf32> to vector<7x12xf32>
    %160 = arith.select %157, %159, %137 : vector<7x12xi1>, vector<7x12xf32>
    %161 = vector.broadcast %149 : vector<1x1xi32> to vector<1x12xi32>
    %162 = arith.cmpi eq, %24, %161 : vector<1x12xi32>
    %cst_40 = arith.constant -1.000000e+00 : f32
    %163 = vector.broadcast %cst_40 : f32 to vector<1x12xf32>
    %164 = arith.select %162, %163, %141 : vector<1x12xi1>, vector<1x12xf32>
    %c6_i32 = arith.constant 6 : i32
    %cst_41 = arith.constant dense<0xFF800000> : vector<1xf32>
    %165 = vector.multi_reduction <maximumf>, %164, %cst_41 [1] : vector<1x12xf32> to vector<1xf32>
    %166 = vector.shape_cast %165 : vector<1xf32> to vector<1x1xf32>
    %167 = vector.broadcast %166 : vector<1x1xf32> to vector<1x12xf32>
    %168 = arith.cmpf oge, %164, %167 : vector<1x12xf32>
    %c12_i32_42 = arith.constant 12 : i32
    %169 = vector.broadcast %c12_i32_42 : i32 to vector<1x12xi32>
    %170 = arith.select %168, %24, %169 : vector<1x12xi1>, vector<1x12xi32>
    %cst_43 = arith.constant dense<2147483647> : vector<1xi32>
    %171 = vector.multi_reduction <minsi>, %170, %cst_43 [1] : vector<1x12xi32> to vector<1xi32>
    %172 = vector.shape_cast %171 : vector<1xi32> to vector<1x1xi32>
    %173 = vector.broadcast %172 : vector<1x1xi32> to vector<1x12xi32>
    %174 = arith.cmpi eq, %24, %173 : vector<1x12xi32>
    %175 = arith.extui %174 : vector<1x12xi1> to vector<1x12xi32>
    %176 = arith.sitofp %175 : vector<1x12xi32> to vector<1x12xf32>
    %177 = vector.broadcast %c6_i32 : i32 to vector<7x1xi32>
    %178 = arith.cmpi eq, %25, %177 : vector<7x1xi32>
    %179 = vector.shape_cast %178 : vector<7x1xi1> to vector<7x1xi1>
    %180 = vector.broadcast %179 : vector<7x1xi1> to vector<7x12xi1>
    %181 = vector.shape_cast %176 : vector<1x12xf32> to vector<1x12xf32>
    %182 = vector.broadcast %181 : vector<1x12xf32> to vector<7x12xf32>
    %183 = arith.select %180, %182, %160 : vector<7x12xi1>, vector<7x12xf32>
    %184 = vector.broadcast %172 : vector<1x1xi32> to vector<1x12xi32>
    %185 = arith.cmpi eq, %24, %184 : vector<1x12xi32>
    %cst_44 = arith.constant -1.000000e+00 : f32
    %186 = vector.broadcast %cst_44 : f32 to vector<1x12xf32>
    %187 = arith.select %185, %186, %164 : vector<1x12xi1>, vector<1x12xf32>
    %c7_i32 = arith.constant 7 : i32
    %cst_45 = arith.constant dense<0.000000e+00> : vector<7x32xf32>
    %188 = tpu.matmul %183, %13, %cst_45 {dimension_numbers = #tpu.dot_dimension_numbers<[1], [0], [0], [1], [0, 0, 1, 1], [], []>} : vector<7x12xf32>, vector<12x32xf32>, vector<7x32xf32> -> vector<7x32xf32>
    %cst_46 = arith.constant dense<0.000000e+00> : vector<7x1xf32>
    %189 = tpu.matmul %183, %23, %cst_46 {dimension_numbers = #tpu.dot_dimension_numbers<[1], [1], [0], [0], [0, 0, 1, 0], [], []>} : vector<7x12xf32>, vector<1x12xf32>, vector<7x1xf32> -> vector<7x1xf32>
    %190 = vector.broadcast %189 : vector<7x1xf32> to vector<7x32xf32>
    %191 = arith.mulf %188, %190 : vector<7x32xf32>
    %192 = arith.truncf %191 : vector<7x32xf32> to vector<7x32xbf16>
    %c0_47 = arith.constant 0 : index
    %c0_48 = arith.constant 0 : index
    %c0_49 = arith.constant 0 : index
    %193 = vector.load %arg8[%c0_47, %c0_48, %c0_49] : memref<1x7x32xbf16, #tpu.memory_space<vmem>>, vector<1x7x32xbf16>
    %194 = vector.shape_cast %193 : vector<1x7x32xbf16> to vector<7x32xbf16>
    %195 = vector.shape_cast %192 : vector<7x32xbf16> to vector<1x7x32xbf16>
    tpu.vector_store %arg8[%c0_47, %c0_48, %c0_49], %195 {strides = array<i32>} : memref<1x7x32xbf16, #tpu.memory_space<vmem>>, vector<1x7x32xbf16>,
    %cst_50 = arith.constant 0.000000e+00 : f32
    %196 = vector.broadcast %cst_50 : f32 to vector<12x12xf32>
    %197 = arith.cmpf one, %1, %196 : vector<12x12xf32>
    %198 = arith.extui %197 : vector<12x12xi1> to vector<12x12xi32>
    %199 = arith.sitofp %198 : vector<12x12xi32> to vector<12x12xf32>
    %200 = arith.truncf %199 : vector<12x12xf32> to vector<12x12xbf16>
    %cst_51 = arith.constant dense<0.000000e+00> : vector<12x12xf32>
    %201 = tpu.matmul %200, %200, %cst_51 {dimension_numbers = #tpu.dot_dimension_numbers<[1], [0], [0], [1], [0, 0, 1, 1], [], []>} : vector<12x12xbf16>, vector<12x12xbf16>, vector<12x12xf32> -> vector<12x12xf32>
    %cst_52 = arith.constant 0.000000e+00 : f32
    %202 = vector.broadcast %cst_52 : f32 to vector<12x12xf32>
    %203 = arith.cmpf ogt, %201, %202 : vector<12x12xf32>
    %204 = arith.extui %203 : vector<12x12xi1> to vector<12x12xi32>
    %205 = arith.sitofp %204 : vector<12x12xi32> to vector<12x12xf32>
    %206 = arith.truncf %205 : vector<12x12xf32> to vector<12x12xbf16>
    %207 = arith.truncf %183 : vector<7x12xf32> to vector<7x12xbf16>
    %cst_53 = arith.constant dense<0.000000e+00> : vector<7x12xf32>
    %208 = tpu.matmul %207, %206, %cst_53 {dimension_numbers = #tpu.dot_dimension_numbers<[1], [0], [0], [1], [0, 0, 1, 1], [], []>} : vector<7x12xbf16>, vector<12x12xbf16>, vector<7x12xf32> -> vector<7x12xf32>
    %209 = arith.truncf %208 : vector<7x12xf32> to vector<7x12xbf16>
    %cst_54 = arith.constant dense<0.000000e+00> : vector<7x7xf32>
    %210 = tpu.matmul %209, %207, %cst_54 {dimension_numbers = #tpu.dot_dimension_numbers<[1], [1], [0], [0], [0, 0, 1, 0], [], []>} : vector<7x12xbf16>, vector<7x12xbf16>, vector<7x7xf32> -> vector<7x7xf32>
    %cst_55 = arith.constant 1.000000e+00 : bf16
    %211 = vector.broadcast %cst_55 : bf16 to vector<1x7xbf16>
    %212 = arith.truncf %210 : vector<7x7xf32> to vector<7x7xbf16>
    %cst_56 = arith.constant dense<0.000000e+00> : vector<1x7xf32>
    %213 = tpu.matmul %211, %212, %cst_56 {dimension_numbers = #tpu.dot_dimension_numbers<[1], [1], [0], [0], [0, 0, 1, 0], [], []>} : vector<1x7xbf16>, vector<7x7xbf16>, vector<1x7xf32> -> vector<1x7xf32>
    %214 = tpu.reciprocal %213 {approx = true} : vector<1x7xf32> -> vector<1x7xf32>
    %215 = vector.broadcast %214 : vector<1x7xf32> to vector<7x7xf32>
    %216 = arith.mulf %210, %215 : vector<7x7xf32>
    %c0_57 = arith.constant 0 : index
    %c0_58 = arith.constant 0 : index
    %c0_59 = arith.constant 0 : index
    %217 = vector.load %arg7[%c0_57, %c0_58, %c0_59] : memref<1x7x7xf32, #tpu.memory_space<vmem>>, vector<1x7x7xf32>
    %218 = vector.shape_cast %217 : vector<1x7x7xf32> to vector<7x7xf32>
    %219 = vector.shape_cast %216 : vector<7x7xf32> to vector<1x7x7xf32>
    tpu.vector_store %arg7[%c0_57, %c0_58, %c0_59], %219 {strides = array<i32>} : memref<1x7x7xf32, #tpu.memory_space<vmem>>, vector<1x7x7xf32>,
    return
  }
  func.func @transform_0(%arg0: i32) -> (i32, i32, i32) {
    %c0_i32 = arith.constant 0 : i32
    %c0_i32_0 = arith.constant 0 : i32
    %c0_i32_1 = arith.constant 0 : i32
    return %arg0, %c0_i32, %c0_i32_0 : i32, i32, i32
  }
  func.func @transform_1(%arg0: i32) -> (i32, i32, i32) {
    %c0_i32 = arith.constant 0 : i32
    %c0_i32_0 = arith.constant 0 : i32
    %c0_i32_1 = arith.constant 0 : i32
    return %arg0, %c0_i32, %c0_i32_0 : i32, i32, i32
  }
  func.func @transform_2(%arg0: i32) -> (i32, i32) {
    %c0_i32 = arith.constant 0 : i32
    %c0_i32_0 = arith.constant 0 : i32
    %c0_i32_1 = arith.constant 0 : i32
    return %c0_i32, %c0_i32_0 : i32, i32
  }
  func.func @transform_3(%arg0: i32) -> (i32, i32) {
    %c0_i32 = arith.constant 0 : i32
    %c0_i32_0 = arith.constant 0 : i32
    %c0_i32_1 = arith.constant 0 : i32
    return %c0_i32, %c0_i32_0 : i32, i32
  }
  func.func @transform_4(%arg0: i32) -> (i32, i32) {
    %c0_i32 = arith.constant 0 : i32
    %c0_i32_0 = arith.constant 0 : i32
    %c0_i32_1 = arith.constant 0 : i32
    return %c0_i32, %c0_i32_0 : i32, i32
  }
  func.func @transform_5(%arg0: i32) -> (i32, i32) {
    %c0_i32 = arith.constant 0 : i32
    %c0_i32_0 = arith.constant 0 : i32
    %c0_i32_1 = arith.constant 0 : i32
    return %c0_i32, %c0_i32_0 : i32, i32
  }
  func.func @transform_6(%arg0: i32) -> (i32, i32, i32) {
    %c0_i32 = arith.constant 0 : i32
    %c0_i32_0 = arith.constant 0 : i32
    %c0_i32_1 = arith.constant 0 : i32
    return %arg0, %c0_i32, %c0_i32_0 : i32, i32, i32
  }
  func.func @transform_7(%arg0: i32) -> (i32, i32, i32) {
    %c0_i32 = arith.constant 0 : i32
    %c0_i32_0 = arith.constant 0 : i32
    %c0_i32_1 = arith.constant 0 : i32
    return %arg0, %c0_i32, %c0_i32_0 : i32, i32, i32
  }
}

module attributes {stable_mosaic.version = 11 : i64} {
  func.func @_level_kernel(%arg0: i32, %arg1: memref<1x16x16xf32, #tpu.memory_space<vmem>>, %arg2: memref<1x16x32xbf16, #tpu.memory_space<vmem>>, %arg3: memref<32x32xbf16, #tpu.memory_space<vmem>>, %arg4: memref<1x32xf32, #tpu.memory_space<vmem>>, %arg5: memref<1x32xf32, #tpu.memory_space<vmem>>, %arg6: memref<1x1xf32, #tpu.memory_space<vmem>>, %arg7: memref<1x12x12xf32, #tpu.memory_space<vmem>>, %arg8: memref<1x12x32xbf16, #tpu.memory_space<vmem>>) attributes {dimension_semantics = [#tpu.dimension_semantics<parallel>], iteration_bounds = array<i64: 2>, scalar_prefetch = 0 : i64, scratch_operands = 0 : i64, tpu.core_type = #tpu.core_type<tc>, window_params = [{transform_indices = @transform_0, window_bounds = array<i64: 1, 16, 16>}, {transform_indices = @transform_1, window_bounds = array<i64: 1, 16, 32>}, {pipeline_mode = #tpu.pipeline_mode<synchronous>, transform_indices = @transform_2, window_bounds = array<i64: 32, 32>}, {pipeline_mode = #tpu.pipeline_mode<synchronous>, transform_indices = @transform_3, window_bounds = array<i64: 1, 32>}, {pipeline_mode = #tpu.pipeline_mode<synchronous>, transform_indices = @transform_4, window_bounds = array<i64: 1, 32>}, {pipeline_mode = #tpu.pipeline_mode<synchronous>, transform_indices = @transform_5, window_bounds = array<i64: 1, 1>}, {transform_indices = @transform_6, window_bounds = array<i64: 1, 12, 12>}, {transform_indices = @transform_7, window_bounds = array<i64: 1, 12, 32>}]} {
    %c0 = arith.constant 0 : index
    %c0_0 = arith.constant 0 : index
    %c0_1 = arith.constant 0 : index
    %0 = vector.load %arg1[%c0, %c0_0, %c0_1] : memref<1x16x16xf32, #tpu.memory_space<vmem>>, vector<1x16x16xf32>
    %1 = vector.shape_cast %0 : vector<1x16x16xf32> to vector<16x16xf32>
    %2 = arith.truncf %1 : vector<16x16xf32> to vector<16x16xbf16>
    %c0_2 = arith.constant 0 : index
    %c0_3 = arith.constant 0 : index
    %c0_4 = arith.constant 0 : index
    %3 = vector.load %arg2[%c0_2, %c0_3, %c0_4] : memref<1x16x32xbf16, #tpu.memory_space<vmem>>, vector<1x16x32xbf16>
    %4 = vector.shape_cast %3 : vector<1x16x32xbf16> to vector<16x32xbf16>
    %cst = arith.constant dense<0.000000e+00> : vector<16x32xf32>
    %5 = tpu.matmul %2, %4, %cst {dimension_numbers = #tpu.dot_dimension_numbers<[1], [0], [0], [1], [0, 0, 1, 1], [], []>} : vector<16x16xbf16>, vector<16x32xbf16>, vector<16x32xf32> -> vector<16x32xf32>
    %6 = arith.truncf %5 : vector<16x32xf32> to vector<16x32xbf16>
    %c0_5 = arith.constant 0 : index
    %c0_6 = arith.constant 0 : index
    %7 = vector.load %arg3[%c0_5, %c0_6] : memref<32x32xbf16, #tpu.memory_space<vmem>>, vector<32x32xbf16>
    %cst_7 = arith.constant dense<0.000000e+00> : vector<16x32xf32>
    %8 = tpu.matmul %6, %7, %cst_7 {dimension_numbers = #tpu.dot_dimension_numbers<[1], [0], [0], [1], [0, 0, 1, 1], [], []>} : vector<16x32xbf16>, vector<32x32xbf16>, vector<16x32xf32> -> vector<16x32xf32>
    %c0_8 = arith.constant 0 : index
    %c0_9 = arith.constant 0 : index
    %9 = vector.load %arg4[%c0_8, %c0_9] : memref<1x32xf32, #tpu.memory_space<vmem>>, vector<1x32xf32>
    %10 = vector.broadcast %9 : vector<1x32xf32> to vector<16x32xf32>
    %11 = arith.addf %8, %10 : vector<16x32xf32>
    %cst_10 = arith.constant 0.000000e+00 : f32
    %12 = vector.broadcast %cst_10 : f32 to vector<16x32xf32>
    %13 = arith.maximumf %11, %12 : vector<16x32xf32>
    %c0_11 = arith.constant 0 : index
    %c0_12 = arith.constant 0 : index
    %14 = vector.load %arg5[%c0_11, %c0_12] : memref<1x32xf32, #tpu.memory_space<vmem>>, vector<1x32xf32>
    %cst_13 = arith.constant dense<0.000000e+00> : vector<1x16xf32>
    %15 = tpu.matmul %14, %13, %cst_13 {dimension_numbers = #tpu.dot_dimension_numbers<[1], [1], [0], [0], [0, 0, 1, 0], [], []>} : vector<1x32xf32>, vector<16x32xf32>, vector<1x16xf32> -> vector<1x16xf32>
    %c0_14 = arith.constant 0 : index
    %c0_15 = arith.constant 0 : index
    %16 = vector.load %arg6[%c0_14, %c0_15] : memref<1x1xf32, #tpu.memory_space<vmem>>, vector<1x1xf32>
    %17 = vector.broadcast %16 : vector<1x1xf32> to vector<1x16xf32>
    %18 = arith.addf %15, %17 : vector<1x16xf32>
    %19 = arith.negf %18 : vector<1x16xf32>
    %20 = math.exp %19 : vector<1x16xf32>
    %cst_16 = arith.constant 1.000000e+00 : f32
    %21 = vector.broadcast %cst_16 : f32 to vector<1x16xf32>
    %22 = arith.addf %21, %20 : vector<1x16xf32>
    %23 = arith.divf %21, %22 : vector<1x16xf32>
    %24 = tpu.iota {dimensions = array<i32: 1>} : vector<1x16xi32>
    %25 = tpu.iota {dimensions = array<i32: 0>} : vector<12x1xi32>
    %cst_17 = arith.constant 0.000000e+00 : f32
    %26 = vector.broadcast %cst_17 : f32 to vector<12x16xf32>
    %c0_i32 = arith.constant 0 : i32
    %cst_18 = arith.constant dense<0xFF800000> : vector<1xf32>
    %27 = vector.multi_reduction <maximumf>, %23, %cst_18 [1] : vector<1x16xf32> to vector<1xf32>
    %28 = vector.shape_cast %27 : vector<1xf32> to vector<1x1xf32>
    %29 = vector.broadcast %28 : vector<1x1xf32> to vector<1x16xf32>
    %30 = arith.cmpf oge, %23, %29 : vector<1x16xf32>
    %c16_i32 = arith.constant 16 : i32
    %31 = vector.broadcast %c16_i32 : i32 to vector<1x16xi32>
    %32 = arith.select %30, %24, %31 : vector<1x16xi1>, vector<1x16xi32>
    %cst_19 = arith.constant dense<2147483647> : vector<1xi32>
    %33 = vector.multi_reduction <minsi>, %32, %cst_19 [1] : vector<1x16xi32> to vector<1xi32>
    %34 = vector.shape_cast %33 : vector<1xi32> to vector<1x1xi32>
    %35 = vector.broadcast %34 : vector<1x1xi32> to vector<1x16xi32>
    %36 = arith.cmpi eq, %24, %35 : vector<1x16xi32>
    %37 = arith.extui %36 : vector<1x16xi1> to vector<1x16xi32>
    %38 = arith.sitofp %37 : vector<1x16xi32> to vector<1x16xf32>
    %39 = vector.broadcast %c0_i32 : i32 to vector<12x1xi32>
    %40 = arith.cmpi eq, %25, %39 : vector<12x1xi32>
    %41 = vector.shape_cast %40 : vector<12x1xi1> to vector<12x1xi1>
    %42 = vector.broadcast %41 : vector<12x1xi1> to vector<12x16xi1>
    %43 = vector.shape_cast %38 : vector<1x16xf32> to vector<1x16xf32>
    %44 = vector.broadcast %43 : vector<1x16xf32> to vector<12x16xf32>
    %45 = arith.select %42, %44, %26 : vector<12x16xi1>, vector<12x16xf32>
    %46 = vector.broadcast %34 : vector<1x1xi32> to vector<1x16xi32>
    %47 = arith.cmpi eq, %24, %46 : vector<1x16xi32>
    %cst_20 = arith.constant -1.000000e+00 : f32
    %48 = vector.broadcast %cst_20 : f32 to vector<1x16xf32>
    %49 = arith.select %47, %48, %23 : vector<1x16xi1>, vector<1x16xf32>
    %c1_i32 = arith.constant 1 : i32
    %cst_21 = arith.constant dense<0xFF800000> : vector<1xf32>
    %50 = vector.multi_reduction <maximumf>, %49, %cst_21 [1] : vector<1x16xf32> to vector<1xf32>
    %51 = vector.shape_cast %50 : vector<1xf32> to vector<1x1xf32>
    %52 = vector.broadcast %51 : vector<1x1xf32> to vector<1x16xf32>
    %53 = arith.cmpf oge, %49, %52 : vector<1x16xf32>
    %c16_i32_22 = arith.constant 16 : i32
    %54 = vector.broadcast %c16_i32_22 : i32 to vector<1x16xi32>
    %55 = arith.select %53, %24, %54 : vector<1x16xi1>, vector<1x16xi32>
    %cst_23 = arith.constant dense<2147483647> : vector<1xi32>
    %56 = vector.multi_reduction <minsi>, %55, %cst_23 [1] : vector<1x16xi32> to vector<1xi32>
    %57 = vector.shape_cast %56 : vector<1xi32> to vector<1x1xi32>
    %58 = vector.broadcast %57 : vector<1x1xi32> to vector<1x16xi32>
    %59 = arith.cmpi eq, %24, %58 : vector<1x16xi32>
    %60 = arith.extui %59 : vector<1x16xi1> to vector<1x16xi32>
    %61 = arith.sitofp %60 : vector<1x16xi32> to vector<1x16xf32>
    %62 = vector.broadcast %c1_i32 : i32 to vector<12x1xi32>
    %63 = arith.cmpi eq, %25, %62 : vector<12x1xi32>
    %64 = vector.shape_cast %63 : vector<12x1xi1> to vector<12x1xi1>
    %65 = vector.broadcast %64 : vector<12x1xi1> to vector<12x16xi1>
    %66 = vector.shape_cast %61 : vector<1x16xf32> to vector<1x16xf32>
    %67 = vector.broadcast %66 : vector<1x16xf32> to vector<12x16xf32>
    %68 = arith.select %65, %67, %45 : vector<12x16xi1>, vector<12x16xf32>
    %69 = vector.broadcast %57 : vector<1x1xi32> to vector<1x16xi32>
    %70 = arith.cmpi eq, %24, %69 : vector<1x16xi32>
    %cst_24 = arith.constant -1.000000e+00 : f32
    %71 = vector.broadcast %cst_24 : f32 to vector<1x16xf32>
    %72 = arith.select %70, %71, %49 : vector<1x16xi1>, vector<1x16xf32>
    %c2_i32 = arith.constant 2 : i32
    %cst_25 = arith.constant dense<0xFF800000> : vector<1xf32>
    %73 = vector.multi_reduction <maximumf>, %72, %cst_25 [1] : vector<1x16xf32> to vector<1xf32>
    %74 = vector.shape_cast %73 : vector<1xf32> to vector<1x1xf32>
    %75 = vector.broadcast %74 : vector<1x1xf32> to vector<1x16xf32>
    %76 = arith.cmpf oge, %72, %75 : vector<1x16xf32>
    %c16_i32_26 = arith.constant 16 : i32
    %77 = vector.broadcast %c16_i32_26 : i32 to vector<1x16xi32>
    %78 = arith.select %76, %24, %77 : vector<1x16xi1>, vector<1x16xi32>
    %cst_27 = arith.constant dense<2147483647> : vector<1xi32>
    %79 = vector.multi_reduction <minsi>, %78, %cst_27 [1] : vector<1x16xi32> to vector<1xi32>
    %80 = vector.shape_cast %79 : vector<1xi32> to vector<1x1xi32>
    %81 = vector.broadcast %80 : vector<1x1xi32> to vector<1x16xi32>
    %82 = arith.cmpi eq, %24, %81 : vector<1x16xi32>
    %83 = arith.extui %82 : vector<1x16xi1> to vector<1x16xi32>
    %84 = arith.sitofp %83 : vector<1x16xi32> to vector<1x16xf32>
    %85 = vector.broadcast %c2_i32 : i32 to vector<12x1xi32>
    %86 = arith.cmpi eq, %25, %85 : vector<12x1xi32>
    %87 = vector.shape_cast %86 : vector<12x1xi1> to vector<12x1xi1>
    %88 = vector.broadcast %87 : vector<12x1xi1> to vector<12x16xi1>
    %89 = vector.shape_cast %84 : vector<1x16xf32> to vector<1x16xf32>
    %90 = vector.broadcast %89 : vector<1x16xf32> to vector<12x16xf32>
    %91 = arith.select %88, %90, %68 : vector<12x16xi1>, vector<12x16xf32>
    %92 = vector.broadcast %80 : vector<1x1xi32> to vector<1x16xi32>
    %93 = arith.cmpi eq, %24, %92 : vector<1x16xi32>
    %cst_28 = arith.constant -1.000000e+00 : f32
    %94 = vector.broadcast %cst_28 : f32 to vector<1x16xf32>
    %95 = arith.select %93, %94, %72 : vector<1x16xi1>, vector<1x16xf32>
    %c3_i32 = arith.constant 3 : i32
    %cst_29 = arith.constant dense<0xFF800000> : vector<1xf32>
    %96 = vector.multi_reduction <maximumf>, %95, %cst_29 [1] : vector<1x16xf32> to vector<1xf32>
    %97 = vector.shape_cast %96 : vector<1xf32> to vector<1x1xf32>
    %98 = vector.broadcast %97 : vector<1x1xf32> to vector<1x16xf32>
    %99 = arith.cmpf oge, %95, %98 : vector<1x16xf32>
    %c16_i32_30 = arith.constant 16 : i32
    %100 = vector.broadcast %c16_i32_30 : i32 to vector<1x16xi32>
    %101 = arith.select %99, %24, %100 : vector<1x16xi1>, vector<1x16xi32>
    %cst_31 = arith.constant dense<2147483647> : vector<1xi32>
    %102 = vector.multi_reduction <minsi>, %101, %cst_31 [1] : vector<1x16xi32> to vector<1xi32>
    %103 = vector.shape_cast %102 : vector<1xi32> to vector<1x1xi32>
    %104 = vector.broadcast %103 : vector<1x1xi32> to vector<1x16xi32>
    %105 = arith.cmpi eq, %24, %104 : vector<1x16xi32>
    %106 = arith.extui %105 : vector<1x16xi1> to vector<1x16xi32>
    %107 = arith.sitofp %106 : vector<1x16xi32> to vector<1x16xf32>
    %108 = vector.broadcast %c3_i32 : i32 to vector<12x1xi32>
    %109 = arith.cmpi eq, %25, %108 : vector<12x1xi32>
    %110 = vector.shape_cast %109 : vector<12x1xi1> to vector<12x1xi1>
    %111 = vector.broadcast %110 : vector<12x1xi1> to vector<12x16xi1>
    %112 = vector.shape_cast %107 : vector<1x16xf32> to vector<1x16xf32>
    %113 = vector.broadcast %112 : vector<1x16xf32> to vector<12x16xf32>
    %114 = arith.select %111, %113, %91 : vector<12x16xi1>, vector<12x16xf32>
    %115 = vector.broadcast %103 : vector<1x1xi32> to vector<1x16xi32>
    %116 = arith.cmpi eq, %24, %115 : vector<1x16xi32>
    %cst_32 = arith.constant -1.000000e+00 : f32
    %117 = vector.broadcast %cst_32 : f32 to vector<1x16xf32>
    %118 = arith.select %116, %117, %95 : vector<1x16xi1>, vector<1x16xf32>
    %c4_i32 = arith.constant 4 : i32
    %cst_33 = arith.constant dense<0xFF800000> : vector<1xf32>
    %119 = vector.multi_reduction <maximumf>, %118, %cst_33 [1] : vector<1x16xf32> to vector<1xf32>
    %120 = vector.shape_cast %119 : vector<1xf32> to vector<1x1xf32>
    %121 = vector.broadcast %120 : vector<1x1xf32> to vector<1x16xf32>
    %122 = arith.cmpf oge, %118, %121 : vector<1x16xf32>
    %c16_i32_34 = arith.constant 16 : i32
    %123 = vector.broadcast %c16_i32_34 : i32 to vector<1x16xi32>
    %124 = arith.select %122, %24, %123 : vector<1x16xi1>, vector<1x16xi32>
    %cst_35 = arith.constant dense<2147483647> : vector<1xi32>
    %125 = vector.multi_reduction <minsi>, %124, %cst_35 [1] : vector<1x16xi32> to vector<1xi32>
    %126 = vector.shape_cast %125 : vector<1xi32> to vector<1x1xi32>
    %127 = vector.broadcast %126 : vector<1x1xi32> to vector<1x16xi32>
    %128 = arith.cmpi eq, %24, %127 : vector<1x16xi32>
    %129 = arith.extui %128 : vector<1x16xi1> to vector<1x16xi32>
    %130 = arith.sitofp %129 : vector<1x16xi32> to vector<1x16xf32>
    %131 = vector.broadcast %c4_i32 : i32 to vector<12x1xi32>
    %132 = arith.cmpi eq, %25, %131 : vector<12x1xi32>
    %133 = vector.shape_cast %132 : vector<12x1xi1> to vector<12x1xi1>
    %134 = vector.broadcast %133 : vector<12x1xi1> to vector<12x16xi1>
    %135 = vector.shape_cast %130 : vector<1x16xf32> to vector<1x16xf32>
    %136 = vector.broadcast %135 : vector<1x16xf32> to vector<12x16xf32>
    %137 = arith.select %134, %136, %114 : vector<12x16xi1>, vector<12x16xf32>
    %138 = vector.broadcast %126 : vector<1x1xi32> to vector<1x16xi32>
    %139 = arith.cmpi eq, %24, %138 : vector<1x16xi32>
    %cst_36 = arith.constant -1.000000e+00 : f32
    %140 = vector.broadcast %cst_36 : f32 to vector<1x16xf32>
    %141 = arith.select %139, %140, %118 : vector<1x16xi1>, vector<1x16xf32>
    %c5_i32 = arith.constant 5 : i32
    %cst_37 = arith.constant dense<0xFF800000> : vector<1xf32>
    %142 = vector.multi_reduction <maximumf>, %141, %cst_37 [1] : vector<1x16xf32> to vector<1xf32>
    %143 = vector.shape_cast %142 : vector<1xf32> to vector<1x1xf32>
    %144 = vector.broadcast %143 : vector<1x1xf32> to vector<1x16xf32>
    %145 = arith.cmpf oge, %141, %144 : vector<1x16xf32>
    %c16_i32_38 = arith.constant 16 : i32
    %146 = vector.broadcast %c16_i32_38 : i32 to vector<1x16xi32>
    %147 = arith.select %145, %24, %146 : vector<1x16xi1>, vector<1x16xi32>
    %cst_39 = arith.constant dense<2147483647> : vector<1xi32>
    %148 = vector.multi_reduction <minsi>, %147, %cst_39 [1] : vector<1x16xi32> to vector<1xi32>
    %149 = vector.shape_cast %148 : vector<1xi32> to vector<1x1xi32>
    %150 = vector.broadcast %149 : vector<1x1xi32> to vector<1x16xi32>
    %151 = arith.cmpi eq, %24, %150 : vector<1x16xi32>
    %152 = arith.extui %151 : vector<1x16xi1> to vector<1x16xi32>
    %153 = arith.sitofp %152 : vector<1x16xi32> to vector<1x16xf32>
    %154 = vector.broadcast %c5_i32 : i32 to vector<12x1xi32>
    %155 = arith.cmpi eq, %25, %154 : vector<12x1xi32>
    %156 = vector.shape_cast %155 : vector<12x1xi1> to vector<12x1xi1>
    %157 = vector.broadcast %156 : vector<12x1xi1> to vector<12x16xi1>
    %158 = vector.shape_cast %153 : vector<1x16xf32> to vector<1x16xf32>
    %159 = vector.broadcast %158 : vector<1x16xf32> to vector<12x16xf32>
    %160 = arith.select %157, %159, %137 : vector<12x16xi1>, vector<12x16xf32>
    %161 = vector.broadcast %149 : vector<1x1xi32> to vector<1x16xi32>
    %162 = arith.cmpi eq, %24, %161 : vector<1x16xi32>
    %cst_40 = arith.constant -1.000000e+00 : f32
    %163 = vector.broadcast %cst_40 : f32 to vector<1x16xf32>
    %164 = arith.select %162, %163, %141 : vector<1x16xi1>, vector<1x16xf32>
    %c6_i32 = arith.constant 6 : i32
    %cst_41 = arith.constant dense<0xFF800000> : vector<1xf32>
    %165 = vector.multi_reduction <maximumf>, %164, %cst_41 [1] : vector<1x16xf32> to vector<1xf32>
    %166 = vector.shape_cast %165 : vector<1xf32> to vector<1x1xf32>
    %167 = vector.broadcast %166 : vector<1x1xf32> to vector<1x16xf32>
    %168 = arith.cmpf oge, %164, %167 : vector<1x16xf32>
    %c16_i32_42 = arith.constant 16 : i32
    %169 = vector.broadcast %c16_i32_42 : i32 to vector<1x16xi32>
    %170 = arith.select %168, %24, %169 : vector<1x16xi1>, vector<1x16xi32>
    %cst_43 = arith.constant dense<2147483647> : vector<1xi32>
    %171 = vector.multi_reduction <minsi>, %170, %cst_43 [1] : vector<1x16xi32> to vector<1xi32>
    %172 = vector.shape_cast %171 : vector<1xi32> to vector<1x1xi32>
    %173 = vector.broadcast %172 : vector<1x1xi32> to vector<1x16xi32>
    %174 = arith.cmpi eq, %24, %173 : vector<1x16xi32>
    %175 = arith.extui %174 : vector<1x16xi1> to vector<1x16xi32>
    %176 = arith.sitofp %175 : vector<1x16xi32> to vector<1x16xf32>
    %177 = vector.broadcast %c6_i32 : i32 to vector<12x1xi32>
    %178 = arith.cmpi eq, %25, %177 : vector<12x1xi32>
    %179 = vector.shape_cast %178 : vector<12x1xi1> to vector<12x1xi1>
    %180 = vector.broadcast %179 : vector<12x1xi1> to vector<12x16xi1>
    %181 = vector.shape_cast %176 : vector<1x16xf32> to vector<1x16xf32>
    %182 = vector.broadcast %181 : vector<1x16xf32> to vector<12x16xf32>
    %183 = arith.select %180, %182, %160 : vector<12x16xi1>, vector<12x16xf32>
    %184 = vector.broadcast %172 : vector<1x1xi32> to vector<1x16xi32>
    %185 = arith.cmpi eq, %24, %184 : vector<1x16xi32>
    %cst_44 = arith.constant -1.000000e+00 : f32
    %186 = vector.broadcast %cst_44 : f32 to vector<1x16xf32>
    %187 = arith.select %185, %186, %164 : vector<1x16xi1>, vector<1x16xf32>
    %c7_i32 = arith.constant 7 : i32
    %cst_45 = arith.constant dense<0xFF800000> : vector<1xf32>
    %188 = vector.multi_reduction <maximumf>, %187, %cst_45 [1] : vector<1x16xf32> to vector<1xf32>
    %189 = vector.shape_cast %188 : vector<1xf32> to vector<1x1xf32>
    %190 = vector.broadcast %189 : vector<1x1xf32> to vector<1x16xf32>
    %191 = arith.cmpf oge, %187, %190 : vector<1x16xf32>
    %c16_i32_46 = arith.constant 16 : i32
    %192 = vector.broadcast %c16_i32_46 : i32 to vector<1x16xi32>
    %193 = arith.select %191, %24, %192 : vector<1x16xi1>, vector<1x16xi32>
    %cst_47 = arith.constant dense<2147483647> : vector<1xi32>
    %194 = vector.multi_reduction <minsi>, %193, %cst_47 [1] : vector<1x16xi32> to vector<1xi32>
    %195 = vector.shape_cast %194 : vector<1xi32> to vector<1x1xi32>
    %196 = vector.broadcast %195 : vector<1x1xi32> to vector<1x16xi32>
    %197 = arith.cmpi eq, %24, %196 : vector<1x16xi32>
    %198 = arith.extui %197 : vector<1x16xi1> to vector<1x16xi32>
    %199 = arith.sitofp %198 : vector<1x16xi32> to vector<1x16xf32>
    %200 = vector.broadcast %c7_i32 : i32 to vector<12x1xi32>
    %201 = arith.cmpi eq, %25, %200 : vector<12x1xi32>
    %202 = vector.shape_cast %201 : vector<12x1xi1> to vector<12x1xi1>
    %203 = vector.broadcast %202 : vector<12x1xi1> to vector<12x16xi1>
    %204 = vector.shape_cast %199 : vector<1x16xf32> to vector<1x16xf32>
    %205 = vector.broadcast %204 : vector<1x16xf32> to vector<12x16xf32>
    %206 = arith.select %203, %205, %183 : vector<12x16xi1>, vector<12x16xf32>
    %207 = vector.broadcast %195 : vector<1x1xi32> to vector<1x16xi32>
    %208 = arith.cmpi eq, %24, %207 : vector<1x16xi32>
    %cst_48 = arith.constant -1.000000e+00 : f32
    %209 = vector.broadcast %cst_48 : f32 to vector<1x16xf32>
    %210 = arith.select %208, %209, %187 : vector<1x16xi1>, vector<1x16xf32>
    %c8_i32 = arith.constant 8 : i32
    %cst_49 = arith.constant dense<0xFF800000> : vector<1xf32>
    %211 = vector.multi_reduction <maximumf>, %210, %cst_49 [1] : vector<1x16xf32> to vector<1xf32>
    %212 = vector.shape_cast %211 : vector<1xf32> to vector<1x1xf32>
    %213 = vector.broadcast %212 : vector<1x1xf32> to vector<1x16xf32>
    %214 = arith.cmpf oge, %210, %213 : vector<1x16xf32>
    %c16_i32_50 = arith.constant 16 : i32
    %215 = vector.broadcast %c16_i32_50 : i32 to vector<1x16xi32>
    %216 = arith.select %214, %24, %215 : vector<1x16xi1>, vector<1x16xi32>
    %cst_51 = arith.constant dense<2147483647> : vector<1xi32>
    %217 = vector.multi_reduction <minsi>, %216, %cst_51 [1] : vector<1x16xi32> to vector<1xi32>
    %218 = vector.shape_cast %217 : vector<1xi32> to vector<1x1xi32>
    %219 = vector.broadcast %218 : vector<1x1xi32> to vector<1x16xi32>
    %220 = arith.cmpi eq, %24, %219 : vector<1x16xi32>
    %221 = arith.extui %220 : vector<1x16xi1> to vector<1x16xi32>
    %222 = arith.sitofp %221 : vector<1x16xi32> to vector<1x16xf32>
    %223 = vector.broadcast %c8_i32 : i32 to vector<12x1xi32>
    %224 = arith.cmpi eq, %25, %223 : vector<12x1xi32>
    %225 = vector.shape_cast %224 : vector<12x1xi1> to vector<12x1xi1>
    %226 = vector.broadcast %225 : vector<12x1xi1> to vector<12x16xi1>
    %227 = vector.shape_cast %222 : vector<1x16xf32> to vector<1x16xf32>
    %228 = vector.broadcast %227 : vector<1x16xf32> to vector<12x16xf32>
    %229 = arith.select %226, %228, %206 : vector<12x16xi1>, vector<12x16xf32>
    %230 = vector.broadcast %218 : vector<1x1xi32> to vector<1x16xi32>
    %231 = arith.cmpi eq, %24, %230 : vector<1x16xi32>
    %cst_52 = arith.constant -1.000000e+00 : f32
    %232 = vector.broadcast %cst_52 : f32 to vector<1x16xf32>
    %233 = arith.select %231, %232, %210 : vector<1x16xi1>, vector<1x16xf32>
    %c9_i32 = arith.constant 9 : i32
    %cst_53 = arith.constant dense<0xFF800000> : vector<1xf32>
    %234 = vector.multi_reduction <maximumf>, %233, %cst_53 [1] : vector<1x16xf32> to vector<1xf32>
    %235 = vector.shape_cast %234 : vector<1xf32> to vector<1x1xf32>
    %236 = vector.broadcast %235 : vector<1x1xf32> to vector<1x16xf32>
    %237 = arith.cmpf oge, %233, %236 : vector<1x16xf32>
    %c16_i32_54 = arith.constant 16 : i32
    %238 = vector.broadcast %c16_i32_54 : i32 to vector<1x16xi32>
    %239 = arith.select %237, %24, %238 : vector<1x16xi1>, vector<1x16xi32>
    %cst_55 = arith.constant dense<2147483647> : vector<1xi32>
    %240 = vector.multi_reduction <minsi>, %239, %cst_55 [1] : vector<1x16xi32> to vector<1xi32>
    %241 = vector.shape_cast %240 : vector<1xi32> to vector<1x1xi32>
    %242 = vector.broadcast %241 : vector<1x1xi32> to vector<1x16xi32>
    %243 = arith.cmpi eq, %24, %242 : vector<1x16xi32>
    %244 = arith.extui %243 : vector<1x16xi1> to vector<1x16xi32>
    %245 = arith.sitofp %244 : vector<1x16xi32> to vector<1x16xf32>
    %246 = vector.broadcast %c9_i32 : i32 to vector<12x1xi32>
    %247 = arith.cmpi eq, %25, %246 : vector<12x1xi32>
    %248 = vector.shape_cast %247 : vector<12x1xi1> to vector<12x1xi1>
    %249 = vector.broadcast %248 : vector<12x1xi1> to vector<12x16xi1>
    %250 = vector.shape_cast %245 : vector<1x16xf32> to vector<1x16xf32>
    %251 = vector.broadcast %250 : vector<1x16xf32> to vector<12x16xf32>
    %252 = arith.select %249, %251, %229 : vector<12x16xi1>, vector<12x16xf32>
    %253 = vector.broadcast %241 : vector<1x1xi32> to vector<1x16xi32>
    %254 = arith.cmpi eq, %24, %253 : vector<1x16xi32>
    %cst_56 = arith.constant -1.000000e+00 : f32
    %255 = vector.broadcast %cst_56 : f32 to vector<1x16xf32>
    %256 = arith.select %254, %255, %233 : vector<1x16xi1>, vector<1x16xf32>
    %c10_i32 = arith.constant 10 : i32
    %cst_57 = arith.constant dense<0xFF800000> : vector<1xf32>
    %257 = vector.multi_reduction <maximumf>, %256, %cst_57 [1] : vector<1x16xf32> to vector<1xf32>
    %258 = vector.shape_cast %257 : vector<1xf32> to vector<1x1xf32>
    %259 = vector.broadcast %258 : vector<1x1xf32> to vector<1x16xf32>
    %260 = arith.cmpf oge, %256, %259 : vector<1x16xf32>
    %c16_i32_58 = arith.constant 16 : i32
    %261 = vector.broadcast %c16_i32_58 : i32 to vector<1x16xi32>
    %262 = arith.select %260, %24, %261 : vector<1x16xi1>, vector<1x16xi32>
    %cst_59 = arith.constant dense<2147483647> : vector<1xi32>
    %263 = vector.multi_reduction <minsi>, %262, %cst_59 [1] : vector<1x16xi32> to vector<1xi32>
    %264 = vector.shape_cast %263 : vector<1xi32> to vector<1x1xi32>
    %265 = vector.broadcast %264 : vector<1x1xi32> to vector<1x16xi32>
    %266 = arith.cmpi eq, %24, %265 : vector<1x16xi32>
    %267 = arith.extui %266 : vector<1x16xi1> to vector<1x16xi32>
    %268 = arith.sitofp %267 : vector<1x16xi32> to vector<1x16xf32>
    %269 = vector.broadcast %c10_i32 : i32 to vector<12x1xi32>
    %270 = arith.cmpi eq, %25, %269 : vector<12x1xi32>
    %271 = vector.shape_cast %270 : vector<12x1xi1> to vector<12x1xi1>
    %272 = vector.broadcast %271 : vector<12x1xi1> to vector<12x16xi1>
    %273 = vector.shape_cast %268 : vector<1x16xf32> to vector<1x16xf32>
    %274 = vector.broadcast %273 : vector<1x16xf32> to vector<12x16xf32>
    %275 = arith.select %272, %274, %252 : vector<12x16xi1>, vector<12x16xf32>
    %276 = vector.broadcast %264 : vector<1x1xi32> to vector<1x16xi32>
    %277 = arith.cmpi eq, %24, %276 : vector<1x16xi32>
    %cst_60 = arith.constant -1.000000e+00 : f32
    %278 = vector.broadcast %cst_60 : f32 to vector<1x16xf32>
    %279 = arith.select %277, %278, %256 : vector<1x16xi1>, vector<1x16xf32>
    %c11_i32 = arith.constant 11 : i32
    %cst_61 = arith.constant dense<0xFF800000> : vector<1xf32>
    %280 = vector.multi_reduction <maximumf>, %279, %cst_61 [1] : vector<1x16xf32> to vector<1xf32>
    %281 = vector.shape_cast %280 : vector<1xf32> to vector<1x1xf32>
    %282 = vector.broadcast %281 : vector<1x1xf32> to vector<1x16xf32>
    %283 = arith.cmpf oge, %279, %282 : vector<1x16xf32>
    %c16_i32_62 = arith.constant 16 : i32
    %284 = vector.broadcast %c16_i32_62 : i32 to vector<1x16xi32>
    %285 = arith.select %283, %24, %284 : vector<1x16xi1>, vector<1x16xi32>
    %cst_63 = arith.constant dense<2147483647> : vector<1xi32>
    %286 = vector.multi_reduction <minsi>, %285, %cst_63 [1] : vector<1x16xi32> to vector<1xi32>
    %287 = vector.shape_cast %286 : vector<1xi32> to vector<1x1xi32>
    %288 = vector.broadcast %287 : vector<1x1xi32> to vector<1x16xi32>
    %289 = arith.cmpi eq, %24, %288 : vector<1x16xi32>
    %290 = arith.extui %289 : vector<1x16xi1> to vector<1x16xi32>
    %291 = arith.sitofp %290 : vector<1x16xi32> to vector<1x16xf32>
    %292 = vector.broadcast %c11_i32 : i32 to vector<12x1xi32>
    %293 = arith.cmpi eq, %25, %292 : vector<12x1xi32>
    %294 = vector.shape_cast %293 : vector<12x1xi1> to vector<12x1xi1>
    %295 = vector.broadcast %294 : vector<12x1xi1> to vector<12x16xi1>
    %296 = vector.shape_cast %291 : vector<1x16xf32> to vector<1x16xf32>
    %297 = vector.broadcast %296 : vector<1x16xf32> to vector<12x16xf32>
    %298 = arith.select %295, %297, %275 : vector<12x16xi1>, vector<12x16xf32>
    %299 = vector.broadcast %287 : vector<1x1xi32> to vector<1x16xi32>
    %300 = arith.cmpi eq, %24, %299 : vector<1x16xi32>
    %cst_64 = arith.constant -1.000000e+00 : f32
    %301 = vector.broadcast %cst_64 : f32 to vector<1x16xf32>
    %302 = arith.select %300, %301, %279 : vector<1x16xi1>, vector<1x16xf32>
    %c12_i32 = arith.constant 12 : i32
    %cst_65 = arith.constant dense<0.000000e+00> : vector<12x32xf32>
    %303 = tpu.matmul %298, %13, %cst_65 {dimension_numbers = #tpu.dot_dimension_numbers<[1], [0], [0], [1], [0, 0, 1, 1], [], []>} : vector<12x16xf32>, vector<16x32xf32>, vector<12x32xf32> -> vector<12x32xf32>
    %cst_66 = arith.constant dense<0.000000e+00> : vector<12x1xf32>
    %304 = tpu.matmul %298, %23, %cst_66 {dimension_numbers = #tpu.dot_dimension_numbers<[1], [1], [0], [0], [0, 0, 1, 0], [], []>} : vector<12x16xf32>, vector<1x16xf32>, vector<12x1xf32> -> vector<12x1xf32>
    %305 = vector.broadcast %304 : vector<12x1xf32> to vector<12x32xf32>
    %306 = arith.mulf %303, %305 : vector<12x32xf32>
    %307 = arith.truncf %306 : vector<12x32xf32> to vector<12x32xbf16>
    %c0_67 = arith.constant 0 : index
    %c0_68 = arith.constant 0 : index
    %c0_69 = arith.constant 0 : index
    %308 = vector.load %arg8[%c0_67, %c0_68, %c0_69] : memref<1x12x32xbf16, #tpu.memory_space<vmem>>, vector<1x12x32xbf16>
    %309 = vector.shape_cast %308 : vector<1x12x32xbf16> to vector<12x32xbf16>
    %310 = vector.shape_cast %307 : vector<12x32xbf16> to vector<1x12x32xbf16>
    tpu.vector_store %arg8[%c0_67, %c0_68, %c0_69], %310 {strides = array<i32>} : memref<1x12x32xbf16, #tpu.memory_space<vmem>>, vector<1x12x32xbf16>,
    %cst_70 = arith.constant 0.000000e+00 : f32
    %311 = vector.broadcast %cst_70 : f32 to vector<16x16xf32>
    %312 = arith.cmpf one, %1, %311 : vector<16x16xf32>
    %313 = arith.extui %312 : vector<16x16xi1> to vector<16x16xi32>
    %314 = arith.sitofp %313 : vector<16x16xi32> to vector<16x16xf32>
    %315 = arith.truncf %314 : vector<16x16xf32> to vector<16x16xbf16>
    %cst_71 = arith.constant dense<0.000000e+00> : vector<16x16xf32>
    %316 = tpu.matmul %315, %315, %cst_71 {dimension_numbers = #tpu.dot_dimension_numbers<[1], [0], [0], [1], [0, 0, 1, 1], [], []>} : vector<16x16xbf16>, vector<16x16xbf16>, vector<16x16xf32> -> vector<16x16xf32>
    %cst_72 = arith.constant 0.000000e+00 : f32
    %317 = vector.broadcast %cst_72 : f32 to vector<16x16xf32>
    %318 = arith.cmpf ogt, %316, %317 : vector<16x16xf32>
    %319 = arith.extui %318 : vector<16x16xi1> to vector<16x16xi32>
    %320 = arith.sitofp %319 : vector<16x16xi32> to vector<16x16xf32>
    %321 = arith.truncf %320 : vector<16x16xf32> to vector<16x16xbf16>
    %322 = arith.truncf %298 : vector<12x16xf32> to vector<12x16xbf16>
    %cst_73 = arith.constant dense<0.000000e+00> : vector<12x16xf32>
    %323 = tpu.matmul %322, %321, %cst_73 {dimension_numbers = #tpu.dot_dimension_numbers<[1], [0], [0], [1], [0, 0, 1, 1], [], []>} : vector<12x16xbf16>, vector<16x16xbf16>, vector<12x16xf32> -> vector<12x16xf32>
    %324 = arith.truncf %323 : vector<12x16xf32> to vector<12x16xbf16>
    %cst_74 = arith.constant dense<0.000000e+00> : vector<12x12xf32>
    %325 = tpu.matmul %324, %322, %cst_74 {dimension_numbers = #tpu.dot_dimension_numbers<[1], [1], [0], [0], [0, 0, 1, 0], [], []>} : vector<12x16xbf16>, vector<12x16xbf16>, vector<12x12xf32> -> vector<12x12xf32>
    %cst_75 = arith.constant 1.000000e+00 : bf16
    %326 = vector.broadcast %cst_75 : bf16 to vector<1x12xbf16>
    %327 = arith.truncf %325 : vector<12x12xf32> to vector<12x12xbf16>
    %cst_76 = arith.constant dense<0.000000e+00> : vector<1x12xf32>
    %328 = tpu.matmul %326, %327, %cst_76 {dimension_numbers = #tpu.dot_dimension_numbers<[1], [1], [0], [0], [0, 0, 1, 0], [], []>} : vector<1x12xbf16>, vector<12x12xbf16>, vector<1x12xf32> -> vector<1x12xf32>
    %329 = tpu.reciprocal %328 {approx = true} : vector<1x12xf32> -> vector<1x12xf32>
    %330 = vector.broadcast %329 : vector<1x12xf32> to vector<12x12xf32>
    %331 = arith.mulf %325, %330 : vector<12x12xf32>
    %c0_77 = arith.constant 0 : index
    %c0_78 = arith.constant 0 : index
    %c0_79 = arith.constant 0 : index
    %332 = vector.load %arg7[%c0_77, %c0_78, %c0_79] : memref<1x12x12xf32, #tpu.memory_space<vmem>>, vector<1x12x12xf32>
    %333 = vector.shape_cast %332 : vector<1x12x12xf32> to vector<12x12xf32>
    %334 = vector.shape_cast %331 : vector<12x12xf32> to vector<1x12x12xf32>
    tpu.vector_store %arg7[%c0_77, %c0_78, %c0_79], %334 {strides = array<i32>} : memref<1x12x12xf32, #tpu.memory_space<vmem>>, vector<1x12x12xf32>,
    return
  }
  func.func @transform_0(%arg0: i32) -> (i32, i32, i32) {
    %c0_i32 = arith.constant 0 : i32
    %c0_i32_0 = arith.constant 0 : i32
    %c0_i32_1 = arith.constant 0 : i32
    return %arg0, %c0_i32, %c0_i32_0 : i32, i32, i32
  }
  func.func @transform_1(%arg0: i32) -> (i32, i32, i32) {
    %c0_i32 = arith.constant 0 : i32
    %c0_i32_0 = arith.constant 0 : i32
    %c0_i32_1 = arith.constant 0 : i32
    return %arg0, %c0_i32, %c0_i32_0 : i32, i32, i32
  }
  func.func @transform_2(%arg0: i32) -> (i32, i32) {
    %c0_i32 = arith.constant 0 : i32
    %c0_i32_0 = arith.constant 0 : i32
    %c0_i32_1 = arith.constant 0 : i32
    return %c0_i32, %c0_i32_0 : i32, i32
  }
  func.func @transform_3(%arg0: i32) -> (i32, i32) {
    %c0_i32 = arith.constant 0 : i32
    %c0_i32_0 = arith.constant 0 : i32
    %c0_i32_1 = arith.constant 0 : i32
    return %c0_i32, %c0_i32_0 : i32, i32
  }
  func.func @transform_4(%arg0: i32) -> (i32, i32) {
    %c0_i32 = arith.constant 0 : i32
    %c0_i32_0 = arith.constant 0 : i32
    %c0_i32_1 = arith.constant 0 : i32
    return %c0_i32, %c0_i32_0 : i32, i32
  }
  func.func @transform_5(%arg0: i32) -> (i32, i32) {
    %c0_i32 = arith.constant 0 : i32
    %c0_i32_0 = arith.constant 0 : i32
    %c0_i32_1 = arith.constant 0 : i32
    return %c0_i32, %c0_i32_0 : i32, i32
  }
  func.func @transform_6(%arg0: i32) -> (i32, i32, i32) {
    %c0_i32 = arith.constant 0 : i32
    %c0_i32_0 = arith.constant 0 : i32
    %c0_i32_1 = arith.constant 0 : i32
    return %arg0, %c0_i32, %c0_i32_0 : i32, i32, i32
  }
  func.func @transform_7(%arg0: i32) -> (i32, i32, i32) {
    %c0_i32 = arith.constant 0 : i32
    %c0_i32_0 = arith.constant 0 : i32
    %c0_i32_1 = arith.constant 0 : i32
    return %arg0, %c0_i32, %c0_i32_0 : i32, i32, i32
  }
}

</mosaic_0001>

<llo_original>
// kernel: _lambda_.7
$region0: #{_lambda_.7}
  #allocation0 [shape = 'u32[]', space=smem, size = 0x4, offset = 0x4, fixed_abs, tag = 'smem constant byte address 0x4 - core index']
  #allocation1 [shape = 'u32[144,128]{1,0:T(1,128)}', space=vmem, size = 0x12000, scoped, tag = 'internal scratch']
  %s0 = inlined_call_operand.vmem [shape: f32[2,7,7], index: 0, kind: input, shape index: {}]
  %s1 = inlined_call_operand.vmem [shape: bf16[2,7,32], index: 1, kind: input, shape index: {}]
  %s2 = inlined_call_operand.vmem [shape: bf16[32,32], index: 2, kind: input, shape index: {}]
  %s3 = inlined_call_operand.vmem [shape: f32[1,32], index: 3, kind: input, shape index: {}]
  %s4 = inlined_call_operand.vmem [shape: f32[1,32], index: 4, kind: input, shape index: {}]
  %s5 = inlined_call_operand.vmem [shape: f32[1,32], index: 5, kind: input, shape index: {}]
  %s6 = inlined_call_operand.vmem [shape: f32[2,7,32], index: 6, kind: output, shape index: {}]
  %s7 = sld [smem:[#allocation0]]
  $region57: #{_lambda_.7} parent=0
    _
  %s9 = ssub.s32 1, %s7
  %s10 = scalar_select 0, %s9, %s7
  loop: start=0, step=1, limit=4
  $region2: #{_lambda_.7} parent=0 // loop_pre_header
    _
  $region3: #{_lambda_.7} parent=0 // loop_header
    %s12 = sphi 0, %s16
    %p13 = scmp.ge.s32.totalorder %s12, 4
    %s22 = sphi 0, %s24
    %s25 = sphi 0, %s22
    %s26 = sphi 0, %s25
    %s42 = sphi 0, %s26
    %s48 = sphi 0, %s50
    %s51 = sphi 0, %s48
    %s52 = sphi 0, %s51
    %s68 = sphi 0, %s52
    %s72 = sphi 0, %s72
    %s74 = sphi 0, %s72
    %s75 = sphi 0, %s74
    %s89 = sphi 0, %s75
    %s93 = sphi 0, %s93
    %s95 = sphi 0, %s93
    %s96 = sphi 0, %s95
    %s110 = sphi 0, %s96
    %s114 = sphi 0, %s114
    %s116 = sphi 0, %s114
    %s117 = sphi 0, %s116
    %s131 = sphi 0, %s117
    %s135 = sphi 0, %s135
    %s137 = sphi 0, %s135
    %s138 = sphi 0, %s137
    %s152 = sphi 0, %s138
    %s158 = sphi 0, %s160
    %s161 = sphi 0, %s158
    %s162 = sphi 0, %s161
    %s178 = sphi 0, %s162
  $region4: #{_lambda_.7} parent=0 // loop_header_branch
    %15 = sbr.rel (%p13) target = $region8
  $region5: #{_lambda_.7} parent=0 // loop_body
    %s17 = ssub.s32 %s12, 1
    %s18 = ssub.s32 %s12, 2
    %s19 = sadd.s32 %s12, 1
    %s20 = ssub.s32 %s12, %s19
    %p21 = scmp.eq.s32.totalorder %s20, 0
    %s23 = sadd.s32 %s22, 1
    %s24 = scalar_select %p21, %s22, %s23
    %p27 = pneg %p21
    %p28 = scmp.eq.s32.totalorder %s12, 1
    %p29 = por %p27, %p28
    %p30 = scmp.ne.s32.totalorder %s22, %s25
    %p31 = scmp.eq.s32.totalorder %s12, 0
    %p32 = por %p30, %p31
    %p33 = scmp.ne.s32.totalorder %s22, %s25
    %p34 = scmp.eq.s32.totalorder %s17, 1
    %p35 = por %p33, %p34
    %p36 = scmp.ne.s32.totalorder %s25, %s26
    %p37 = scmp.eq.s32.totalorder %s17, 0
    %p38 = por %p36, %p37
    %p39 = scmp.ne.s32.totalorder %s25, %s26
    %p40 = scmp.eq.s32.totalorder %s18, 1
    %p41 = por %p39, %p40
    %p43 = scmp.ne.s32.totalorder %s26, %s42
    %p44 = scmp.eq.s32.totalorder %s18, 0
    %p45 = por %p43, %p44
    %s46 = ssub.s32 %s12, %s19
    %p47 = scmp.eq.s32.totalorder %s46, 0
    %s49 = sadd.s32 %s48, 1
    %s50 = scalar_select %p47, %s48, %s49
    %p53 = pneg %p47
    %p54 = scmp.eq.s32.totalorder %s12, 1
    %p55 = por %p53, %p54
    %p56 = scmp.ne.s32.totalorder %s48, %s51
    %p57 = scmp.eq.s32.totalorder %s12, 0
    %p58 = por %p56, %p57
    %p59 = scmp.ne.s32.totalorder %s48, %s51
    %p60 = scmp.eq.s32.totalorder %s17, 1
    %p61 = por %p59, %p60
    %p62 = scmp.ne.s32.totalorder %s51, %s52
    %p63 = scmp.eq.s32.totalorder %s17, 0
    %p64 = por %p62, %p63
    %p65 = scmp.ne.s32.totalorder %s51, %s52
    %p66 = scmp.eq.s32.totalorder %s18, 1
    %p67 = por %p65, %p66
    %p69 = scmp.ne.s32.totalorder %s52, %s68
    %p70 = scmp.eq.s32.totalorder %s18, 0
    %p71 = por %p69, %p70
    %s73 = sadd.s32 %s72, 1
    %p76 = scmp.eq.s32.totalorder %s12, 1
    %p77 = scmp.ne.s32.totalorder %s72, %s74
    %p78 = scmp.eq.s32.totalorder %s12, 0
    %p79 = por %p77, %p78
    %p80 = scmp.ne.s32.totalorder %s72, %s74
    %p81 = scmp.eq.s32.totalorder %s17, 1
    %p82 = por %p80, %p81
    %p83 = scmp.ne.s32.totalorder %s74, %s75
    %p84 = scmp.eq.s32.totalorder %s17, 0
    %p85 = por %p83, %p84
    %p86 = scmp.ne.s32.totalorder %s74, %s75
    %p87 = scmp.eq.s32.totalorder %s18, 1
    %p88 = por %p86, %p87
    %p90 = scmp.ne.s32.totalorder %s75, %s89
    %p91 = scmp.eq.s32.totalorder %s18, 0
    %p92 = por %p90, %p91
    %s94 = sadd.s32 %s93, 1
    %p97 = scmp.eq.s32.totalorder %s12, 1
    %p98 = scmp.ne.s32.totalorder %s93, %s95
    %p99 = scmp.eq.s32.totalorder %s12, 0
    %p100 = por %p98, %p99
    %p101 = scmp.ne.s32.totalorder %s93, %s95
    %p102 = scmp.eq.s32.totalorder %s17, 1
    %p103 = por %p101, %p102
    %p104 = scmp.ne.s32.totalorder %s95, %s96
    %p105 = scmp.eq.s32.totalorder %s17, 0
    %p106 = por %p104, %p105
    %p107 = scmp.ne.s32.totalorder %s95, %s96
    %p108 = scmp.eq.s32.totalorder %s18, 1
    %p109 = por %p107, %p108
    %p111 = scmp.ne.s32.totalorder %s96, %s110
    %p112 = scmp.eq.s32.totalorder %s18, 0
    %p113 = por %p111, %p112
    %s115 = sadd.s32 %s114, 1
    %p118 = scmp.eq.s32.totalorder %s12, 1
    %p119 = scmp.ne.s32.totalorder %s114, %s116
    %p120 = scmp.eq.s32.totalorder %s12, 0
    %p121 = por %p119, %p120
    %p122 = scmp.ne.s32.totalorder %s114, %s116
    %p123 = scmp.eq.s32.totalorder %s17, 1
    %p124 = por %p122, %p123
    %p125 = scmp.ne.s32.totalorder %s116, %s117
    %p126 = scmp.eq.s32.totalorder %s17, 0
    %p127 = por %p125, %p126
    %p128 = scmp.ne.s32.totalorder %s116, %s117
    %p129 = scmp.eq.s32.totalorder %s18, 1
    %p130 = por %p128, %p129
    %p132 = scmp.ne.s32.totalorder %s117, %s131
    %p133 = scmp.eq.s32.totalorder %s18, 0
    %p134 = por %p132, %p133
    %s136 = sadd.s32 %s135, 1
    %p139 = scmp.eq.s32.totalorder %s12, 1
    %p140 = scmp.ne.s32.totalorder %s135, %s137
    %p141 = scmp.eq.s32.totalorder %s12, 0
    %p142 = por %p140, %p141
    %p143 = scmp.ne.s32.totalorder %s135, %s137
    %p144 = scmp.eq.s32.totalorder %s17, 1
    %p145 = por %p143, %p144
    %p146 = scmp.ne.s32.totalorder %s137, %s138
    %p147 = scmp.eq.s32.totalorder %s17, 0
    %p148 = por %p146, %p147
    %p149 = scmp.ne.s32.totalorder %s137, %s138
    %p150 = scmp.eq.s32.totalorder %s18, 1
    %p151 = por %p149, %p150
    %p153 = scmp.ne.s32.totalorder %s138, %s152
    %p154 = scmp.eq.s32.totalorder %s18, 0
    %p155 = por %p153, %p154
    %s156 = ssub.s32 %s12, %s19
    %p157 = scmp.eq.s32.totalorder %s156, 0
    %s159 = sadd.s32 %s158, 1
    %s160 = scalar_select %p157, %s158, %s159
    %p163 = pneg %p157
    %p164 = scmp.eq.s32.totalorder %s12, 1
    %p165 = por %p163, %p164
    %p166 = scmp.ne.s32.totalorder %s158, %s161
    %p167 = scmp.eq.s32.totalorder %s12, 0
    %p168 = por %p166, %p167
    %p169 = scmp.ne.s32.totalorder %s158, %s161
    %p170 = scmp.eq.s32.totalorder %s17, 1
    %p171 = por %p169, %p170
    %p172 = scmp.ne.s32.totalorder %s161, %s162
    %p173 = scmp.eq.s32.totalorder %s17, 0
    %p174 = por %p172, %p173
    %p175 = scmp.ne.s32.totalorder %s161, %s162
    %p176 = scmp.eq.s32.totalorder %s18, 1
    %p177 = por %p175, %p176
    %p179 = scmp.ne.s32.totalorder %s162, %s178
    %p180 = scmp.eq.s32.totalorder %s18, 0
    %p181 = por %p179, %p180
    %p182 = scmp.le.s32.totalorder 1, %s12
    %p183 = scmp.lt.s32.totalorder %s12, 3
    %p184 = pnand %p182, %p183
    %p185 = pneg %p184
    // Predicated region
    $region9: #{_lambda_.7} parent=5 // pred_check
      _
    $region10: #{_lambda_.7} parent=5 // pred_check_branch
      %187 = sbr.rel (%p184) target = $region12
    $region11: #{_lambda_.7} parent=5 // pred_region
      %s188 = ssub.s32 %s12, 1
      // Predicated region
      $region13: #{_lambda_.7} parent=11 // pred_check
        %p189 = pneg %p85
      $region14: #{_lambda_.7} parent=11 // pred_check_branch
        %191 = sbr.rel (%p189) target = $region16
      $region15: #{_lambda_.7} parent=11 // pred_region
        _
      $region16: #{_lambda_.7} parent=11 // pred_fallthru
        _
      // Predicated region
      $region17: #{_lambda_.7} parent=11 // pred_check
        %p192 = pneg %p106
      $region18: #{_lambda_.7} parent=11 // pred_check_branch
        %194 = sbr.rel (%p192) target = $region20
      $region19: #{_lambda_.7} parent=11 // pred_region
        _
      $region20: #{_lambda_.7} parent=11 // pred_fallthru
        _
      // Predicated region
      $region21: #{_lambda_.7} parent=11 // pred_check
        %p195 = pneg %p127
      $region22: #{_lambda_.7} parent=11 // pred_check_branch
        %197 = sbr.rel (%p195) target = $region24
      $region23: #{_lambda_.7} parent=11 // pred_region
        _
      $region24: #{_lambda_.7} parent=11 // pred_fallthru
        _
      // Predicated region
      $region25: #{_lambda_.7} parent=11 // pred_check
        %p198 = pneg %p148
      $region26: #{_lambda_.7} parent=11 // pred_check_branch
        %200 = sbr.rel (%p198) target = $region28
      $region27: #{_lambda_.7} parent=11 // pred_region
        _
      $region28: #{_lambda_.7} parent=11 // pred_fallthru
        _
    $region12: #{_lambda_.7} parent=5 // pred_fallthru
      _
    %p201 = scmp.lt.s32.totalorder %s12, 2
    // Predicated region
    $region29: #{_lambda_.7} parent=5 // pred_check
      %p202 = pneg %p201
    $region30: #{_lambda_.7} parent=5 // pred_check_branch
      %204 = sbr.rel (%p202) target = $region32
    $region31: #{_lambda_.7} parent=5 // pred_region
      // Predicated region
      $region33: #{_lambda_.7} parent=31 // pred_check
        %p205 = pneg %p32
      $region34: #{_lambda_.7} parent=31 // pred_check_branch
        %207 = sbr.rel (%p205) target = $region36
      $region35: #{_lambda_.7} parent=31 // pred_region
        %p208 = scmp.lt.s32.totalorder %s12, 1
        %s209 = scalar_select %p208, %s12, 1
        %s210 = smul.addr %s209, 8
        %s211 = scalar_lea.vmem %s0, %s210
      $region36: #{_lambda_.7} parent=31 // pred_fallthru
        _
      // Predicated region
      $region37: #{_lambda_.7} parent=31 // pred_check
        %p212 = pneg %p58
      $region38: #{_lambda_.7} parent=31 // pred_check_branch
        %214 = sbr.rel (%p212) target = $region40
      $region39: #{_lambda_.7} parent=31 // pred_region
        %p215 = scmp.lt.s32.totalorder %s12, 1
        %s216 = scalar_select %p215, %s12, 1
        %s217 = smul.addr %s216, 4
        %s218 = scalar_lea.vmem %s1, %s217
      $region40: #{_lambda_.7} parent=31 // pred_fallthru
        _
    $region32: #{_lambda_.7} parent=5 // pred_fallthru
      _
    %p219 = scmp.le.s32.totalorder 1, %s12
    %p220 = scmp.lt.s32.totalorder %s12, 3
    %p221 = pnand %p219, %p220
    %p222 = pneg %p221
    // Predicated region
    $region41: #{_lambda_.7} parent=5 // pred_check
      _
    $region42: #{_lambda_.7} parent=5 // pred_check_branch
      %224 = sbr.rel (%p221) target = $region44
    $region43: #{_lambda_.7} parent=5 // pred_region
      %s225 = ssub.s32 %s12, 1
      %p226 = scmp.lt.s32.totalorder %s17, 1
      %s227 = scalar_select %p226, %s17, 1
      %s228 = smul.addr %s227, 8
      %s229 = scalar_lea.vmem %s0, %s228
      %p230 = pneg %p38
      %p231 = pneg %p35
      %p232 = scmp.lt.s32.totalorder %s17, 1
      %s233 = scalar_select %p232, %s17, 1
      %s234 = smul.addr %s233, 4
      %s235 = scalar_lea.vmem %s1, %s234
      %p236 = pneg %p64
      %p237 = pneg %p61
      %p238 = pneg %p85
      %p239 = pneg %p82
      %p240 = pneg %p106
      %p241 = pneg %p103
      %p242 = pneg %p127
      %p243 = pneg %p124
      %p244 = pneg %p148
      %p245 = pneg %p145
      %p246 = pneg %p174
      %p247 = pneg %p171
      %p248 = scmp.lt.s32.totalorder %s17, 1
      %s249 = scalar_select %p248, %s17, 1
      %s250 = smul.addr %s249, 8
      %s251 = scalar_lea.vmem %s6, %s250
      %p252 = scmp.lt.s32.totalorder %s17, 1
      %s253 = scalar_select %p252, %s17, 1
      %s254 = smul.addr %s253, 8
      %s255 = scalar_lea.vmem %s0, %s254
      %p256 = scmp.lt.s32.totalorder %s17, 1
      %s257 = scalar_select %p256, %s17, 1
      %s258 = smul.addr %s257, 4
      %s259 = scalar_lea.vmem %s1, %s258
      %p260 = scmp.lt.s32.totalorder %s17, 1
      %s261 = scalar_select %p260, %s17, 1
      %s262 = smul.addr %s261, 8
      %s263 = scalar_lea.vmem %s6, %s262
      %v265 = vld [vmem:[%s255] sm:$0x7f]
      %vm266 = vcmask 56320
      %v268 = vsel %vm266, 1.0, 0
      %v271 = vsel %vm266, %v265, 0
      %273 = vmatprep.subr.mxu0 0.0
      %274 = vmatpush1.xpose.msra.mxu0 0.0
      %275 = vmatprep.subr.mxu0 0.0
      %276 = vmatpush1.xpose.msra.mxu0 0.0
      %277 = vmatprep.subr.mxu0 0.0
      %278 = vmatpush1.xpose.msra.mxu0 0.0
      %279 = vmatprep.subr.mxu0 0.0
      %280 = vmatpush1.xpose.msra.mxu0 0.0
      %281 = vmatprep.subr.mxu0 0.0
      %282 = vmatpush1.xpose.msra.mxu0 0.0
      %283 = vmatprep.subr.mxu0 0.0
      %284 = vmatpush1.xpose.msra.mxu0 0.0
      %285 = vmatprep.subr.mxu0 0.0
      %286 = vmatpush1.xpose.msra.mxu0 0.0
      %287 = vmatprep.subr.mxu0 0.0
      %288 = vmatpush1.xpose.msra.mxu0 0.0
      %289 = vmatprep.subr.mxu0 0.0
      %290 = vmatpush1.xpose.msra.mxu0 0.0
      %291 = vmatprep.subr.mxu0 0.0
      %292 = vmatpush1.xpose.msra.mxu0 0.0
      %293 = vmatprep.subr.mxu0 0.0
      %294 = vmatpush1.xpose.msra.mxu0 0.0
      %295 = vmatprep.subr.mxu0 0.0
      %296 = vmatpush1.xpose.msra.mxu0 0.0
      %297 = vmatprep.subr.mxu0 0.0
      %298 = vmatpush1.xpose.msra.mxu0 0.0
      %299 = vmatprep.subr.mxu0 0.0
      %300 = vmatpush1.xpose.msra.mxu0 0.0
      %301 = vmatprep.subr.mxu0 0.0
      %302 = vmatpush1.xpose.msra.mxu0 0.0
      %303 = vmatprep.subr.mxu0 0.0
      %304 = vmatpush1.xpose.msra.mxu0 %v271
      %305 = vmatprep.subr.mxu0 0.0
      %306 = vmatpush2.xpose.msra.mxu0 0.0
      %307 = vmatprep.subr.mxu0 0.0
      %308 = vmatpush2.xpose.msra.mxu0 0.0
      %309 = vmatprep.subr.mxu0 0.0
      %310 = vmatpush2.xpose.msra.mxu0 0.0
      %311 = vmatprep.subr.mxu0 0.0
      %312 = vmatpush2.xpose.msra.mxu0 0.0
      %313 = vmatprep.subr.mxu0 0.0
      %314 = vmatpush2.xpose.msra.mxu0 0.0
      %315 = vmatprep.subr.mxu0 0.0
      %316 = vmatpush2.xpose.msra.mxu0 0.0
      %317 = vmatprep.subr.mxu0 0.0
      %318 = vmatpush2.xpose.msra.mxu0 0.0
      %319 = vmatprep.subr.mxu0 0.0
      %320 = vmatpush2.xpose.msra.mxu0 0.0
      %321 = vmatprep.subr.mxu0 0.0
      %322 = vmatpush2.xpose.msra.mxu0 0.0
      %323 = vmatprep.subr.mxu0 0.0
      %324 = vmatpush2.xpose.msra.mxu0 0.0
      %325 = vmatprep.subr.mxu0 0.0
      %326 = vmatpush2.xpose.msra.mxu0 0.0
      %327 = vmatprep.subr.mxu0 0.0
      %328 = vmatpush2.xpose.msra.mxu0 0.0
      %329 = vmatprep.subr.mxu0 0.0
      %330 = vmatpush2.xpose.msra.mxu0 0.0
      %331 = vmatprep.subr.mxu0 0.0
      %332 = vmatpush2.xpose.msra.mxu0 0.0
      %333 = vmatprep.subr.mxu0 0.0
      %334 = vmatpush2.xpose.msra.mxu0 0.0
      %335 = vmatprep.subr.mxu0 0.0
      %336 = vmatpush2.xpose.msra.mxu0 0.0
      %337 = vmatprep.mubr.f32.mxu0 0.0
      %338 = vmatmul.mubr.f32.gmra.mxu0 %v268
      %v339 = vpop.f32.mrf.mxu0
      %v340 = vadd.f32 0.0, %v339
      %v341 = vpop.f32.mrf.mxu0
      %342 = vdwg.mxu0
      %v343 = vrcp.pop %v340
      %v344 = vlaneseq
      %v345 = vshrl.u32 %v344, 7
      %v346 = vsub.s32 0, %v345
      %v347 = vrot.slane %v343, %v346
      %v348 = vmul.f32 %v265, %v347
      %v349 = vld [vmem:[%s259] sm:$0xf]
      %v350 = vpack.c.bf16 %v348, %v348
      %v352 = vsel %vm266, %v350, 0
      %vm354 = vcmask 1042432
      %vm355 = vcmask 1043456
      %v356 = vsel %vm354, 4294967295, 65535
      %v357 = vsel %vm355, %v356, 0
      %v359 = vand.u32 %v349, %v357
      %361 = vmatprep.subr.bf16.mxu0 0
      %362 = vmatpush1.bf16.msra.mxu0 0
      %363 = vmatprep.subr.bf16.mxu0 0
      %364 = vmatpush1.bf16.msra.mxu0 0
      %365 = vmatprep.subr.bf16.mxu0 0
      %366 = vmatpush1.bf16.msra.mxu0 0
      %367 = vmatprep.subr.bf16.mxu0 0
      %368 = vmatpush1.bf16.msra.mxu0 0
      %369 = vmatprep.subr.bf16.mxu0 0
      %370 = vmatpush1.bf16.msra.mxu0 0
      %371 = vmatprep.subr.bf16.mxu0 0
      %372 = vmatpush1.bf16.msra.mxu0 0
      %373 = vmatprep.subr.bf16.mxu0 0
      %374 = vmatpush1.bf16.msra.mxu0 0
      %375 = vmatprep.subr.bf16.mxu0 0
      %376 = vmatpush1.bf16.msra.mxu0 %v359
      %377 = vmatprep.subr.bf16.mxu0 0
      %378 = vmatpush2.bf16.msra.mxu0 0
      %379 = vmatprep.subr.bf16.mxu0 0
      %380 = vmatpush2.bf16.msra.mxu0 0
      %381 = vmatprep.subr.bf16.mxu0 0
      %382 = vmatpush2.bf16.msra.mxu0 0
      %383 = vmatprep.subr.bf16.mxu0 0
      %384 = vmatpush2.bf16.msra.mxu0 0
      %385 = vmatprep.subr.bf16.mxu0 0
      %386 = vmatpush2.bf16.msra.mxu0 0
      %387 = vmatprep.subr.bf16.mxu0 0
      %388 = vmatpush2.bf16.msra.mxu0 0
      %389 = vmatprep.subr.bf16.mxu0 0
      %390 = vmatpush2.bf16.msra.mxu0 0
      %391 = vmatprep.subr.bf16.mxu0 0
      %392 = vmatpush2.bf16.msra.mxu0 0
      %393 = vmatprep.mubr.bf16.mxu0 0
      %394 = vmatmul.mubr.bf16.gmra.mxu0 %v352
      %v395 = vpop.f32.mrf.mxu0
      %v396 = vadd.f32 0.0, %v395
      %v397 = vpop.f32.mrf.mxu0
      %v398 = vpop.f32.mrf.mxu0
      %v399 = vpop.f32.mrf.mxu0
      %400 = vdwg.mxu0
      %v401 = vpack.c.bf16 %v396, %v396
      %v402 = vld [vmem:[%s2] sm:$0xf]
      %v403 = vld [vmem:[%s2 + $0x4] sm:$0xf]
      %v404 = vld [vmem:[%s2 + $0x8] sm:$0xf]
      %v405 = vld [vmem:[%s2 + $0xc] sm:$0xf]
      %v406 = vld [vmem:[%s3] sm:$0x1]
      %v408 = vlaneseq
      %v409 = vshrl.u32 %v408, 7
      %v410 = vsub.s32 0, %v409
      %v411 = vrot.slane %v406, %v410
      %v417 = vunpack.c.l.b16 %v402
      %v418 = vunpack.c.l.b16 %v403
      %v419 = vunpack.c.l.b16 %v404
      %v420 = vunpack.c.l.b16 %v405
      %v421 = vpack.c.b16 %v418, %v417
      %v422 = vpack.c.b16 %v420, %v419
      %vm425 = vcmask 261120
      %v427 = vsel %vm425, %v401, 0
      %429 = vmatprep.subr.bf16.mxu0 0
      %430 = vmatpush1.bf16.msra.mxu0 0
      %431 = vmatprep.subr.bf16.mxu0 0
      %432 = vmatpush1.bf16.msra.mxu0 0
      %433 = vmatprep.subr.bf16.mxu0 0
      %434 = vmatpush1.bf16.msra.mxu0 0
      %435 = vmatprep.subr.bf16.mxu0 0
      %436 = vmatpush1.bf16.msra.mxu0 0
      %437 = vmatprep.subr.bf16.mxu0 0
      %438 = vmatpush1.bf16.msra.mxu0 0
      %439 = vmatprep.subr.bf16.mxu0 0
      %440 = vmatpush1.bf16.msra.mxu0 0
      %441 = vmatprep.subr.bf16.mxu0 0
      %442 = vmatpush1.bf16.msra.mxu0 %v422
      %443 = vmatprep.subr.bf16.mxu0 0
      %444 = vmatpush1.bf16.msra.mxu0 %v421
      %445 = vmatprep.subr.bf16.mxu0 0
      %446 = vmatpush2.bf16.msra.mxu0 0
      %447 = vmatprep.subr.bf16.mxu0 0
      %448 = vmatpush2.bf16.msra.mxu0 0
      %449 = vmatprep.subr.bf16.mxu0 0
      %450 = vmatpush2.bf16.msra.mxu0 0
      %451 = vmatprep.subr.bf16.mxu0 0
      %452 = vmatpush2.bf16.msra.mxu0 0
      %453 = vmatprep.subr.bf16.mxu0 0
      %454 = vmatpush2.bf16.msra.mxu0 0
      %455 = vmatprep.subr.bf16.mxu0 0
      %456 = vmatpush2.bf16.msra.mxu0 0
      %457 = vmatprep.subr.bf16.mxu0 0
      %458 = vmatpush2.bf16.msra.mxu0 0
      %459 = vmatprep.subr.bf16.mxu0 0
      %460 = vmatpush2.bf16.msra.mxu0 0
      %461 = vmatprep.mubr.bf16.mxu0 0
      %462 = vmatmul.mubr.bf16.gmra.mxu0 %v427
      %v463 = vpop.f32.mrf.mxu0
      %v464 = vadd.f32 %v411, %v463
      %v465 = vpop.f32.mrf.mxu0
      %v466 = vpop.f32.mrf.mxu0
      %v467 = vpop.f32.mrf.mxu0
      %468 = vdwg.mxu0
      %v469 = vmax.f32 %v464, 0.0
      %vm470 = vcmask 260096
      %v471 = vsel %vm470, %v469, 0.0
      %472 = vadd.xlane.f32.xlu0 %v471
      %v473 = vpop.xlane.xlu0 %472
      %v474 = vrcp.pop 32.0
      %v475 = vmul.f32 %v473, %v474
      %v476 = vsub.f32 %v469, %v475
      %v477 = vmul.f32 %v476, %v476
      %v478 = vsel %vm470, %v477, 0.0
      %479 = vadd.xlane.f32.xlu0 %v478
      %v480 = vpop.xlane.xlu0 %479
      %v481 = vmul.f32 %v480, %v474
      %v482 = vadd.f32 %v481, 1e-05
      %v483 = vrsqrt.pop %v482
      %v484 = vmul.f32 %v476, %v483
      %v485 = vld [vmem:[%s4] sm:$0x1]
      %v487 = vlaneseq
      %v488 = vshrl.u32 %v487, 7
      %v489 = vsub.s32 0, %v488
      %v490 = vrot.slane %v485, %v489
      %v492 = vmul.f32 %v484, %v490
      %v493 = vld [vmem:[%s5] sm:$0x1]
      %v495 = vlaneseq
      %v496 = vshrl.u32 %v495, 7
      %v497 = vsub.s32 0, %v496
      %v498 = vrot.slane %v493, %v497
      %v500 = vadd.f32 %v492, %v498
      %501 = vst.msk [vmem:[%s263] sm:$0x7f] %vm470, %v500
      %p502 = scmp.lt.s32.totalorder %s17, 1
      %s503 = scalar_select %p502, %s17, 1
      %s504 = smul.addr %s503, 8
      %s505 = scalar_lea.vmem %s6, %s504
      // Predicated region
      $region45: #{_lambda_.7} parent=43 // pred_check
        %p506 = pneg %p171
      $region46: #{_lambda_.7} parent=43 // pred_check_branch
        %508 = sbr.rel (%p506) target = $region48
      $region47: #{_lambda_.7} parent=43 // pred_region
        _
      $region48: #{_lambda_.7} parent=43 // pred_fallthru
        _
    $region44: #{_lambda_.7} parent=5 // pred_fallthru
      _
    %p509 = scmp.le.s32.totalorder 2, %s12
    // Predicated region
    $region49: #{_lambda_.7} parent=5 // pred_check
      %p510 = pneg %p509
    $region50: #{_lambda_.7} parent=5 // pred_check_branch
      %512 = sbr.rel (%p510) target = $region52
    $region51: #{_lambda_.7} parent=5 // pred_region
      %s513 = ssub.s32 %s12, 2
      // Predicated region
      $region53: #{_lambda_.7} parent=51 // pred_check
        %p514 = pneg %p177
      $region54: #{_lambda_.7} parent=51 // pred_check_branch
        %516 = sbr.rel (%p514) target = $region56
      $region55: #{_lambda_.7} parent=51 // pred_region
        %p517 = scmp.lt.s32.totalorder %s18, 1
        %s518 = scalar_select %p517, %s18, 1
        %s519 = smul.addr %s518, 8
        %s520 = scalar_lea.vmem %s6, %s519
      $region56: #{_lambda_.7} parent=51 // pred_fallthru
        _
    $region52: #{_lambda_.7} parent=5 // pred_fallthru
      _
  $region6: #{_lambda_.7} parent=0 // loop_footer
    %s16 = sadd.s32 1, %s12
  $region7: #{_lambda_.7} parent=0 // loop_footer_branch
    %11 = sbr.rel target = $region3
  $region8: #{_lambda_.7} parent=0 // loop_exit
    _

// kernel: _lambda_.4
$region0: #{_lambda_.4}
  #allocation0 [shape = 'u32[]', space=smem, size = 0x4, offset = 0x4, fixed_abs, tag = 'smem constant byte address 0x4 - core index']
  #allocation1 [shape = 'u32[144,128]{1,0:T(1,128)}', space=vmem, size = 0x12000, scoped, tag = 'internal scratch']
  %s0 = inlined_call_operand.vmem [shape: f32[2,16,16], index: 0, kind: input, shape index: {}]
  %s1 = inlined_call_operand.vmem [shape: f32[2,16,8], index: 1, kind: input, shape index: {}]
  %s2 = inlined_call_operand.vmem [shape: bf16[8,32], index: 2, kind: input, shape index: {}]
  %s3 = inlined_call_operand.vmem [shape: f32[1,32], index: 3, kind: input, shape index: {}]
  %s4 = inlined_call_operand.vmem [shape: f32[1,32], index: 4, kind: input, shape index: {}]
  %s5 = inlined_call_operand.vmem [shape: f32[1,32], index: 5, kind: input, shape index: {}]
  %s6 = inlined_call_operand.vmem [shape: f32[2,16,16], index: 6, kind: output, shape index: {0}]
  %s7 = inlined_call_operand.vmem [shape: bf16[2,16,32], index: 7, kind: output, shape index: {1}]
  %8 = xla_tuple %s6, %s7
  %s9 = sld [smem:[#allocation0]]
  $region65: #{_lambda_.4} parent=0
    _
  %s11 = ssub.s32 1, %s9
  %s12 = scalar_select 0, %s11, %s9
  loop: start=0, step=1, limit=4
  $region2: #{_lambda_.4} parent=0 // loop_pre_header
    _
  $region3: #{_lambda_.4} parent=0 // loop_header
    %s14 = sphi 0, %s18
    %p15 = scmp.ge.s32.totalorder %s14, 4
    %s24 = sphi 0, %s26
    %s27 = sphi 0, %s24
    %s28 = sphi 0, %s27
    %s44 = sphi 0, %s28
    %s50 = sphi 0, %s52
    %s53 = sphi 0, %s50
    %s54 = sphi 0, %s53
    %s70 = sphi 0, %s54
    %s74 = sphi 0, %s74
    %s76 = sphi 0, %s74
    %s77 = sphi 0, %s76
    %s91 = sphi 0, %s77
    %s95 = sphi 0, %s95
    %s97 = sphi 0, %s95
    %s98 = sphi 0, %s97
    %s112 = sphi 0, %s98
    %s116 = sphi 0, %s116
    %s118 = sphi 0, %s116
    %s119 = sphi 0, %s118
    %s133 = sphi 0, %s119
    %s137 = sphi 0, %s137
    %s139 = sphi 0, %s137
    %s140 = sphi 0, %s139
    %s154 = sphi 0, %s140
    %s160 = sphi 0, %s162
    %s163 = sphi 0, %s160
    %s164 = sphi 0, %s163
    %s180 = sphi 0, %s164
    %s186 = sphi 0, %s188
    %s189 = sphi 0, %s186
    %s190 = sphi 0, %s189
    %s206 = sphi 0, %s190
  $region4: #{_lambda_.4} parent=0 // loop_header_branch
    %17 = sbr.rel (%p15) target = $region8
  $region5: #{_lambda_.4} parent=0 // loop_body
    %s19 = ssub.s32 %s14, 1
    %s20 = ssub.s32 %s14, 2
    %s21 = sadd.s32 %s14, 1
    %s22 = ssub.s32 %s14, %s21
    %p23 = scmp.eq.s32.totalorder %s22, 0
    %s25 = sadd.s32 %s24, 1
    %s26 = scalar_select %p23, %s24, %s25
    %p29 = pneg %p23
    %p30 = scmp.eq.s32.totalorder %s14, 1
    %p31 = por %p29, %p30
    %p32 = scmp.ne.s32.totalorder %s24, %s27
    %p33 = scmp.eq.s32.totalorder %s14, 0
    %p34 = por %p32, %p33
    %p35 = scmp.ne.s32.totalorder %s24, %s27
    %p36 = scmp.eq.s32.totalorder %s19, 1
    %p37 = por %p35, %p36
    %p38 = scmp.ne.s32.totalorder %s27, %s28
    %p39 = scmp.eq.s32.totalorder %s19, 0
    %p40 = por %p38, %p39
    %p41 = scmp.ne.s32.totalorder %s27, %s28
    %p42 = scmp.eq.s32.totalorder %s20, 1
    %p43 = por %p41, %p42
    %p45 = scmp.ne.s32.totalorder %s28, %s44
    %p46 = scmp.eq.s32.totalorder %s20, 0
    %p47 = por %p45, %p46
    %s48 = ssub.s32 %s14, %s21
    %p49 = scmp.eq.s32.totalorder %s48, 0
    %s51 = sadd.s32 %s50, 1
    %s52 = scalar_select %p49, %s50, %s51
    %p55 = pneg %p49
    %p56 = scmp.eq.s32.totalorder %s14, 1
    %p57 = por %p55, %p56
    %p58 = scmp.ne.s32.totalorder %s50, %s53
    %p59 = scmp.eq.s32.totalorder %s14, 0
    %p60 = por %p58, %p59
    %p61 = scmp.ne.s32.totalorder %s50, %s53
    %p62 = scmp.eq.s32.totalorder %s19, 1
    %p63 = por %p61, %p62
    %p64 = scmp.ne.s32.totalorder %s53, %s54
    %p65 = scmp.eq.s32.totalorder %s19, 0
    %p66 = por %p64, %p65
    %p67 = scmp.ne.s32.totalorder %s53, %s54
    %p68 = scmp.eq.s32.totalorder %s20, 1
    %p69 = por %p67, %p68
    %p71 = scmp.ne.s32.totalorder %s54, %s70
    %p72 = scmp.eq.s32.totalorder %s20, 0
    %p73 = por %p71, %p72
    %s75 = sadd.s32 %s74, 1
    %p78 = scmp.eq.s32.totalorder %s14, 1
    %p79 = scmp.ne.s32.totalorder %s74, %s76
    %p80 = scmp.eq.s32.totalorder %s14, 0
    %p81 = por %p79, %p80
    %p82 = scmp.ne.s32.totalorder %s74, %s76
    %p83 = scmp.eq.s32.totalorder %s19, 1
    %p84 = por %p82, %p83
    %p85 = scmp.ne.s32.totalorder %s76, %s77
    %p86 = scmp.eq.s32.totalorder %s19, 0
    %p87 = por %p85, %p86
    %p88 = scmp.ne.s32.totalorder %s76, %s77
    %p89 = scmp.eq.s32.totalorder %s20, 1
    %p90 = por %p88, %p89
    %p92 = scmp.ne.s32.totalorder %s77, %s91
    %p93 = scmp.eq.s32.totalorder %s20, 0
    %p94 = por %p92, %p93
    %s96 = sadd.s32 %s95, 1
    %p99 = scmp.eq.s32.totalorder %s14, 1
    %p100 = scmp.ne.s32.totalorder %s95, %s97
    %p101 = scmp.eq.s32.totalorder %s14, 0
    %p102 = por %p100, %p101
    %p103 = scmp.ne.s32.totalorder %s95, %s97
    %p104 = scmp.eq.s32.totalorder %s19, 1
    %p105 = por %p103, %p104
    %p106 = scmp.ne.s32.totalorder %s97, %s98
    %p107 = scmp.eq.s32.totalorder %s19, 0
    %p108 = por %p106, %p107
    %p109 = scmp.ne.s32.totalorder %s97, %s98
    %p110 = scmp.eq.s32.totalorder %s20, 1
    %p111 = por %p109, %p110
    %p113 = scmp.ne.s32.totalorder %s98, %s112
    %p114 = scmp.eq.s32.totalorder %s20, 0
    %p115 = por %p113, %p114
    %s117 = sadd.s32 %s116, 1
    %p120 = scmp.eq.s32.totalorder %s14, 1
    %p121 = scmp.ne.s32.totalorder %s116, %s118
    %p122 = scmp.eq.s32.totalorder %s14, 0
    %p123 = por %p121, %p122
    %p124 = scmp.ne.s32.totalorder %s116, %s118
    %p125 = scmp.eq.s32.totalorder %s19, 1
    %p126 = por %p124, %p125
    %p127 = scmp.ne.s32.totalorder %s118, %s119
    %p128 = scmp.eq.s32.totalorder %s19, 0
    %p129 = por %p127, %p128
    %p130 = scmp.ne.s32.totalorder %s118, %s119
    %p131 = scmp.eq.s32.totalorder %s20, 1
    %p132 = por %p130, %p131
    %p134 = scmp.ne.s32.totalorder %s119, %s133
    %p135 = scmp.eq.s32.totalorder %s20, 0
    %p136 = por %p134, %p135
    %s138 = sadd.s32 %s137, 1
    %p141 = scmp.eq.s32.totalorder %s14, 1
    %p142 = scmp.ne.s32.totalorder %s137, %s139
    %p143 = scmp.eq.s32.totalorder %s14, 0
    %p144 = por %p142, %p143
    %p145 = scmp.ne.s32.totalorder %s137, %s139
    %p146 = scmp.eq.s32.totalorder %s19, 1
    %p147 = por %p145, %p146
    %p148 = scmp.ne.s32.totalorder %s139, %s140
    %p149 = scmp.eq.s32.totalorder %s19, 0
    %p150 = por %p148, %p149
    %p151 = scmp.ne.s32.totalorder %s139, %s140
    %p152 = scmp.eq.s32.totalorder %s20, 1
    %p153 = por %p151, %p152
    %p155 = scmp.ne.s32.totalorder %s140, %s154
    %p156 = scmp.eq.s32.totalorder %s20, 0
    %p157 = por %p155, %p156
    %s158 = ssub.s32 %s14, %s21
    %p159 = scmp.eq.s32.totalorder %s158, 0
    %s161 = sadd.s32 %s160, 1
    %s162 = scalar_select %p159, %s160, %s161
    %p165 = pneg %p159
    %p166 = scmp.eq.s32.totalorder %s14, 1
    %p167 = por %p165, %p166
    %p168 = scmp.ne.s32.totalorder %s160, %s163
    %p169 = scmp.eq.s32.totalorder %s14, 0
    %p170 = por %p168, %p169
    %p171 = scmp.ne.s32.totalorder %s160, %s163
    %p172 = scmp.eq.s32.totalorder %s19, 1
    %p173 = por %p171, %p172
    %p174 = scmp.ne.s32.totalorder %s163, %s164
    %p175 = scmp.eq.s32.totalorder %s19, 0
    %p176 = por %p174, %p175
    %p177 = scmp.ne.s32.totalorder %s163, %s164
    %p178 = scmp.eq.s32.totalorder %s20, 1
    %p179 = por %p177, %p178
    %p181 = scmp.ne.s32.totalorder %s164, %s180
    %p182 = scmp.eq.s32.totalorder %s20, 0
    %p183 = por %p181, %p182
    %s184 = ssub.s32 %s14, %s21
    %p185 = scmp.eq.s32.totalorder %s184, 0
    %s187 = sadd.s32 %s186, 1
    %s188 = scalar_select %p185, %s186, %s187
    %p191 = pneg %p185
    %p192 = scmp.eq.s32.totalorder %s14, 1
    %p193 = por %p191, %p192
    %p194 = scmp.ne.s32.totalorder %s186, %s189
    %p195 = scmp.eq.s32.totalorder %s14, 0
    %p196 = por %p194, %p195
    %p197 = scmp.ne.s32.totalorder %s186, %s189
    %p198 = scmp.eq.s32.totalorder %s19, 1
    %p199 = por %p197, %p198
    %p200 = scmp.ne.s32.totalorder %s189, %s190
    %p201 = scmp.eq.s32.totalorder %s19, 0
    %p202 = por %p200, %p201
    %p203 = scmp.ne.s32.totalorder %s189, %s190
    %p204 = scmp.eq.s32.totalorder %s20, 1
    %p205 = por %p203, %p204
    %p207 = scmp.ne.s32.totalorder %s190, %s206
    %p208 = scmp.eq.s32.totalorder %s20, 0
    %p209 = por %p207, %p208
    %p210 = scmp.le.s32.totalorder 1, %s14
    %p211 = scmp.lt.s32.totalorder %s14, 3
    %p212 = pnand %p210, %p211
    %p213 = pneg %p212
    // Predicated region
    $region9: #{_lambda_.4} parent=5 // pred_check
      _
    $region10: #{_lambda_.4} parent=5 // pred_check_branch
      %215 = sbr.rel (%p212) target = $region12
    $region11: #{_lambda_.4} parent=5 // pred_region
      %s216 = ssub.s32 %s14, 1
      // Predicated region
      $region13: #{_lambda_.4} parent=11 // pred_check
        %p217 = pneg %p87
      $region14: #{_lambda_.4} parent=11 // pred_check_branch
        %219 = sbr.rel (%p217) target = $region16
      $region15: #{_lambda_.4} parent=11 // pred_region
        _
      $region16: #{_lambda_.4} parent=11 // pred_fallthru
        _
      // Predicated region
      $region17: #{_lambda_.4} parent=11 // pred_check
        %p220 = pneg %p108
      $region18: #{_lambda_.4} parent=11 // pred_check_branch
        %222 = sbr.rel (%p220) target = $region20
      $region19: #{_lambda_.4} parent=11 // pred_region
        _
      $region20: #{_lambda_.4} parent=11 // pred_fallthru
        _
      // Predicated region
      $region21: #{_lambda_.4} parent=11 // pred_check
        %p223 = pneg %p129
      $region22: #{_lambda_.4} parent=11 // pred_check_branch
        %225 = sbr.rel (%p223) target = $region24
      $region23: #{_lambda_.4} parent=11 // pred_region
        _
      $region24: #{_lambda_.4} parent=11 // pred_fallthru
        _
      // Predicated region
      $region25: #{_lambda_.4} parent=11 // pred_check
        %p226 = pneg %p150
      $region26: #{_lambda_.4} parent=11 // pred_check_branch
        %228 = sbr.rel (%p226) target = $region28
      $region27: #{_lambda_.4} parent=11 // pred_region
        _
      $region28: #{_lambda_.4} parent=11 // pred_fallthru
        _
    $region12: #{_lambda_.4} parent=5 // pred_fallthru
      _
    %p229 = scmp.lt.s32.totalorder %s14, 2
    // Predicated region
    $region29: #{_lambda_.4} parent=5 // pred_check
      %p230 = pneg %p229
    $region30: #{_lambda_.4} parent=5 // pred_check_branch
      %232 = sbr.rel (%p230) target = $region32
    $region31: #{_lambda_.4} parent=5 // pred_region
      // Predicated region
      $region33: #{_lambda_.4} parent=31 // pred_check
        %p233 = pneg %p34
      $region34: #{_lambda_.4} parent=31 // pred_check_branch
        %235 = sbr.rel (%p233) target = $region36
      $region35: #{_lambda_.4} parent=31 // pred_region
        %p236 = scmp.lt.s32.totalorder %s14, 1
        %s237 = scalar_select %p236, %s14, 1
        %s238 = smul.addr %s237, 2
        %s239 = smul.addr %s238, 8
        %s240 = scalar_lea.vmem %s0, %s239
      $region36: #{_lambda_.4} parent=31 // pred_fallthru
        _
      // Predicated region
      $region37: #{_lambda_.4} parent=31 // pred_check
        %p241 = pneg %p60
      $region38: #{_lambda_.4} parent=31 // pred_check_branch
        %243 = sbr.rel (%p241) target = $region40
      $region39: #{_lambda_.4} parent=31 // pred_region
        %p244 = scmp.lt.s32.totalorder %s14, 1
        %s245 = scalar_select %p244, %s14, 1
        %s246 = smul.addr %s245, 2
        %s247 = smul.addr %s246, 8
        %s248 = scalar_lea.vmem %s1, %s247
      $region40: #{_lambda_.4} parent=31 // pred_fallthru
        _
    $region32: #{_lambda_.4} parent=5 // pred_fallthru
      _
    %p249 = scmp.le.s32.totalorder 1, %s14
    %p250 = scmp.lt.s32.totalorder %s14, 3
    %p251 = pnand %p249, %p250
    %p252 = pneg %p251
    // Predicated region
    $region41: #{_lambda_.4} parent=5 // pred_check
      _
    $region42: #{_lambda_.4} parent=5 // pred_check_branch
      %254 = sbr.rel (%p251) target = $region44
    $region43: #{_lambda_.4} parent=5 // pred_region
      %s255 = ssub.s32 %s14, 1
      %p256 = scmp.lt.s32.totalorder %s19, 1
      %s257 = scalar_select %p256, %s19, 1
      %s258 = smul.addr %s257, 2
      %s259 = smul.addr %s258, 8
      %s260 = scalar_lea.vmem %s0, %s259
      %p261 = pneg %p40
      %p262 = pneg %p37
      %p263 = scmp.lt.s32.totalorder %s19, 1
      %s264 = scalar_select %p263, %s19, 1
      %s265 = smul.addr %s264, 2
      %s266 = smul.addr %s265, 8
      %s267 = scalar_lea.vmem %s1, %s266
      %p268 = pneg %p66
      %p269 = pneg %p63
      %p270 = pneg %p87
      %p271 = pneg %p84
      %p272 = pneg %p108
      %p273 = pneg %p105
      %p274 = pneg %p129
      %p275 = pneg %p126
      %p276 = pneg %p150
      %p277 = pneg %p147
      %p278 = pneg %p176
      %p279 = pneg %p173
      %p280 = scmp.lt.s32.totalorder %s19, 1
      %s281 = scalar_select %p280, %s19, 1
      %s282 = smul.addr %s281, 2
      %s283 = smul.addr %s282, 8
      %s284 = scalar_lea.vmem %s6, %s283
      %p285 = pneg %p202
      %p286 = pneg %p199
      %p287 = scmp.lt.s32.totalorder %s19, 1
      %s288 = scalar_select %p287, %s19, 1
      %s289 = smul.addr %s288, 2
      %s290 = smul.addr %s289, 4
      %s291 = scalar_lea.vmem %s7, %s290
      %p292 = scmp.lt.s32.totalorder %s19, 1
      %s293 = scalar_select %p292, %s19, 1
      %s294 = smul.addr %s293, 2
      %s295 = smul.addr %s294, 8
      %s296 = scalar_lea.vmem %s0, %s295
      %p297 = scmp.lt.s32.totalorder %s19, 1
      %s298 = scalar_select %p297, %s19, 1
      %s299 = smul.addr %s298, 2
      %s300 = smul.addr %s299, 8
      %s301 = scalar_lea.vmem %s1, %s300
      %p302 = scmp.lt.s32.totalorder %s19, 1
      %s303 = scalar_select %p302, %s19, 1
      %s304 = smul.addr %s303, 2
      %s305 = smul.addr %s304, 8
      %s306 = scalar_lea.vmem %s6, %s305
      %p307 = scmp.lt.s32.totalorder %s19, 1
      %s308 = scalar_select %p307, %s19, 1
      %s309 = smul.addr %s308, 2
      %s310 = smul.addr %s309, 4
      %s311 = scalar_lea.vmem %s7, %s310
      %v314 = vld [vmem:[%s296] sm:$0xff]
      %v315 = vld [vmem:[%s296 + $0x8] sm:$0xff]
      %v316 = vpack.c.bf16 %v315, %v314
      %vm317 = vcmask 130048
      %v319 = vsel %vm317, 1065369472, 0
      %v322 = vsel %vm317, %v316, 0
      %324 = vmatprep.subr.bf16.mxu0 0
      %325 = vmatpush1.bf16.xpose.msra.mxu0 0
      %326 = vmatprep.subr.bf16.mxu0 0
      %327 = vmatpush1.bf16.xpose.msra.mxu0 0
      %328 = vmatprep.subr.bf16.mxu0 0
      %329 = vmatpush1.bf16.xpose.msra.mxu0 0
      %330 = vmatprep.subr.bf16.mxu0 0
      %331 = vmatpush1.bf16.xpose.msra.mxu0 0
      %332 = vmatprep.subr.bf16.mxu0 0
      %333 = vmatpush1.bf16.xpose.msra.mxu0 0
      %334 = vmatprep.subr.bf16.mxu0 0
      %335 = vmatpush1.bf16.xpose.msra.mxu0 0
      %336 = vmatprep.subr.bf16.mxu0 0
      %337 = vmatpush1.bf16.xpose.msra.mxu0 0
      %338 = vmatprep.subr.bf16.mxu0 0
      %339 = vmatpush1.bf16.xpose.msra.mxu0 %v322
      %340 = vmatprep.subr.bf16.mxu0 0
      %341 = vmatpush2.bf16.xpose.msra.mxu0 0
      %342 = vmatprep.subr.bf16.mxu0 0
      %343 = vmatpush2.bf16.xpose.msra.mxu0 0
      %344 = vmatprep.subr.bf16.mxu0 0
      %345 = vmatpush2.bf16.xpose.msra.mxu0 0
      %346 = vmatprep.subr.bf16.mxu0 0
      %347 = vmatpush2.bf16.xpose.msra.mxu0 0
      %348 = vmatprep.subr.bf16.mxu0 0
      %349 = vmatpush2.bf16.xpose.msra.mxu0 0
      %350 = vmatprep.subr.bf16.mxu0 0
      %351 = vmatpush2.bf16.xpose.msra.mxu0 0
      %352 = vmatprep.subr.bf16.mxu0 0
      %353 = vmatpush2.bf16.xpose.msra.mxu0 0
      %354 = vmatprep.subr.bf16.mxu0 0
      %355 = vmatpush2.bf16.xpose.msra.mxu0 0
      %356 = vmatprep.mubr.bf16.mxu0 0
      %357 = vmatmul.mubr.bf16.gmra.mxu0 %v319
      %v358 = vpop.f32.mrf.mxu0
      %v359 = vadd.f32 0.0, %v358
      %v360 = vpop.f32.mrf.mxu0
      %v361 = vpop.f32.mrf.mxu0
      %v362 = vpop.f32.mrf.mxu0
      %363 = vdwg.mxu0
      %v364 = vrcp.pop %v359
      %v365 = vlaneseq
      %v366 = vshrl.u32 %v365, 7
      %v367 = vsub.s32 0, %v366
      %v368 = vrot.slane %v364, %v367
      %v369 = vmul.f32 %v314, %v368
      %v370 = vmul.f32 %v315, %v368
      %371 = vst.msk [vmem:[%s306] sm:$0xff] %vm317, %v369
      %372 = vst.msk [vmem:[%s306 + $0x8] sm:$0xff] %vm317, %v370
      %v373 = vld [vmem:[%s301] sm:$0xff]
      %v374 = vld [vmem:[%s301 + $0x8] sm:$0xff]
      %v375 = vpack.c.bf16 %v370, %v369
      %v376 = vpack.c.bf16 %v374, %v373
      %v378 = vsel %vm317, %v375, 0
      %380 = vmatprep.subr.bf16.mxu0 0
      %381 = vmatpush1.bf16.msra.mxu0 0
      %382 = vmatprep.subr.bf16.mxu0 0
      %383 = vmatpush1.bf16.msra.mxu0 0
      %384 = vmatprep.subr.bf16.mxu0 0
      %385 = vmatpush1.bf16.msra.mxu0 0
      %386 = vmatprep.subr.bf16.mxu0 0
      %387 = vmatpush1.bf16.msra.mxu0 0
      %388 = vmatprep.subr.bf16.mxu0 0
      %389 = vmatpush1.bf16.msra.mxu0 0
      %390 = vmatprep.subr.bf16.mxu0 0
      %391 = vmatpush1.bf16.msra.mxu0 0
      %392 = vmatprep.subr.bf16.mxu0 0
      %393 = vmatpush1.bf16.msra.mxu0 0
      %394 = vmatprep.subr.bf16.mxu0 0
      %395 = vmatpush1.bf16.msra.mxu0 %v376
      %396 = vmatprep.subr.bf16.mxu0 0
      %397 = vmatpush2.bf16.msra.mxu0 0
      %398 = vmatprep.subr.bf16.mxu0 0
      %399 = vmatpush2.bf16.msra.mxu0 0
      %400 = vmatprep.subr.bf16.mxu0 0
      %401 = vmatpush2.bf16.msra.mxu0 0
      %402 = vmatprep.subr.bf16.mxu0 0
      %403 = vmatpush2.bf16.msra.mxu0 0
      %404 = vmatprep.subr.bf16.mxu0 0
      %405 = vmatpush2.bf16.msra.mxu0 0
      %406 = vmatprep.subr.bf16.mxu0 0
      %407 = vmatpush2.bf16.msra.mxu0 0
      %408 = vmatprep.subr.bf16.mxu0 0
      %409 = vmatpush2.bf16.msra.mxu0 0
      %410 = vmatprep.subr.bf16.mxu0 0
      %411 = vmatpush2.bf16.msra.mxu0 0
      %412 = vmatprep.mubr.bf16.mxu0 0
      %413 = vmatmul.mubr.bf16.gmra.mxu0 %v378
      %v414 = vpop.f32.mrf.mxu0
      %v415 = vadd.f32 0.0, %v414
      %v416 = vpop.f32.mrf.mxu0
      %v417 = vpop.f32.mrf.mxu0
      %v418 = vadd.f32 0.0, %v417
      %v419 = vpop.f32.mrf.mxu0
      %420 = vdwg.mxu0
      %v421 = vpack.c.bf16 %v418, %v415
      %v422 = vld [vmem:[%s2] sm:$0xf]
      %v423 = vld [vmem:[%s3] sm:$0x1]
      %v425 = vlaneseq
      %v426 = vshrl.u32 %v425, 7
      %v427 = vsub.s32 0, %v426
      %v428 = vrot.slane %v423, %v427
      %vm430 = vcmask 64512
      %v432 = vsel %vm430, %v421, 0
      %vm434 = vcmask 1043456
      %v436 = vsel %vm434, %v422, 0
      %438 = vmatprep.subr.bf16.mxu0 0
      %439 = vmatpush1.bf16.msra.mxu0 0
      %440 = vmatprep.subr.bf16.mxu0 0
      %441 = vmatpush1.bf16.msra.mxu0 0
      %442 = vmatprep.subr.bf16.mxu0 0
      %443 = vmatpush1.bf16.msra.mxu0 0
      %444 = vmatprep.subr.bf16.mxu0 0
      %445 = vmatpush1.bf16.msra.mxu0 0
      %446 = vmatprep.subr.bf16.mxu0 0
      %447 = vmatpush1.bf16.msra.mxu0 0
      %448 = vmatprep.subr.bf16.mxu0 0
      %449 = vmatpush1.bf16.msra.mxu0 0
      %450 = vmatprep.subr.bf16.mxu0 0
      %451 = vmatpush1.bf16.msra.mxu0 0
      %452 = vmatprep.subr.bf16.mxu0 0
      %453 = vmatpush1.bf16.msra.mxu0 %v436
      %454 = vmatprep.subr.bf16.mxu0 0
      %455 = vmatpush2.bf16.msra.mxu0 0
      %456 = vmatprep.subr.bf16.mxu0 0
      %457 = vmatpush2.bf16.msra.mxu0 0
      %458 = vmatprep.subr.bf16.mxu0 0
      %459 = vmatpush2.bf16.msra.mxu0 0
      %460 = vmatprep.subr.bf16.mxu0 0
      %461 = vmatpush2.bf16.msra.mxu0 0
      %462 = vmatprep.subr.bf16.mxu0 0
      %463 = vmatpush2.bf16.msra.mxu0 0
      %464 = vmatprep.subr.bf16.mxu0 0
      %465 = vmatpush2.bf16.msra.mxu0 0
      %466 = vmatprep.subr.bf16.mxu0 0
      %467 = vmatpush2.bf16.msra.mxu0 0
      %468 = vmatprep.subr.bf16.mxu0 0
      %469 = vmatpush2.bf16.msra.mxu0 0
      %470 = vmatprep.mubr.bf16.mxu0 0
      %471 = vmatmul.mubr.bf16.gmra.mxu0 %v432
      %v472 = vpop.f32.mrf.mxu0
      %v473 = vadd.f32 %v428, %v472
      %v474 = vpop.f32.mrf.mxu0
      %v475 = vpop.f32.mrf.mxu0
      %v476 = vadd.f32 %v428, %v475
      %v477 = vpop.f32.mrf.mxu0
      %478 = vdwg.mxu0
      %v479 = vmax.f32 %v473, 0.0
      %v480 = vmax.f32 %v476, 0.0
      %vm481 = vcmask 261120
      %v482 = vsel %vm481, %v479, 0.0
      %483 = vadd.xlane.f32.xlu0 %v482
      %v484 = vpop.xlane.xlu0 %483
      %v485 = vsel %vm481, %v480, 0.0
      %486 = vadd.xlane.f32.xlu0 %v485
      %v487 = vpop.xlane.xlu0 %486
      %v488 = vrcp.pop 32.0
      %v489 = vmul.f32 %v484, %v488
      %v490 = vmul.f32 %v487, %v488
      %v491 = vsub.f32 %v479, %v489
      %v492 = vsub.f32 %v480, %v490
      %v493 = vmul.f32 %v491, %v491
      %v494 = vmul.f32 %v492, %v492
      %v495 = vsel %vm481, %v493, 0.0
      %496 = vadd.xlane.f32.xlu0 %v495
      %v497 = vpop.xlane.xlu0 %496
      %v498 = vsel %vm481, %v494, 0.0
      %499 = vadd.xlane.f32.xlu0 %v498
      %v500 = vpop.xlane.xlu0 %499
      %v501 = vmul.f32 %v497, %v488
      %v502 = vmul.f32 %v500, %v488
      %v503 = vadd.f32 %v501, 1e-05
      %v504 = vadd.f32 %v502, 1e-05
      %v505 = vrsqrt.pop %v503
      %v506 = vrsqrt.pop %v504
      %v507 = vmul.f32 %v491, %v505
      %v508 = vmul.f32 %v492, %v506
      %v509 = vld [vmem:[%s4] sm:$0x1]
      %v511 = vlaneseq
      %v512 = vshrl.u32 %v511, 7
      %v513 = vsub.s32 0, %v512
      %v514 = vrot.slane %v509, %v513
      %v516 = vmul.f32 %v507, %v514
      %v517 = vmul.f32 %v508, %v514
      %v518 = vld [vmem:[%s5] sm:$0x1]
      %v520 = vlaneseq
      %v521 = vshrl.u32 %v520, 7
      %v522 = vsub.s32 0, %v521
      %v523 = vrot.slane %v518, %v522
      %v525 = vadd.f32 %v516, %v523
      %v526 = vadd.f32 %v517, %v523
      %v527 = vpack.c.bf16 %v526, %v525
      %v529 = vunpack.c.l.b16 %v527
      %v530 = vunpack.c.h.b16 %v527
      %v531 = vpack.c.b16 %v529, %v529
      %v532 = vpack.c.b16 %v530, %v530
      %vm535 = vcmask 257024
      %536 = vst.msk [vmem:[%s311] sm:$0xf] %vm535, %v531
      %537 = vst.msk [vmem:[%s311 + $0x4] sm:$0xf] %vm535, %v532
      %p538 = scmp.lt.s32.totalorder %s19, 1
      %s539 = scalar_select %p538, %s19, 1
      %s540 = smul.addr %s539, 2
      %s541 = smul.addr %s540, 8
      %s542 = scalar_lea.vmem %s6, %s541
      %p543 = scmp.lt.s32.totalorder %s19, 1
      %s544 = scalar_select %p543, %s19, 1
      %s545 = smul.addr %s544, 2
      %s546 = smul.addr %s545, 4
      %s547 = scalar_lea.vmem %s7, %s546
      // Predicated region
      $region45: #{_lambda_.4} parent=43 // pred_check
        %p548 = pneg %p173
      $region46: #{_lambda_.4} parent=43 // pred_check_branch
        %550 = sbr.rel (%p548) target = $region48
      $region47: #{_lambda_.4} parent=43 // pred_region
        _
      $region48: #{_lambda_.4} parent=43 // pred_fallthru
        _
      // Predicated region
      $region49: #{_lambda_.4} parent=43 // pred_check
        %p551 = pneg %p199
      $region50: #{_lambda_.4} parent=43 // pred_check_branch
        %553 = sbr.rel (%p551) target = $region52
      $region51: #{_lambda_.4} parent=43 // pred_region
        _
      $region52: #{_lambda_.4} parent=43 // pred_fallthru
        _
    $region44: #{_lambda_.4} parent=5 // pred_fallthru
      _
    %p554 = scmp.le.s32.totalorder 2, %s14
    // Predicated region
    $region53: #{_lambda_.4} parent=5 // pred_check
      %p555 = pneg %p554
    $region54: #{_lambda_.4} parent=5 // pred_check_branch
      %557 = sbr.rel (%p555) target = $region56
    $region55: #{_lambda_.4} parent=5 // pred_region
      %s558 = ssub.s32 %s14, 2
      // Predicated region
      $region57: #{_lambda_.4} parent=55 // pred_check
        %p559 = pneg %p179
      $region58: #{_lambda_.4} parent=55 // pred_check_branch
        %561 = sbr.rel (%p559) target = $region60
      $region59: #{_lambda_.4} parent=55 // pred_region
        %p562 = scmp.lt.s32.totalorder %s20, 1
        %s563 = scalar_select %p562, %s20, 1
        %s564 = smul.addr %s563, 2
        %s565 = smul.addr %s564, 8
        %s566 = scalar_lea.vmem %s6, %s565
      $region60: #{_lambda_.4} parent=55 // pred_fallthru
        _
      // Predicated region
      $region61: #{_lambda_.4} parent=55 // pred_check
        %p567 = pneg %p205
      $region62: #{_lambda_.4} parent=55 // pred_check_branch
        %569 = sbr.rel (%p567) target = $region64
      $region63: #{_lambda_.4} parent=55 // pred_region
        %p570 = scmp.lt.s32.totalorder %s20, 1
        %s571 = scalar_select %p570, %s20, 1
        %s572 = smul.addr %s571, 2
        %s573 = smul.addr %s572, 4
        %s574 = scalar_lea.vmem %s7, %s573
      $region64: #{_lambda_.4} parent=55 // pred_fallthru
        _
    $region56: #{_lambda_.4} parent=5 // pred_fallthru
      _
  $region6: #{_lambda_.4} parent=0 // loop_footer
    %s18 = sadd.s32 1, %s14
  $region7: #{_lambda_.4} parent=0 // loop_footer_branch
    %13 = sbr.rel target = $region3
  $region8: #{_lambda_.4} parent=0 // loop_exit
    _

// kernel: _lambda_.6
$region0: #{_lambda_.6}
  #allocation0 [shape = 'u32[]', space=smem, size = 0x4, offset = 0x4, fixed_abs, tag = 'smem constant byte address 0x4 - core index']
  #allocation1 [shape = 'u32[144,128]{1,0:T(1,128)}', space=vmem, size = 0x12000, scoped, tag = 'internal scratch']
  #allocation2 [shape = 'f32[1,1]{1,0:T(1,128)S(1)}', space=vmem, size = 0x200, scoped, tag = 'scoped memory for _lambda_.6']
  %s0 = inlined_call_operand.vmem [shape: f32[2,12,12], index: 0, kind: input, shape index: {}]
  %s1 = inlined_call_operand.vmem [shape: bf16[2,12,32], index: 1, kind: input, shape index: {}]
  %s2 = inlined_call_operand.vmem [shape: bf16[32,32], index: 2, kind: input, shape index: {}]
  %s3 = inlined_call_operand.vmem [shape: f32[1,32], index: 3, kind: input, shape index: {}]
  %s4 = inlined_call_operand.vmem [shape: f32[1,32], index: 4, kind: input, shape index: {}]
  %s5 = inlined_call_operand.<no memory space> [shape: f32[1,1], index: 5, kind: input, shape index: {}]
  %s6 = inlined_call_operand.vmem [shape: f32[2,7,7], index: 6, kind: output, shape index: {0}]
  %s7 = inlined_call_operand.vmem [shape: bf16[2,7,32], index: 7, kind: output, shape index: {1}]
  %8 = xla_tuple %s6, %s7
  %s9 = sld [smem:[#allocation0]]
  $region65: #{_lambda_.6} parent=0
    _
  %s11 = ssub.s32 1, %s9
  %s12 = scalar_select 0, %s11, %s9
  %v13 = vstv %s5
  %14 = vst [vmem:[#allocation2] sm:$0x1] %v13
  loop: start=0, step=1, limit=4
  $region2: #{_lambda_.6} parent=0 // loop_pre_header
    _
  $region3: #{_lambda_.6} parent=0 // loop_header
    %s16 = sphi 0, %s20
    %p17 = scmp.ge.s32.totalorder %s16, 4
    %s26 = sphi 0, %s28
    %s29 = sphi 0, %s26
    %s30 = sphi 0, %s29
    %s46 = sphi 0, %s30
    %s52 = sphi 0, %s54
    %s55 = sphi 0, %s52
    %s56 = sphi 0, %s55
    %s72 = sphi 0, %s56
    %s76 = sphi 0, %s76
    %s78 = sphi 0, %s76
    %s79 = sphi 0, %s78
    %s93 = sphi 0, %s79
    %s97 = sphi 0, %s97
    %s99 = sphi 0, %s97
    %s100 = sphi 0, %s99
    %s114 = sphi 0, %s100
    %s118 = sphi 0, %s118
    %s120 = sphi 0, %s118
    %s121 = sphi 0, %s120
    %s135 = sphi 0, %s121
    %s139 = sphi 0, %s139
    %s141 = sphi 0, %s139
    %s142 = sphi 0, %s141
    %s156 = sphi 0, %s142
    %s162 = sphi 0, %s164
    %s165 = sphi 0, %s162
    %s166 = sphi 0, %s165
    %s182 = sphi 0, %s166
    %s188 = sphi 0, %s190
    %s191 = sphi 0, %s188
    %s192 = sphi 0, %s191
    %s208 = sphi 0, %s192
  $region4: #{_lambda_.6} parent=0 // loop_header_branch
    %19 = sbr.rel (%p17) target = $region8
  $region5: #{_lambda_.6} parent=0 // loop_body
    %s21 = ssub.s32 %s16, 1
    %s22 = ssub.s32 %s16, 2
    %s23 = sadd.s32 %s16, 1
    %s24 = ssub.s32 %s16, %s23
    %p25 = scmp.eq.s32.totalorder %s24, 0
    %s27 = sadd.s32 %s26, 1
    %s28 = scalar_select %p25, %s26, %s27
    %p31 = pneg %p25
    %p32 = scmp.eq.s32.totalorder %s16, 1
    %p33 = por %p31, %p32
    %p34 = scmp.ne.s32.totalorder %s26, %s29
    %p35 = scmp.eq.s32.totalorder %s16, 0
    %p36 = por %p34, %p35
    %p37 = scmp.ne.s32.totalorder %s26, %s29
    %p38 = scmp.eq.s32.totalorder %s21, 1
    %p39 = por %p37, %p38
    %p40 = scmp.ne.s32.totalorder %s29, %s30
    %p41 = scmp.eq.s32.totalorder %s21, 0
    %p42 = por %p40, %p41
    %p43 = scmp.ne.s32.totalorder %s29, %s30
    %p44 = scmp.eq.s32.totalorder %s22, 1
    %p45 = por %p43, %p44
    %p47 = scmp.ne.s32.totalorder %s30, %s46
    %p48 = scmp.eq.s32.totalorder %s22, 0
    %p49 = por %p47, %p48
    %s50 = ssub.s32 %s16, %s23
    %p51 = scmp.eq.s32.totalorder %s50, 0
    %s53 = sadd.s32 %s52, 1
    %s54 = scalar_select %p51, %s52, %s53
    %p57 = pneg %p51
    %p58 = scmp.eq.s32.totalorder %s16, 1
    %p59 = por %p57, %p58
    %p60 = scmp.ne.s32.totalorder %s52, %s55
    %p61 = scmp.eq.s32.totalorder %s16, 0
    %p62 = por %p60, %p61
    %p63 = scmp.ne.s32.totalorder %s52, %s55
    %p64 = scmp.eq.s32.totalorder %s21, 1
    %p65 = por %p63, %p64
    %p66 = scmp.ne.s32.totalorder %s55, %s56
    %p67 = scmp.eq.s32.totalorder %s21, 0
    %p68 = por %p66, %p67
    %p69 = scmp.ne.s32.totalorder %s55, %s56
    %p70 = scmp.eq.s32.totalorder %s22, 1
    %p71 = por %p69, %p70
    %p73 = scmp.ne.s32.totalorder %s56, %s72
    %p74 = scmp.eq.s32.totalorder %s22, 0
    %p75 = por %p73, %p74
    %s77 = sadd.s32 %s76, 1
    %p80 = scmp.eq.s32.totalorder %s16, 1
    %p81 = scmp.ne.s32.totalorder %s76, %s78
    %p82 = scmp.eq.s32.totalorder %s16, 0
    %p83 = por %p81, %p82
    %p84 = scmp.ne.s32.totalorder %s76, %s78
    %p85 = scmp.eq.s32.totalorder %s21, 1
    %p86 = por %p84, %p85
    %p87 = scmp.ne.s32.totalorder %s78, %s79
    %p88 = scmp.eq.s32.totalorder %s21, 0
    %p89 = por %p87, %p88
    %p90 = scmp.ne.s32.totalorder %s78, %s79
    %p91 = scmp.eq.s32.totalorder %s22, 1
    %p92 = por %p90, %p91
    %p94 = scmp.ne.s32.totalorder %s79, %s93
    %p95 = scmp.eq.s32.totalorder %s22, 0
    %p96 = por %p94, %p95
    %s98 = sadd.s32 %s97, 1
    %p101 = scmp.eq.s32.totalorder %s16, 1
    %p102 = scmp.ne.s32.totalorder %s97, %s99
    %p103 = scmp.eq.s32.totalorder %s16, 0
    %p104 = por %p102, %p103
    %p105 = scmp.ne.s32.totalorder %s97, %s99
    %p106 = scmp.eq.s32.totalorder %s21, 1
    %p107 = por %p105, %p106
    %p108 = scmp.ne.s32.totalorder %s99, %s100
    %p109 = scmp.eq.s32.totalorder %s21, 0
    %p110 = por %p108, %p109
    %p111 = scmp.ne.s32.totalorder %s99, %s100
    %p112 = scmp.eq.s32.totalorder %s22, 1
    %p113 = por %p111, %p112
    %p115 = scmp.ne.s32.totalorder %s100, %s114
    %p116 = scmp.eq.s32.totalorder %s22, 0
    %p117 = por %p115, %p116
    %s119 = sadd.s32 %s118, 1
    %p122 = scmp.eq.s32.totalorder %s16, 1
    %p123 = scmp.ne.s32.totalorder %s118, %s120
    %p124 = scmp.eq.s32.totalorder %s16, 0
    %p125 = por %p123, %p124
    %p126 = scmp.ne.s32.totalorder %s118, %s120
    %p127 = scmp.eq.s32.totalorder %s21, 1
    %p128 = por %p126, %p127
    %p129 = scmp.ne.s32.totalorder %s120, %s121
    %p130 = scmp.eq.s32.totalorder %s21, 0
    %p131 = por %p129, %p130
    %p132 = scmp.ne.s32.totalorder %s120, %s121
    %p133 = scmp.eq.s32.totalorder %s22, 1
    %p134 = por %p132, %p133
    %p136 = scmp.ne.s32.totalorder %s121, %s135
    %p137 = scmp.eq.s32.totalorder %s22, 0
    %p138 = por %p136, %p137
    %s140 = sadd.s32 %s139, 1
    %p143 = scmp.eq.s32.totalorder %s16, 1
    %p144 = scmp.ne.s32.totalorder %s139, %s141
    %p145 = scmp.eq.s32.totalorder %s16, 0
    %p146 = por %p144, %p145
    %p147 = scmp.ne.s32.totalorder %s139, %s141
    %p148 = scmp.eq.s32.totalorder %s21, 1
    %p149 = por %p147, %p148
    %p150 = scmp.ne.s32.totalorder %s141, %s142
    %p151 = scmp.eq.s32.totalorder %s21, 0
    %p152 = por %p150, %p151
    %p153 = scmp.ne.s32.totalorder %s141, %s142
    %p154 = scmp.eq.s32.totalorder %s22, 1
    %p155 = por %p153, %p154
    %p157 = scmp.ne.s32.totalorder %s142, %s156
    %p158 = scmp.eq.s32.totalorder %s22, 0
    %p159 = por %p157, %p158
    %s160 = ssub.s32 %s16, %s23
    %p161 = scmp.eq.s32.totalorder %s160, 0
    %s163 = sadd.s32 %s162, 1
    %s164 = scalar_select %p161, %s162, %s163
    %p167 = pneg %p161
    %p168 = scmp.eq.s32.totalorder %s16, 1
    %p169 = por %p167, %p168
    %p170 = scmp.ne.s32.totalorder %s162, %s165
    %p171 = scmp.eq.s32.totalorder %s16, 0
    %p172 = por %p170, %p171
    %p173 = scmp.ne.s32.totalorder %s162, %s165
    %p174 = scmp.eq.s32.totalorder %s21, 1
    %p175 = por %p173, %p174
    %p176 = scmp.ne.s32.totalorder %s165, %s166
    %p177 = scmp.eq.s32.totalorder %s21, 0
    %p178 = por %p176, %p177
    %p179 = scmp.ne.s32.totalorder %s165, %s166
    %p180 = scmp.eq.s32.totalorder %s22, 1
    %p181 = por %p179, %p180
    %p183 = scmp.ne.s32.totalorder %s166, %s182
    %p184 = scmp.eq.s32.totalorder %s22, 0
    %p185 = por %p183, %p184
    %s186 = ssub.s32 %s16, %s23
    %p187 = scmp.eq.s32.totalorder %s186, 0
    %s189 = sadd.s32 %s188, 1
    %s190 = scalar_select %p187, %s188, %s189
    %p193 = pneg %p187
    %p194 = scmp.eq.s32.totalorder %s16, 1
    %p195 = por %p193, %p194
    %p196 = scmp.ne.s32.totalorder %s188, %s191
    %p197 = scmp.eq.s32.totalorder %s16, 0
    %p198 = por %p196, %p197
    %p199 = scmp.ne.s32.totalorder %s188, %s191
    %p200 = scmp.eq.s32.totalorder %s21, 1
    %p201 = por %p199, %p200
    %p202 = scmp.ne.s32.totalorder %s191, %s192
    %p203 = scmp.eq.s32.totalorder %s21, 0
    %p204 = por %p202, %p203
    %p205 = scmp.ne.s32.totalorder %s191, %s192
    %p206 = scmp.eq.s32.totalorder %s22, 1
    %p207 = por %p205, %p206
    %p209 = scmp.ne.s32.totalorder %s192, %s208
    %p210 = scmp.eq.s32.totalorder %s22, 0
    %p211 = por %p209, %p210
    %p212 = scmp.le.s32.totalorder 1, %s16
    %p213 = scmp.lt.s32.totalorder %s16, 3
    %p214 = pnand %p212, %p213
    %p215 = pneg %p214
    // Predicated region
    $region9: #{_lambda_.6} parent=5 // pred_check
      _
    $region10: #{_lambda_.6} parent=5 // pred_check_branch
      %217 = sbr.rel (%p214) target = $region12
    $region11: #{_lambda_.6} parent=5 // pred_region
      %s218 = ssub.s32 %s16, 1
      // Predicated region
      $region13: #{_lambda_.6} parent=11 // pred_check
        %p219 = pneg %p89
      $region14: #{_lambda_.6} parent=11 // pred_check_branch
        %221 = sbr.rel (%p219) target = $region16
      $region15: #{_lambda_.6} parent=11 // pred_region
        _
      $region16: #{_lambda_.6} parent=11 // pred_fallthru
        _
      // Predicated region
      $region17: #{_lambda_.6} parent=11 // pred_check
        %p222 = pneg %p110
      $region18: #{_lambda_.6} parent=11 // pred_check_branch
        %224 = sbr.rel (%p222) target = $region20
      $region19: #{_lambda_.6} parent=11 // pred_region
        _
      $region20: #{_lambda_.6} parent=11 // pred_fallthru
        _
      // Predicated region
      $region21: #{_lambda_.6} parent=11 // pred_check
        %p225 = pneg %p131
      $region22: #{_lambda_.6} parent=11 // pred_check_branch
        %227 = sbr.rel (%p225) target = $region24
      $region23: #{_lambda_.6} parent=11 // pred_region
        _
      $region24: #{_lambda_.6} parent=11 // pred_fallthru
        _
      // Predicated region
      $region25: #{_lambda_.6} parent=11 // pred_check
        %p228 = pneg %p152
      $region26: #{_lambda_.6} parent=11 // pred_check_branch
        %230 = sbr.rel (%p228) target = $region28
      $region27: #{_lambda_.6} parent=11 // pred_region
        _
      $region28: #{_lambda_.6} parent=11 // pred_fallthru
        _
    $region12: #{_lambda_.6} parent=5 // pred_fallthru
      _
    %p231 = scmp.lt.s32.totalorder %s16, 2
    // Predicated region
    $region29: #{_lambda_.6} parent=5 // pred_check
      %p232 = pneg %p231
    $region30: #{_lambda_.6} parent=5 // pred_check_branch
      %234 = sbr.rel (%p232) target = $region32
    $region31: #{_lambda_.6} parent=5 // pred_region
      // Predicated region
      $region33: #{_lambda_.6} parent=31 // pred_check
        %p235 = pneg %p36
      $region34: #{_lambda_.6} parent=31 // pred_check_branch
        %237 = sbr.rel (%p235) target = $region36
      $region35: #{_lambda_.6} parent=31 // pred_region
        %p238 = scmp.lt.s32.totalorder %s16, 1
        %s239 = scalar_select %p238, %s16, 1
        %s240 = smul.addr %s239, 2
        %s241 = smul.addr %s240, 8
        %s242 = scalar_lea.vmem %s0, %s241
      $region36: #{_lambda_.6} parent=31 // pred_fallthru
        _
      // Predicated region
      $region37: #{_lambda_.6} parent=31 // pred_check
        %p243 = pneg %p62
      $region38: #{_lambda_.6} parent=31 // pred_check_branch
        %245 = sbr.rel (%p243) target = $region40
      $region39: #{_lambda_.6} parent=31 // pred_region
        %p246 = scmp.lt.s32.totalorder %s16, 1
        %s247 = scalar_select %p246, %s16, 1
        %s248 = smul.addr %s247, 2
        %s249 = smul.addr %s248, 4
        %s250 = scalar_lea.vmem %s1, %s249
      $region40: #{_lambda_.6} parent=31 // pred_fallthru
        _
    $region32: #{_lambda_.6} parent=5 // pred_fallthru
      _
    %p251 = scmp.le.s32.totalorder 1, %s16
    %p252 = scmp.lt.s32.totalorder %s16, 3
    %p253 = pnand %p251, %p252
    %p254 = pneg %p253
    // Predicated region
    $region41: #{_lambda_.6} parent=5 // pred_check
      _
    $region42: #{_lambda_.6} parent=5 // pred_check_branch
      %256 = sbr.rel (%p253) target = $region44
    $region43: #{_lambda_.6} parent=5 // pred_region
      %s257 = ssub.s32 %s16, 1
      %p258 = scmp.lt.s32.totalorder %s21, 1
      %s259 = scalar_select %p258, %s21, 1
      %s260 = smul.addr %s259, 2
      %s261 = smul.addr %s260, 8
      %s262 = scalar_lea.vmem %s0, %s261
      %p263 = pneg %p42
      %p264 = pneg %p39
      %p265 = scmp.lt.s32.totalorder %s21, 1
      %s266 = scalar_select %p265, %s21, 1
      %s267 = smul.addr %s266, 2
      %s268 = smul.addr %s267, 4
      %s269 = scalar_lea.vmem %s1, %s268
      %p270 = pneg %p68
      %p271 = pneg %p65
      %p272 = pneg %p89
      %p273 = pneg %p86
      %p274 = pneg %p110
      %p275 = pneg %p107
      %p276 = pneg %p131
      %p277 = pneg %p128
      %p278 = pneg %p152
      %p279 = pneg %p149
      %p280 = pneg %p178
      %p281 = pneg %p175
      %p282 = scmp.lt.s32.totalorder %s21, 1
      %s283 = scalar_select %p282, %s21, 1
      %s284 = smul.addr %s283, 8
      %s285 = scalar_lea.vmem %s6, %s284
      %p286 = pneg %p204
      %p287 = pneg %p201
      %p288 = scmp.lt.s32.totalorder %s21, 1
      %s289 = scalar_select %p288, %s21, 1
      %s290 = smul.addr %s289, 4
      %s291 = scalar_lea.vmem %s7, %s290
      %p292 = scmp.lt.s32.totalorder %s21, 1
      %s293 = scalar_select %p292, %s21, 1
      %s294 = smul.addr %s293, 2
      %s295 = smul.addr %s294, 8
      %s296 = scalar_lea.vmem %s0, %s295
      %p297 = scmp.lt.s32.totalorder %s21, 1
      %s298 = scalar_select %p297, %s21, 1
      %s299 = smul.addr %s298, 2
      %s300 = smul.addr %s299, 4
      %s301 = scalar_lea.vmem %s1, %s300
      %p302 = scmp.lt.s32.totalorder %s21, 1
      %s303 = scalar_select %p302, %s21, 1
      %s304 = smul.addr %s303, 8
      %s305 = scalar_lea.vmem %s6, %s304
      %p306 = scmp.lt.s32.totalorder %s21, 1
      %s307 = scalar_select %p306, %s21, 1
      %s308 = smul.addr %s307, 4
      %s309 = scalar_lea.vmem %s7, %s308
      %v312 = vld [vmem:[%s296] sm:$0xff]
      %v313 = vld [vmem:[%s296 + $0x8] sm:$0xf]
      %v314 = vpack.c.bf16 %v313, %v312
      %v315 = vld [vmem:[%s301] sm:$0xf]
      %v316 = vld [vmem:[%s301 + $0x4] sm:$0x3]
      %v319 = vunpack.c.l.b16 %v315
      %v320 = vunpack.c.l.b16 %v316
      %v321 = vpack.c.b16 %v320, %v319
      %vm322 = vcmask 97280
      %v324 = vsel %vm322, %v314, 0
      %vm326 = vcmask 1045504
      %v328 = vsel %vm326, %v321, 0
      %330 = vmatprep.subr.bf16.mxu0 0
      %331 = vmatpush1.bf16.msra.mxu0 0
      %332 = vmatprep.subr.bf16.mxu0 0
      %333 = vmatpush1.bf16.msra.mxu0 0
      %334 = vmatprep.subr.bf16.mxu0 0
      %335 = vmatpush1.bf16.msra.mxu0 0
      %336 = vmatprep.subr.bf16.mxu0 0
      %337 = vmatpush1.bf16.msra.mxu0 0
      %338 = vmatprep.subr.bf16.mxu0 0
      %339 = vmatpush1.bf16.msra.mxu0 0
      %340 = vmatprep.subr.bf16.mxu0 0
      %341 = vmatpush1.bf16.msra.mxu0 0
      %342 = vmatprep.subr.bf16.mxu0 0
      %343 = vmatpush1.bf16.msra.mxu0 0
      %344 = vmatprep.subr.bf16.mxu0 0
      %345 = vmatpush1.bf16.msra.mxu0 %v328
      %346 = vmatprep.subr.bf16.mxu0 0
      %347 = vmatpush2.bf16.msra.mxu0 0
      %348 = vmatprep.subr.bf16.mxu0 0
      %349 = vmatpush2.bf16.msra.mxu0 0
      %350 = vmatprep.subr.bf16.mxu0 0
      %351 = vmatpush2.bf16.msra.mxu0 0
      %352 = vmatprep.subr.bf16.mxu0 0
      %353 = vmatpush2.bf16.msra.mxu0 0
      %354 = vmatprep.subr.bf16.mxu0 0
      %355 = vmatpush2.bf16.msra.mxu0 0
      %356 = vmatprep.subr.bf16.mxu0 0
      %357 = vmatpush2.bf16.msra.mxu0 0
      %358 = vmatprep.subr.bf16.mxu0 0
      %359 = vmatpush2.bf16.msra.mxu0 0
      %360 = vmatprep.subr.bf16.mxu0 0
      %361 = vmatpush2.bf16.msra.mxu0 0
      %362 = vmatprep.mubr.bf16.mxu0 0
      %363 = vmatmul.mubr.bf16.gmra.mxu0 %v324
      %v364 = vpop.f32.mrf.mxu0
      %v365 = vadd.f32 0.0, %v364
      %v366 = vpop.f32.mrf.mxu0
      %v367 = vpop.f32.mrf.mxu0
      %v368 = vadd.f32 0.0, %v367
      %v369 = vpop.f32.mrf.mxu0
      %370 = vdwg.mxu0
      %v371 = vpack.c.bf16 %v368, %v365
      %v372 = vld [vmem:[%s2] sm:$0xf]
      %v373 = vld [vmem:[%s2 + $0x4] sm:$0xf]
      %v374 = vld [vmem:[%s2 + $0x8] sm:$0xf]
      %v375 = vld [vmem:[%s2 + $0xc] sm:$0xf]
      %v376 = vld [vmem:[%s3] sm:$0x1]
      %v378 = vlaneseq
      %v379 = vshrl.u32 %v378, 7
      %v380 = vsub.s32 0, %v379
      %v381 = vrot.slane %v376, %v380
      %v387 = vunpack.c.l.b16 %v372
      %v388 = vunpack.c.l.b16 %v373
      %v389 = vunpack.c.l.b16 %v374
      %v390 = vunpack.c.l.b16 %v375
      %v391 = vpack.c.b16 %v388, %v387
      %v392 = vpack.c.b16 %v390, %v389
      %vm395 = vcmask 261120
      %v397 = vsel %vm395, %v371, 0
      %399 = vmatprep.subr.bf16.mxu0 0
      %400 = vmatpush1.bf16.msra.mxu0 0
      %401 = vmatprep.subr.bf16.mxu0 0
      %402 = vmatpush1.bf16.msra.mxu0 0
      %403 = vmatprep.subr.bf16.mxu0 0
      %404 = vmatpush1.bf16.msra.mxu0 0
      %405 = vmatprep.subr.bf16.mxu0 0
      %406 = vmatpush1.bf16.msra.mxu0 0
      %407 = vmatprep.subr.bf16.mxu0 0
      %408 = vmatpush1.bf16.msra.mxu0 0
      %409 = vmatprep.subr.bf16.mxu0 0
      %410 = vmatpush1.bf16.msra.mxu0 0
      %411 = vmatprep.subr.bf16.mxu0 0
      %412 = vmatpush1.bf16.msra.mxu0 %v392
      %413 = vmatprep.subr.bf16.mxu0 0
      %414 = vmatpush1.bf16.msra.mxu0 %v391
      %415 = vmatprep.subr.bf16.mxu0 0
      %416 = vmatpush2.bf16.msra.mxu0 0
      %417 = vmatprep.subr.bf16.mxu0 0
      %418 = vmatpush2.bf16.msra.mxu0 0
      %419 = vmatprep.subr.bf16.mxu0 0
      %420 = vmatpush2.bf16.msra.mxu0 0
      %421 = vmatprep.subr.bf16.mxu0 0
      %422 = vmatpush2.bf16.msra.mxu0 0
      %423 = vmatprep.subr.bf16.mxu0 0
      %424 = vmatpush2.bf16.msra.mxu0 0
      %425 = vmatprep.subr.bf16.mxu0 0
      %426 = vmatpush2.bf16.msra.mxu0 0
      %427 = vmatprep.subr.bf16.mxu0 0
      %428 = vmatpush2.bf16.msra.mxu0 0
      %429 = vmatprep.subr.bf16.mxu0 0
      %430 = vmatpush2.bf16.msra.mxu0 0
      %431 = vmatprep.mubr.bf16.mxu0 0
      %432 = vmatmul.mubr.bf16.gmra.mxu0 %v397
      %v433 = vpop.f32.mrf.mxu0
      %v434 = vadd.f32 %v381, %v433
      %v435 = vpop.f32.mrf.mxu0
      %v436 = vpop.f32.mrf.mxu0
      %v437 = vadd.f32 %v381, %v436
      %v438 = vpop.f32.mrf.mxu0
      %439 = vdwg.mxu0
      %v440 = vmax.f32 %v434, 0.0
      %v441 = vmax.f32 %v437, 0.0
      %v442 = vld [vmem:[%s4] sm:$0x1]
      %v443 = vld [vmem:[#allocation2] sm:$0x1]
      %445 = vset.pattern.permute.xlu0 0
      %446 = vperm.xlu0 %445, %v443
      %v447 = vpop.permute.xlu0 %446
      %v449 = vlaneseq
      %v450 = vshrl.u32 %v449, 7
      %v451 = vsub.s32 0, %v450
      %v452 = vrot.slane %v447, %v451
      %v454 = vsel %vm395, %v442, 0
      %v457 = vsel %vm395, %v440, 0
      %v460 = vsel %vm395, %v441, 0
      %462 = vmatprep.subr.mxu0 0.0
      %463 = vmatpush1.xpose.msra.mxu0 0.0
      %464 = vmatprep.subr.mxu0 0.0
      %465 = vmatpush1.xpose.msra.mxu0 0.0
      %466 = vmatprep.subr.mxu0 0.0
      %467 = vmatpush1.xpose.msra.mxu0 0.0
      %468 = vmatprep.subr.mxu0 0.0
      %469 = vmatpush1.xpose.msra.mxu0 0.0
      %470 = vmatprep.subr.mxu0 0.0
      %471 = vmatpush1.xpose.msra.mxu0 0.0
      %472 = vmatprep.subr.mxu0 0.0
      %473 = vmatpush1.xpose.msra.mxu0 0.0
      %474 = vmatprep.subr.mxu0 0.0
      %475 = vmatpush1.xpose.msra.mxu0 0.0
      %476 = vmatprep.subr.mxu0 0.0
      %477 = vmatpush1.xpose.msra.mxu0 0.0
      %478 = vmatprep.subr.mxu0 0.0
      %479 = vmatpush1.xpose.msra.mxu0 0.0
      %480 = vmatprep.subr.mxu0 0.0
      %481 = vmatpush1.xpose.msra.mxu0 0.0
      %482 = vmatprep.subr.mxu0 0.0
      %483 = vmatpush1.xpose.msra.mxu0 0.0
      %484 = vmatprep.subr.mxu0 0.0
      %485 = vmatpush1.xpose.msra.mxu0 0.0
      %486 = vmatprep.subr.mxu0 0.0
      %487 = vmatpush1.xpose.msra.mxu0 0.0
      %488 = vmatprep.subr.mxu0 0.0
      %489 = vmatpush1.xpose.msra.mxu0 0.0
      %490 = vmatprep.subr.mxu0 0.0
      %491 = vmatpush1.xpose.msra.mxu0 %v460
      %492 = vmatprep.subr.mxu0 0.0
      %493 = vmatpush1.xpose.msra.mxu0 %v457
      %494 = vmatprep.subr.mxu0 0.0
      %495 = vmatpush2.xpose.msra.mxu0 0.0
      %496 = vmatprep.subr.mxu0 0.0
      %497 = vmatpush2.xpose.msra.mxu0 0.0
      %498 = vmatprep.subr.mxu0 0.0
      %499 = vmatpush2.xpose.msra.mxu0 0.0
      %500 = vmatprep.subr.mxu0 0.0
      %501 = vmatpush2.xpose.msra.mxu0 0.0
      %502 = vmatprep.subr.mxu0 0.0
      %503 = vmatpush2.xpose.msra.mxu0 0.0
      %504 = vmatprep.subr.mxu0 0.0
      %505 = vmatpush2.xpose.msra.mxu0 0.0
      %506 = vmatprep.subr.mxu0 0.0
      %507 = vmatpush2.xpose.msra.mxu0 0.0
      %508 = vmatprep.subr.mxu0 0.0
      %509 = vmatpush2.xpose.msra.mxu0 0.0
      %510 = vmatprep.subr.mxu0 0.0
      %511 = vmatpush2.xpose.msra.mxu0 0.0
      %512 = vmatprep.subr.mxu0 0.0
      %513 = vmatpush2.xpose.msra.mxu0 0.0
      %514 = vmatprep.subr.mxu0 0.0
      %515 = vmatpush2.xpose.msra.mxu0 0.0
      %516 = vmatprep.subr.mxu0 0.0
      %517 = vmatpush2.xpose.msra.mxu0 0.0
      %518 = vmatprep.subr.mxu0 0.0
      %519 = vmatpush2.xpose.msra.mxu0 0.0
      %520 = vmatprep.subr.mxu0 0.0
      %521 = vmatpush2.xpose.msra.mxu0 0.0
      %522 = vmatprep.subr.mxu0 0.0
      %523 = vmatpush2.xpose.msra.mxu0 0.0
      %524 = vmatprep.subr.mxu0 0.0
      %525 = vmatpush2.xpose.msra.mxu0 0.0
      %526 = vmatprep.mubr.f32.mxu0 0.0
      %527 = vmatmul.mubr.f32.gmra.mxu0 %v454
      %v528 = vpop.f32.mrf.mxu0
      %v529 = vadd.f32 %v452, %v528
      %v530 = vpop.f32.mrf.mxu0
      %531 = vdwg.mxu0
      %v532 = vxor.u32 %v529, 2147483648
      %v533 = vmul.f32 %v532, 1.442695
      %v534 = vpow.pop %v533
      %v535 = vadd.f32 %v534, 1.0
      %v536 = vrcp.pop %v535
      %v537 = vmul.f32 1.0, %v536
      %v538 = vlaneseq
      %v539 = vand.u32 %v538, 127
      %v540 = vlaneseq
      %v541 = vshrl.u32 %v540, 7
      %vm542 = vcmask 90112
      %v543 = vsel %vm542, %v537, -inf
      %544 = vmax.xlane.f32.xlu0 %v543
      %v545 = vpop.xlane.xlu0 %544
      %vm546 = vcmp.ge.f32.partialorder %v537, %v545
      %v547 = vsel %vm546, %v539, 12
      %v548 = vsel %vm542, %v547, 2147483647
      %v549 = vand.u32 %v548, 65535
      %v550 = vshra.s32 %v548, 16
      %v551 = vcvt.s32.f32 %v549
      %v552 = vcvt.s32.f32 %v550
      %553 = vmin.xlane.f32.xlu0 %v552
      %v554 = vpop.xlane.xlu0 %553
      %vm555 = vcmp.eq.f32.partialorder %v552, %v554
      %v556 = vsel %vm555, %v551, inf
      %557 = vmin.xlane.f32.xlu0 %v556
      %v558 = vpop.xlane.xlu0 %557
      %v559 = vcvt.f32.s32 %v558
      %v560 = vcvt.f32.s32 %v554
      %v561 = vshll.u32 %v560, 16
      %v562 = vadd.s32 %v561, %v559
      %vm563 = vcmp.eq.s32.totalorder %v539, %v562
      %v564 = vsel %vm563, 1, 0
      %v565 = vcvt.s32.f32 %v564
      %vm566 = vcmp.eq.s32.totalorder %v541, 0
      %v567 = vsel %vm566, 1, 0
      %vm568 = vcmp.eq.s32.totalorder %v567, 1
      %v569 = vlaneseq
      %v570 = vshrl.u32 %v569, 7
      %v571 = vsub.s32 0, %v570
      %v572 = vrot.slane %v565, %v571
      %v573 = vsel %vm568, %v572, 0.0
      %v574 = vsel %vm563, -1.0, %v537
      %v575 = vsel %vm542, %v574, -inf
      %576 = vmax.xlane.f32.xlu0 %v575
      %v577 = vpop.xlane.xlu0 %576
      %vm578 = vcmp.ge.f32.partialorder %v574, %v577
      %v579 = vsel %vm578, %v539, 12
      %v580 = vsel %vm542, %v579, 2147483647
      %v581 = vand.u32 %v580, 65535
      %v582 = vshra.s32 %v580, 16
      %v583 = vcvt.s32.f32 %v581
      %v584 = vcvt.s32.f32 %v582
      %585 = vmin.xlane.f32.xlu0 %v584
      %v586 = vpop.xlane.xlu0 %585
      %vm587 = vcmp.eq.f32.partialorder %v584, %v586
      %v588 = vsel %vm587, %v583, inf
      %589 = vmin.xlane.f32.xlu0 %v588
      %v590 = vpop.xlane.xlu0 %589
      %v591 = vcvt.f32.s32 %v590
      %v592 = vcvt.f32.s32 %v586
      %v593 = vshll.u32 %v592, 16
      %v594 = vadd.s32 %v593, %v591
      %vm595 = vcmp.eq.s32.totalorder %v539, %v594
      %v596 = vsel %vm595, 1, 0
      %v597 = vcvt.s32.f32 %v596
      %vm598 = vcmp.eq.s32.totalorder %v541, 1
      %v599 = vsel %vm598, 1, 0
      %vm600 = vcmp.eq.s32.totalorder %v599, 1
      %v601 = vlaneseq
      %v602 = vshrl.u32 %v601, 7
      %v603 = vsub.s32 0, %v602
      %v604 = vrot.slane %v597, %v603
      %v605 = vsel %vm600, %v604, %v573
      %v606 = vsel %vm595, -1.0, %v574
      %v607 = vsel %vm542, %v606, -inf
      %608 = vmax.xlane.f32.xlu0 %v607
      %v609 = vpop.xlane.xlu0 %608
      %vm610 = vcmp.ge.f32.partialorder %v606, %v609
      %v611 = vsel %vm610, %v539, 12
      %v612 = vsel %vm542, %v611, 2147483647
      %v613 = vand.u32 %v612, 65535
      %v614 = vshra.s32 %v612, 16
      %v615 = vcvt.s32.f32 %v613
      %v616 = vcvt.s32.f32 %v614
      %617 = vmin.xlane.f32.xlu0 %v616
      %v618 = vpop.xlane.xlu0 %617
      %vm619 = vcmp.eq.f32.partialorder %v616, %v618
      %v620 = vsel %vm619, %v615, inf
      %621 = vmin.xlane.f32.xlu0 %v620
      %v622 = vpop.xlane.xlu0 %621
      %v623 = vcvt.f32.s32 %v622
      %v624 = vcvt.f32.s32 %v618
      %v625 = vshll.u32 %v624, 16
      %v626 = vadd.s32 %v625, %v623
      %vm627 = vcmp.eq.s32.totalorder %v539, %v626
      %v628 = vsel %vm627, 1, 0
      %v629 = vcvt.s32.f32 %v628
      %vm630 = vcmp.eq.s32.totalorder %v541, 2
      %v631 = vsel %vm630, 1, 0
      %vm632 = vcmp.eq.s32.totalorder %v631, 1
      %v633 = vlaneseq
      %v634 = vshrl.u32 %v633, 7
      %v635 = vsub.s32 0, %v634
      %v636 = vrot.slane %v629, %v635
      %v637 = vsel %vm632, %v636, %v605
      %v638 = vsel %vm627, -1.0, %v606
      %v639 = vsel %vm542, %v638, -inf
      %640 = vmax.xlane.f32.xlu0 %v639
      %v641 = vpop.xlane.xlu0 %640
      %vm642 = vcmp.ge.f32.partialorder %v638, %v641
      %v643 = vsel %vm642, %v539, 12
      %v644 = vsel %vm542, %v643, 2147483647
      %v645 = vand.u32 %v644, 65535
      %v646 = vshra.s32 %v644, 16
      %v647 = vcvt.s32.f32 %v645
      %v648 = vcvt.s32.f32 %v646
      %649 = vmin.xlane.f32.xlu0 %v648
      %v650 = vpop.xlane.xlu0 %649
      %vm651 = vcmp.eq.f32.partialorder %v648, %v650
      %v652 = vsel %vm651, %v647, inf
      %653 = vmin.xlane.f32.xlu0 %v652
      %v654 = vpop.xlane.xlu0 %653
      %v655 = vcvt.f32.s32 %v654
      %v656 = vcvt.f32.s32 %v650
      %v657 = vshll.u32 %v656, 16
      %v658 = vadd.s32 %v657, %v655
      %vm659 = vcmp.eq.s32.totalorder %v539, %v658
      %v660 = vsel %vm659, 1, 0
      %v661 = vcvt.s32.f32 %v660
      %vm662 = vcmp.eq.s32.totalorder %v541, 3
      %v663 = vsel %vm662, 1, 0
      %vm664 = vcmp.eq.s32.totalorder %v663, 1
      %v665 = vlaneseq
      %v666 = vshrl.u32 %v665, 7
      %v667 = vsub.s32 0, %v666
      %v668 = vrot.slane %v661, %v667
      %v669 = vsel %vm664, %v668, %v637
      %v670 = vsel %vm659, -1.0, %v638
      %v671 = vsel %vm542, %v670, -inf
      %672 = vmax.xlane.f32.xlu0 %v671
      %v673 = vpop.xlane.xlu0 %672
      %vm674 = vcmp.ge.f32.partialorder %v670, %v673
      %v675 = vsel %vm674, %v539, 12
      %v676 = vsel %vm542, %v675, 2147483647
      %v677 = vand.u32 %v676, 65535
      %v678 = vshra.s32 %v676, 16
      %v679 = vcvt.s32.f32 %v677
      %v680 = vcvt.s32.f32 %v678
      %681 = vmin.xlane.f32.xlu0 %v680
      %v682 = vpop.xlane.xlu0 %681
      %vm683 = vcmp.eq.f32.partialorder %v680, %v682
      %v684 = vsel %vm683, %v679, inf
      %685 = vmin.xlane.f32.xlu0 %v684
      %v686 = vpop.xlane.xlu0 %685
      %v687 = vcvt.f32.s32 %v686
      %v688 = vcvt.f32.s32 %v682
      %v689 = vshll.u32 %v688, 16
      %v690 = vadd.s32 %v689, %v687
      %vm691 = vcmp.eq.s32.totalorder %v539, %v690
      %v692 = vsel %vm691, 1, 0
      %v693 = vcvt.s32.f32 %v692
      %vm694 = vcmp.eq.s32.totalorder %v541, 4
      %v695 = vsel %vm694, 1, 0
      %vm696 = vcmp.eq.s32.totalorder %v695, 1
      %v697 = vlaneseq
      %v698 = vshrl.u32 %v697, 7
      %v699 = vsub.s32 0, %v698
      %v700 = vrot.slane %v693, %v699
      %v701 = vsel %vm696, %v700, %v669
      %v702 = vsel %vm691, -1.0, %v670
      %v703 = vsel %vm542, %v702, -inf
      %704 = vmax.xlane.f32.xlu0 %v703
      %v705 = vpop.xlane.xlu0 %704
      %vm706 = vcmp.ge.f32.partialorder %v702, %v705
      %v707 = vsel %vm706, %v539, 12
      %v708 = vsel %vm542, %v707, 2147483647
      %v709 = vand.u32 %v708, 65535
      %v710 = vshra.s32 %v708, 16
      %v711 = vcvt.s32.f32 %v709
      %v712 = vcvt.s32.f32 %v710
      %713 = vmin.xlane.f32.xlu0 %v712
      %v714 = vpop.xlane.xlu0 %713
      %vm715 = vcmp.eq.f32.partialorder %v712, %v714
      %v716 = vsel %vm715, %v711, inf
      %717 = vmin.xlane.f32.xlu0 %v716
      %v718 = vpop.xlane.xlu0 %717
      %v719 = vcvt.f32.s32 %v718
      %v720 = vcvt.f32.s32 %v714
      %v721 = vshll.u32 %v720, 16
      %v722 = vadd.s32 %v721, %v719
      %vm723 = vcmp.eq.s32.totalorder %v539, %v722
      %v724 = vsel %vm723, 1, 0
      %v725 = vcvt.s32.f32 %v724
      %vm726 = vcmp.eq.s32.totalorder %v541, 5
      %v727 = vsel %vm726, 1, 0
      %vm728 = vcmp.eq.s32.totalorder %v727, 1
      %v729 = vlaneseq
      %v730 = vshrl.u32 %v729, 7
      %v731 = vsub.s32 0, %v730
      %v732 = vrot.slane %v725, %v731
      %v733 = vsel %vm728, %v732, %v701
      %v734 = vsel %vm723, -1.0, %v702
      %v735 = vsel %vm542, %v734, -inf
      %736 = vmax.xlane.f32.xlu0 %v735
      %v737 = vpop.xlane.xlu0 %736
      %vm738 = vcmp.ge.f32.partialorder %v734, %v737
      %v739 = vsel %vm738, %v539, 12
      %v740 = vsel %vm542, %v739, 2147483647
      %v741 = vand.u32 %v740, 65535
      %v742 = vshra.s32 %v740, 16
      %v743 = vcvt.s32.f32 %v741
      %v744 = vcvt.s32.f32 %v742
      %745 = vmin.xlane.f32.xlu0 %v744
      %v746 = vpop.xlane.xlu0 %745
      %vm747 = vcmp.eq.f32.partialorder %v744, %v746
      %v748 = vsel %vm747, %v743, inf
      %749 = vmin.xlane.f32.xlu0 %v748
      %v750 = vpop.xlane.xlu0 %749
      %v751 = vcvt.f32.s32 %v750
      %v752 = vcvt.f32.s32 %v746
      %v753 = vshll.u32 %v752, 16
      %v754 = vadd.s32 %v753, %v751
      %vm755 = vcmp.eq.s32.totalorder %v539, %v754
      %v756 = vsel %vm755, 1, 0
      %v757 = vcvt.s32.f32 %v756
      %vm758 = vcmp.eq.s32.totalorder %v541, 6
      %v759 = vsel %vm758, 1, 0
      %vm760 = vcmp.eq.s32.totalorder %v759, 1
      %v761 = vlaneseq
      %v762 = vshrl.u32 %v761, 7
      %v763 = vsub.s32 0, %v762
      %v764 = vrot.slane %v757, %v763
      %v765 = vsel %vm760, %v764, %v733
      %v767 = vsel %vm322, %v765, 0
      %vm769 = vcmask 1043456
      %v770 = vsel %vm769, %v441, 0
      %772 = vmatprep.subr.mxu0 0.0
      %773 = vmatpush1.msra.mxu0 0.0
      %774 = vmatprep.subr.mxu0 0.0
      %775 = vmatpush1.msra.mxu0 0.0
      %776 = vmatprep.subr.mxu0 0.0
      %777 = vmatpush1.msra.mxu0 0.0
      %778 = vmatprep.subr.mxu0 0.0
      %779 = vmatpush1.msra.mxu0 0.0
      %780 = vmatprep.subr.mxu0 0.0
      %781 = vmatpush1.msra.mxu0 0.0
      %782 = vmatprep.subr.mxu0 0.0
      %783 = vmatpush1.msra.mxu0 0.0
      %784 = vmatprep.subr.mxu0 0.0
      %785 = vmatpush1.msra.mxu0 0.0
      %786 = vmatprep.subr.mxu0 0.0
      %787 = vmatpush1.msra.mxu0 0.0
      %788 = vmatprep.subr.mxu0 0.0
      %789 = vmatpush1.msra.mxu0 0.0
      %790 = vmatprep.subr.mxu0 0.0
      %791 = vmatpush1.msra.mxu0 0.0
      %792 = vmatprep.subr.mxu0 0.0
      %793 = vmatpush1.msra.mxu0 0.0
      %794 = vmatprep.subr.mxu0 0.0
      %795 = vmatpush1.msra.mxu0 0.0
      %796 = vmatprep.subr.mxu0 0.0
      %797 = vmatpush1.msra.mxu0 0.0
      %798 = vmatprep.subr.mxu0 0.0
      %799 = vmatpush1.msra.mxu0 0.0
      %800 = vmatprep.subr.mxu0 0.0
      %801 = vmatpush1.msra.mxu0 %v770
      %802 = vmatprep.subr.mxu0 0.0
      %803 = vmatpush1.msra.mxu0 %v440
      %804 = vmatprep.subr.mxu0 0.0
      %805 = vmatpush2.msra.mxu0 0.0
      %806 = vmatprep.subr.mxu0 0.0
      %807 = vmatpush2.msra.mxu0 0.0
      %808 = vmatprep.subr.mxu0 0.0
      %809 = vmatpush2.msra.mxu0 0.0
      %810 = vmatprep.subr.mxu0 0.0
      %811 = vmatpush2.msra.mxu0 0.0
      %812 = vmatprep.subr.mxu0 0.0
      %813 = vmatpush2.msra.mxu0 0.0
      %814 = vmatprep.subr.mxu0 0.0
      %815 = vmatpush2.msra.mxu0 0.0
      %816 = vmatprep.subr.mxu0 0.0
      %817 = vmatpush2.msra.mxu0 0.0
      %818 = vmatprep.subr.mxu0 0.0
      %819 = vmatpush2.msra.mxu0 0.0
      %820 = vmatprep.subr.mxu0 0.0
      %821 = vmatpush2.msra.mxu0 0.0
      %822 = vmatprep.subr.mxu0 0.0
      %823 = vmatpush2.msra.mxu0 0.0
      %824 = vmatprep.subr.mxu0 0.0
      %825 = vmatpush2.msra.mxu0 0.0
      %826 = vmatprep.subr.mxu0 0.0
      %827 = vmatpush2.msra.mxu0 0.0
      %828 = vmatprep.subr.mxu0 0.0
      %829 = vmatpush2.msra.mxu0 0.0
      %830 = vmatprep.subr.mxu0 0.0
      %831 = vmatpush2.msra.mxu0 0.0
      %832 = vmatprep.subr.mxu0 0.0
      %833 = vmatpush2.msra.mxu0 0.0
      %834 = vmatprep.subr.mxu0 0.0
      %835 = vmatpush2.msra.mxu0 0.0
      %836 = vmatprep.mubr.f32.mxu0 0.0
      %837 = vmatmul.mubr.f32.gmra.mxu0 %v767
      %v838 = vpop.f32.mrf.mxu0
      %v839 = vadd.f32 0.0, %v838
      %v840 = vpop.f32.mrf.mxu0
      %841 = vdwg.mxu0
      %v842 = vlaneseq
      %v843 = vshrl.u32 %v842, 7
      %v844 = vsub.s32 0, %v843
      %v845 = vrot.slane %v537, %v844
      %v846 = vmul.f32 %v765, %v845
      %vm847 = vcmask 96256
      %v848 = vsel %vm847, %v846, 0.0
      %849 = vadd.xlane.f32.xlu0 %v848
      %v850 = vpop.xlane.xlu0 %849
      %v851 = vmul.f32 %v839, %v850
      %v852 = vpack.c.bf16 %v851, %v851
      %vm853 = vcmask 257024
      %vm854 = vsmask.f32 3328
      %vm855 = vmand %vm853, %vm854
      %v856 = vld [vmem:[%s309] sm:$0xf]
      %v857 = vsel %vm855, %v852, %v856
      %858 = vst [vmem:[%s309] sm:$0xf] %v857
      %vm859 = vcmp.ne.f32.partialorder %v312, 0.0
      %vm860 = vcmp.ne.f32.partialorder %v313, 0.0
      %v861 = vsel %vm859, 1, 0
      %v862 = vsel %vm860, 1, 0
      %v863 = vcvt.s32.f32 %v861
      %v864 = vcvt.s32.f32 %v862
      %v865 = vpack.c.bf16 %v864, %v863
      %v867 = vsel %vm322, %v865, 0
      %v869 = vsel %vm326, %v865, 0
      %871 = vmatprep.subr.bf16.mxu0 0
      %872 = vmatpush1.bf16.msra.mxu0 0
      %873 = vmatprep.subr.bf16.mxu0 0
      %874 = vmatpush1.bf16.msra.mxu0 0
      %875 = vmatprep.subr.bf16.mxu0 0
      %876 = vmatpush1.bf16.msra.mxu0 0
      %877 = vmatprep.subr.bf16.mxu0 0
      %878 = vmatpush1.bf16.msra.mxu0 0
      %879 = vmatprep.subr.bf16.mxu0 0
      %880 = vmatpush1.bf16.msra.mxu0 0
      %881 = vmatprep.subr.bf16.mxu0 0
      %882 = vmatpush1.bf16.msra.mxu0 0
      %883 = vmatprep.subr.bf16.mxu0 0
      %884 = vmatpush1.bf16.msra.mxu0 0
      %885 = vmatprep.subr.bf16.mxu0 0
      %886 = vmatpush1.bf16.msra.mxu0 %v869
      %887 = vmatprep.subr.bf16.mxu0 0
      %888 = vmatpush2.bf16.msra.mxu0 0
      %889 = vmatprep.subr.bf16.mxu0 0
      %890 = vmatpush2.bf16.msra.mxu0 0
      %891 = vmatprep.subr.bf16.mxu0 0
      %892 = vmatpush2.bf16.msra.mxu0 0
      %893 = vmatprep.subr.bf16.mxu0 0
      %894 = vmatpush2.bf16.msra.mxu0 0
      %895 = vmatprep.subr.bf16.mxu0 0
      %896 = vmatpush2.bf16.msra.mxu0 0
      %897 = vmatprep.subr.bf16.mxu0 0
      %898 = vmatpush2.bf16.msra.mxu0 0
      %899 = vmatprep.subr.bf16.mxu0 0
      %900 = vmatpush2.bf16.msra.mxu0 0
      %901 = vmatprep.subr.bf16.mxu0 0
      %902 = vmatpush2.bf16.msra.mxu0 0
      %903 = vmatprep.mubr.bf16.mxu0 0
      %904 = vmatmul.mubr.bf16.gmra.mxu0 %v867
      %v905 = vpop.f32.mrf.mxu0
      %v906 = vadd.f32 0.0, %v905
      %v907 = vpop.f32.mrf.mxu0
      %v908 = vpop.f32.mrf.mxu0
      %v909 = vadd.f32 0.0, %v908
      %v910 = vpop.f32.mrf.mxu0
      %911 = vdwg.mxu0
      %vm912 = vcmp.gt.f32.partialorder %v906, 0.0
      %vm913 = vcmp.gt.f32.partialorder %v909, 0.0
      %v914 = vsel %vm912, 1, 0
      %v915 = vsel %vm913, 1, 0
      %v916 = vcvt.s32.f32 %v914
      %v917 = vcvt.s32.f32 %v915
      %v918 = vpack.c.bf16 %v917, %v916
      %v919 = vpack.c.bf16 %v765, %v765
      %v921 = vsel %vm322, %v919, 0
      %v924 = vsel %vm326, %v918, 0
      %926 = vmatprep.subr.bf16.mxu0 0
      %927 = vmatpush1.bf16.msra.mxu0 0
      %928 = vmatprep.subr.bf16.mxu0 0
      %929 = vmatpush1.bf16.msra.mxu0 0
      %930 = vmatprep.subr.bf16.mxu0 0
      %931 = vmatpush1.bf16.msra.mxu0 0
      %932 = vmatprep.subr.bf16.mxu0 0
      %933 = vmatpush1.bf16.msra.mxu0 0
      %934 = vmatprep.subr.bf16.mxu0 0
      %935 = vmatpush1.bf16.msra.mxu0 0
      %936 = vmatprep.subr.bf16.mxu0 0
      %937 = vmatpush1.bf16.msra.mxu0 0
      %938 = vmatprep.subr.bf16.mxu0 0
      %939 = vmatpush1.bf16.msra.mxu0 0
      %940 = vmatprep.subr.bf16.mxu0 0
      %941 = vmatpush1.bf16.msra.mxu0 %v924
      %942 = vmatprep.subr.bf16.mxu0 0
      %943 = vmatpush2.bf16.msra.mxu0 0
      %944 = vmatprep.subr.bf16.mxu0 0
      %945 = vmatpush2.bf16.msra.mxu0 0
      %946 = vmatprep.subr.bf16.mxu0 0
      %947 = vmatpush2.bf16.msra.mxu0 0
      %948 = vmatprep.subr.bf16.mxu0 0
      %949 = vmatpush2.bf16.msra.mxu0 0
      %950 = vmatprep.subr.bf16.mxu0 0
      %951 = vmatpush2.bf16.msra.mxu0 0
      %952 = vmatprep.subr.bf16.mxu0 0
      %953 = vmatpush2.bf16.msra.mxu0 0
      %954 = vmatprep.subr.bf16.mxu0 0
      %955 = vmatpush2.bf16.msra.mxu0 0
      %956 = vmatprep.subr.bf16.mxu0 0
      %957 = vmatpush2.bf16.msra.mxu0 0
      %958 = vmatprep.mubr.bf16.mxu0 0
      %959 = vmatmul.mubr.bf16.gmra.mxu0 %v921
      %v960 = vpop.f32.mrf.mxu0
      %v961 = vadd.f32 0.0, %v960
      %v962 = vpop.f32.mrf.mxu0
      %v963 = vpop.f32.mrf.mxu0
      %v964 = vpop.f32.mrf.mxu0
      %965 = vdwg.mxu0
      %v966 = vpack.c.bf16 %v961, %v961
      %v968 = vsel %vm322, %v966, 0
      %970 = vmatprep.subr.bf16.mxu0 0
      %971 = vmatpush1.bf16.xpose.msra.mxu0 0
      %972 = vmatprep.subr.bf16.mxu0 0
      %973 = vmatpush1.bf16.xpose.msra.mxu0 0
      %974 = vmatprep.subr.bf16.mxu0 0
      %975 = vmatpush1.bf16.xpose.msra.mxu0 0
      %976 = vmatprep.subr.bf16.mxu0 0
      %977 = vmatpush1.bf16.xpose.msra.mxu0 0
      %978 = vmatprep.subr.bf16.mxu0 0
      %979 = vmatpush1.bf16.xpose.msra.mxu0 0
      %980 = vmatprep.subr.bf16.mxu0 0
      %981 = vmatpush1.bf16.xpose.msra.mxu0 0
      %982 = vmatprep.subr.bf16.mxu0 0
      %983 = vmatpush1.bf16.xpose.msra.mxu0 0
      %984 = vmatprep.subr.bf16.mxu0 0
      %985 = vmatpush1.bf16.xpose.msra.mxu0 %v921
      %986 = vmatprep.subr.bf16.mxu0 0
      %987 = vmatpush2.bf16.xpose.msra.mxu0 0
      %988 = vmatprep.subr.bf16.mxu0 0
      %989 = vmatpush2.bf16.xpose.msra.mxu0 0
      %990 = vmatprep.subr.bf16.mxu0 0
      %991 = vmatpush2.bf16.xpose.msra.mxu0 0
      %992 = vmatprep.subr.bf16.mxu0 0
      %993 = vmatpush2.bf16.xpose.msra.mxu0 0
      %994 = vmatprep.subr.bf16.mxu0 0
      %995 = vmatpush2.bf16.xpose.msra.mxu0 0
      %996 = vmatprep.subr.bf16.mxu0 0
      %997 = vmatpush2.bf16.xpose.msra.mxu0 0
      %998 = vmatprep.subr.bf16.mxu0 0
      %999 = vmatpush2.bf16.xpose.msra.mxu0 0
      %1000 = vmatprep.subr.bf16.mxu0 0
      %1001 = vmatpush2.bf16.xpose.msra.mxu0 0
      %1002 = vmatprep.mubr.bf16.mxu0 0
      %1003 = vmatmul.mubr.bf16.gmra.mxu0 %v968
      %v1004 = vpop.f32.mrf.mxu0
      %v1005 = vadd.f32 0.0, %v1004
      %v1006 = vpop.f32.mrf.mxu0
      %v1007 = vpop.f32.mrf.mxu0
      %v1008 = vpop.f32.mrf.mxu0
      %1009 = vdwg.mxu0
      %v1010 = vpack.c.bf16 %v1005, %v1005
      %vm1011 = vcmask 56320
      %v1013 = vsel %vm1011, 1065369472, 0
      %v1016 = vsel %vm1011, %v1010, 0
      %1018 = vmatprep.subr.bf16.mxu0 0
      %1019 = vmatpush1.bf16.xpose.msra.mxu0 0
      %1020 = vmatprep.subr.bf16.mxu0 0
      %1021 = vmatpush1.bf16.xpose.msra.mxu0 0
      %1022 = vmatprep.subr.bf16.mxu0 0
      %1023 = vmatpush1.bf16.xpose.msra.mxu0 0
      %1024 = vmatprep.subr.bf16.mxu0 0
      %1025 = vmatpush1.bf16.xpose.msra.mxu0 0
      %1026 = vmatprep.subr.bf16.mxu0 0
      %1027 = vmatpush1.bf16.xpose.msra.mxu0 0
      %1028 = vmatprep.subr.bf16.mxu0 0
      %1029 = vmatpush1.bf16.xpose.msra.mxu0 0
      %1030 = vmatprep.subr.bf16.mxu0 0
      %1031 = vmatpush1.bf16.xpose.msra.mxu0 0
      %1032 = vmatprep.subr.bf16.mxu0 0
      %1033 = vmatpush1.bf16.xpose.msra.mxu0 %v1016
      %1034 = vmatprep.subr.bf16.mxu0 0
      %1035 = vmatpush2.bf16.xpose.msra.mxu0 0
      %1036 = vmatprep.subr.bf16.mxu0 0
      %1037 = vmatpush2.bf16.xpose.msra.mxu0 0
      %1038 = vmatprep.subr.bf16.mxu0 0
      %1039 = vmatpush2.bf16.xpose.msra.mxu0 0
      %1040 = vmatprep.subr.bf16.mxu0 0
      %1041 = vmatpush2.bf16.xpose.msra.mxu0 0
      %1042 = vmatprep.subr.bf16.mxu0 0
      %1043 = vmatpush2.bf16.xpose.msra.mxu0 0
      %1044 = vmatprep.subr.bf16.mxu0 0
      %1045 = vmatpush2.bf16.xpose.msra.mxu0 0
      %1046 = vmatprep.subr.bf16.mxu0 0
      %1047 = vmatpush2.bf16.xpose.msra.mxu0 0
      %1048 = vmatprep.subr.bf16.mxu0 0
      %1049 = vmatpush2.bf16.xpose.msra.mxu0 0
      %1050 = vmatprep.mubr.bf16.mxu0 0
      %1051 = vmatmul.mubr.bf16.gmra.mxu0 %v1013
      %v1052 = vpop.f32.mrf.mxu0
      %v1053 = vadd.f32 0.0, %v1052
      %v1054 = vpop.f32.mrf.mxu0
      %v1055 = vpop.f32.mrf.mxu0
      %v1056 = vpop.f32.mrf.mxu0
      %1057 = vdwg.mxu0
      %v1058 = vrcp.pop %v1053
      %v1059 = vlaneseq
      %v1060 = vshrl.u32 %v1059, 7
      %v1061 = vsub.s32 0, %v1060
      %v1062 = vrot.slane %v1058, %v1061
      %v1063 = vmul.f32 %v1005, %v1062
      %vm1064 = vcmask 55296
      %1065 = vst.msk [vmem:[%s305] sm:$0x7f] %vm1064, %v1063
      %p1066 = scmp.lt.s32.totalorder %s21, 1
      %s1067 = scalar_select %p1066, %s21, 1
      %s1068 = smul.addr %s1067, 8
      %s1069 = scalar_lea.vmem %s6, %s1068
      %p1070 = scmp.lt.s32.totalorder %s21, 1
      %s1071 = scalar_select %p1070, %s21, 1
      %s1072 = smul.addr %s1071, 4
      %s1073 = scalar_lea.vmem %s7, %s1072
      // Predicated region
      $region45: #{_lambda_.6} parent=43 // pred_check
        %p1074 = pneg %p175
      $region46: #{_lambda_.6} parent=43 // pred_check_branch
        %1076 = sbr.rel (%p1074) target = $region48
      $region47: #{_lambda_.6} parent=43 // pred_region
        _
      $region48: #{_lambda_.6} parent=43 // pred_fallthru
        _
      // Predicated region
      $region49: #{_lambda_.6} parent=43 // pred_check
        %p1077 = pneg %p201
      $region50: #{_lambda_.6} parent=43 // pred_check_branch
        %1079 = sbr.rel (%p1077) target = $region52
      $region51: #{_lambda_.6} parent=43 // pred_region
        _
      $region52: #{_lambda_.6} parent=43 // pred_fallthru
        _
    $region44: #{_lambda_.6} parent=5 // pred_fallthru
      _
    %p1080 = scmp.le.s32.totalorder 2, %s16
    // Predicated region
    $region53: #{_lambda_.6} parent=5 // pred_check
      %p1081 = pneg %p1080
    $region54: #{_lambda_.6} parent=5 // pred_check_branch
      %1083 = sbr.rel (%p1081) target = $region56
    $region55: #{_lambda_.6} parent=5 // pred_region
      %s1084 = ssub.s32 %s16, 2
      // Predicated region
      $region57: #{_lambda_.6} parent=55 // pred_check
        %p1085 = pneg %p181
      $region58: #{_lambda_.6} parent=55 // pred_check_branch
        %1087 = sbr.rel (%p1085) target = $region60
      $region59: #{_lambda_.6} parent=55 // pred_region
        %p1088 = scmp.lt.s32.totalorder %s22, 1
        %s1089 = scalar_select %p1088, %s22, 1
        %s1090 = smul.addr %s1089, 8
        %s1091 = scalar_lea.vmem %s6, %s1090
      $region60: #{_lambda_.6} parent=55 // pred_fallthru
        _
      // Predicated region
      $region61: #{_lambda_.6} parent=55 // pred_check
        %p1092 = pneg %p207
      $region62: #{_lambda_.6} parent=55 // pred_check_branch
        %1094 = sbr.rel (%p1092) target = $region64
      $region63: #{_lambda_.6} parent=55 // pred_region
        %p1095 = scmp.lt.s32.totalorder %s22, 1
        %s1096 = scalar_select %p1095, %s22, 1
        %s1097 = smul.addr %s1096, 4
        %s1098 = scalar_lea.vmem %s7, %s1097
      $region64: #{_lambda_.6} parent=55 // pred_fallthru
        _
    $region56: #{_lambda_.6} parent=5 // pred_fallthru
      _
  $region6: #{_lambda_.6} parent=0 // loop_footer
    %s20 = sadd.s32 1, %s16
  $region7: #{_lambda_.6} parent=0 // loop_footer_branch
    %15 = sbr.rel target = $region3
  $region8: #{_lambda_.6} parent=0 // loop_exit
    _

// kernel: _lambda_.5
$region0: #{_lambda_.5}
  #allocation0 [shape = 'u32[]', space=smem, size = 0x4, offset = 0x4, fixed_abs, tag = 'smem constant byte address 0x4 - core index']
  #allocation1 [shape = 'u32[144,128]{1,0:T(1,128)}', space=vmem, size = 0x12000, scoped, tag = 'internal scratch']
  #allocation2 [shape = 'f32[1,1]{1,0:T(1,128)S(1)}', space=vmem, size = 0x200, scoped, tag = 'scoped memory for _lambda_.5']
  %s0 = inlined_call_operand.vmem [shape: f32[2,16,16], index: 0, kind: input, shape index: {}]
  %s1 = inlined_call_operand.vmem [shape: bf16[2,16,32], index: 1, kind: input, shape index: {}]
  %s2 = inlined_call_operand.vmem [shape: bf16[32,32], index: 2, kind: input, shape index: {}]
  %s3 = inlined_call_operand.vmem [shape: f32[1,32], index: 3, kind: input, shape index: {}]
  %s4 = inlined_call_operand.vmem [shape: f32[1,32], index: 4, kind: input, shape index: {}]
  %s5 = inlined_call_operand.<no memory space> [shape: f32[1,1], index: 5, kind: input, shape index: {}]
  %s6 = inlined_call_operand.vmem [shape: f32[2,12,12], index: 6, kind: output, shape index: {0}]
  %s7 = inlined_call_operand.vmem [shape: bf16[2,12,32], index: 7, kind: output, shape index: {1}]
  %8 = xla_tuple %s6, %s7
  %s9 = sld [smem:[#allocation0]]
  $region65: #{_lambda_.5} parent=0
    _
  %s11 = ssub.s32 1, %s9
  %s12 = scalar_select 0, %s11, %s9
  %v13 = vstv %s5
  %14 = vst [vmem:[#allocation2] sm:$0x1] %v13
  loop: start=0, step=1, limit=4
  $region2: #{_lambda_.5} parent=0 // loop_pre_header
    _
  $region3: #{_lambda_.5} parent=0 // loop_header
    %s16 = sphi 0, %s20
    %p17 = scmp.ge.s32.totalorder %s16, 4
    %s26 = sphi 0, %s28
    %s29 = sphi 0, %s26
    %s30 = sphi 0, %s29
    %s46 = sphi 0, %s30
    %s52 = sphi 0, %s54
    %s55 = sphi 0, %s52
    %s56 = sphi 0, %s55
    %s72 = sphi 0, %s56
    %s76 = sphi 0, %s76
    %s78 = sphi 0, %s76
    %s79 = sphi 0, %s78
    %s93 = sphi 0, %s79
    %s97 = sphi 0, %s97
    %s99 = sphi 0, %s97
    %s100 = sphi 0, %s99
    %s114 = sphi 0, %s100
    %s118 = sphi 0, %s118
    %s120 = sphi 0, %s118
    %s121 = sphi 0, %s120
    %s135 = sphi 0, %s121
    %s139 = sphi 0, %s139
    %s141 = sphi 0, %s139
    %s142 = sphi 0, %s141
    %s156 = sphi 0, %s142
    %s162 = sphi 0, %s164
    %s165 = sphi 0, %s162
    %s166 = sphi 0, %s165
    %s182 = sphi 0, %s166
    %s188 = sphi 0, %s190
    %s191 = sphi 0, %s188
    %s192 = sphi 0, %s191
    %s208 = sphi 0, %s192
  $region4: #{_lambda_.5} parent=0 // loop_header_branch
    %19 = sbr.rel (%p17) target = $region8
  $region5: #{_lambda_.5} parent=0 // loop_body
    %s21 = ssub.s32 %s16, 1
    %s22 = ssub.s32 %s16, 2
    %s23 = sadd.s32 %s16, 1
    %s24 = ssub.s32 %s16, %s23
    %p25 = scmp.eq.s32.totalorder %s24, 0
    %s27 = sadd.s32 %s26, 1
    %s28 = scalar_select %p25, %s26, %s27
    %p31 = pneg %p25
    %p32 = scmp.eq.s32.totalorder %s16, 1
    %p33 = por %p31, %p32
    %p34 = scmp.ne.s32.totalorder %s26, %s29
    %p35 = scmp.eq.s32.totalorder %s16, 0
    %p36 = por %p34, %p35
    %p37 = scmp.ne.s32.totalorder %s26, %s29
    %p38 = scmp.eq.s32.totalorder %s21, 1
    %p39 = por %p37, %p38
    %p40 = scmp.ne.s32.totalorder %s29, %s30
    %p41 = scmp.eq.s32.totalorder %s21, 0
    %p42 = por %p40, %p41
    %p43 = scmp.ne.s32.totalorder %s29, %s30
    %p44 = scmp.eq.s32.totalorder %s22, 1
    %p45 = por %p43, %p44
    %p47 = scmp.ne.s32.totalorder %s30, %s46
    %p48 = scmp.eq.s32.totalorder %s22, 0
    %p49 = por %p47, %p48
    %s50 = ssub.s32 %s16, %s23
    %p51 = scmp.eq.s32.totalorder %s50, 0
    %s53 = sadd.s32 %s52, 1
    %s54 = scalar_select %p51, %s52, %s53
    %p57 = pneg %p51
    %p58 = scmp.eq.s32.totalorder %s16, 1
    %p59 = por %p57, %p58
    %p60 = scmp.ne.s32.totalorder %s52, %s55
    %p61 = scmp.eq.s32.totalorder %s16, 0
    %p62 = por %p60, %p61
    %p63 = scmp.ne.s32.totalorder %s52, %s55
    %p64 = scmp.eq.s32.totalorder %s21, 1
    %p65 = por %p63, %p64
    %p66 = scmp.ne.s32.totalorder %s55, %s56
    %p67 = scmp.eq.s32.totalorder %s21, 0
    %p68 = por %p66, %p67
    %p69 = scmp.ne.s32.totalorder %s55, %s56
    %p70 = scmp.eq.s32.totalorder %s22, 1
    %p71 = por %p69, %p70
    %p73 = scmp.ne.s32.totalorder %s56, %s72
    %p74 = scmp.eq.s32.totalorder %s22, 0
    %p75 = por %p73, %p74
    %s77 = sadd.s32 %s76, 1
    %p80 = scmp.eq.s32.totalorder %s16, 1
    %p81 = scmp.ne.s32.totalorder %s76, %s78
    %p82 = scmp.eq.s32.totalorder %s16, 0
    %p83 = por %p81, %p82
    %p84 = scmp.ne.s32.totalorder %s76, %s78
    %p85 = scmp.eq.s32.totalorder %s21, 1
    %p86 = por %p84, %p85
    %p87 = scmp.ne.s32.totalorder %s78, %s79
    %p88 = scmp.eq.s32.totalorder %s21, 0
    %p89 = por %p87, %p88
    %p90 = scmp.ne.s32.totalorder %s78, %s79
    %p91 = scmp.eq.s32.totalorder %s22, 1
    %p92 = por %p90, %p91
    %p94 = scmp.ne.s32.totalorder %s79, %s93
    %p95 = scmp.eq.s32.totalorder %s22, 0
    %p96 = por %p94, %p95
    %s98 = sadd.s32 %s97, 1
    %p101 = scmp.eq.s32.totalorder %s16, 1
    %p102 = scmp.ne.s32.totalorder %s97, %s99
    %p103 = scmp.eq.s32.totalorder %s16, 0
    %p104 = por %p102, %p103
    %p105 = scmp.ne.s32.totalorder %s97, %s99
    %p106 = scmp.eq.s32.totalorder %s21, 1
    %p107 = por %p105, %p106
    %p108 = scmp.ne.s32.totalorder %s99, %s100
    %p109 = scmp.eq.s32.totalorder %s21, 0
    %p110 = por %p108, %p109
    %p111 = scmp.ne.s32.totalorder %s99, %s100
    %p112 = scmp.eq.s32.totalorder %s22, 1
    %p113 = por %p111, %p112
    %p115 = scmp.ne.s32.totalorder %s100, %s114
    %p116 = scmp.eq.s32.totalorder %s22, 0
    %p117 = por %p115, %p116
    %s119 = sadd.s32 %s118, 1
    %p122 = scmp.eq.s32.totalorder %s16, 1
    %p123 = scmp.ne.s32.totalorder %s118, %s120
    %p124 = scmp.eq.s32.totalorder %s16, 0
    %p125 = por %p123, %p124
    %p126 = scmp.ne.s32.totalorder %s118, %s120
    %p127 = scmp.eq.s32.totalorder %s21, 1
    %p128 = por %p126, %p127
    %p129 = scmp.ne.s32.totalorder %s120, %s121
    %p130 = scmp.eq.s32.totalorder %s21, 0
    %p131 = por %p129, %p130
    %p132 = scmp.ne.s32.totalorder %s120, %s121
    %p133 = scmp.eq.s32.totalorder %s22, 1
    %p134 = por %p132, %p133
    %p136 = scmp.ne.s32.totalorder %s121, %s135
    %p137 = scmp.eq.s32.totalorder %s22, 0
    %p138 = por %p136, %p137
    %s140 = sadd.s32 %s139, 1
    %p143 = scmp.eq.s32.totalorder %s16, 1
    %p144 = scmp.ne.s32.totalorder %s139, %s141
    %p145 = scmp.eq.s32.totalorder %s16, 0
    %p146 = por %p144, %p145
    %p147 = scmp.ne.s32.totalorder %s139, %s141
    %p148 = scmp.eq.s32.totalorder %s21, 1
    %p149 = por %p147, %p148
    %p150 = scmp.ne.s32.totalorder %s141, %s142
    %p151 = scmp.eq.s32.totalorder %s21, 0
    %p152 = por %p150, %p151
    %p153 = scmp.ne.s32.totalorder %s141, %s142
    %p154 = scmp.eq.s32.totalorder %s22, 1
    %p155 = por %p153, %p154
    %p157 = scmp.ne.s32.totalorder %s142, %s156
    %p158 = scmp.eq.s32.totalorder %s22, 0
    %p159 = por %p157, %p158
    %s160 = ssub.s32 %s16, %s23
    %p161 = scmp.eq.s32.totalorder %s160, 0
    %s163 = sadd.s32 %s162, 1
    %s164 = scalar_select %p161, %s162, %s163
    %p167 = pneg %p161
    %p168 = scmp.eq.s32.totalorder %s16, 1
    %p169 = por %p167, %p168
    %p170 = scmp.ne.s32.totalorder %s162, %s165
    %p171 = scmp.eq.s32.totalorder %s16, 0
    %p172 = por %p170, %p171
    %p173 = scmp.ne.s32.totalorder %s162, %s165
    %p174 = scmp.eq.s32.totalorder %s21, 1
    %p175 = por %p173, %p174
    %p176 = scmp.ne.s32.totalorder %s165, %s166
    %p177 = scmp.eq.s32.totalorder %s21, 0
    %p178 = por %p176, %p177
    %p179 = scmp.ne.s32.totalorder %s165, %s166
    %p180 = scmp.eq.s32.totalorder %s22, 1
    %p181 = por %p179, %p180
    %p183 = scmp.ne.s32.totalorder %s166, %s182
    %p184 = scmp.eq.s32.totalorder %s22, 0
    %p185 = por %p183, %p184
    %s186 = ssub.s32 %s16, %s23
    %p187 = scmp.eq.s32.totalorder %s186, 0
    %s189 = sadd.s32 %s188, 1
    %s190 = scalar_select %p187, %s188, %s189
    %p193 = pneg %p187
    %p194 = scmp.eq.s32.totalorder %s16, 1
    %p195 = por %p193, %p194
    %p196 = scmp.ne.s32.totalorder %s188, %s191
    %p197 = scmp.eq.s32.totalorder %s16, 0
    %p198 = por %p196, %p197
    %p199 = scmp.ne.s32.totalorder %s188, %s191
    %p200 = scmp.eq.s32.totalorder %s21, 1
    %p201 = por %p199, %p200
    %p202 = scmp.ne.s32.totalorder %s191, %s192
    %p203 = scmp.eq.s32.totalorder %s21, 0
    %p204 = por %p202, %p203
    %p205 = scmp.ne.s32.totalorder %s191, %s192
    %p206 = scmp.eq.s32.totalorder %s22, 1
    %p207 = por %p205, %p206
    %p209 = scmp.ne.s32.totalorder %s192, %s208
    %p210 = scmp.eq.s32.totalorder %s22, 0
    %p211 = por %p209, %p210
    %p212 = scmp.le.s32.totalorder 1, %s16
    %p213 = scmp.lt.s32.totalorder %s16, 3
    %p214 = pnand %p212, %p213
    %p215 = pneg %p214
    // Predicated region
    $region9: #{_lambda_.5} parent=5 // pred_check
      _
    $region10: #{_lambda_.5} parent=5 // pred_check_branch
      %217 = sbr.rel (%p214) target = $region12
    $region11: #{_lambda_.5} parent=5 // pred_region
      %s218 = ssub.s32 %s16, 1
      // Predicated region
      $region13: #{_lambda_.5} parent=11 // pred_check
        %p219 = pneg %p89
      $region14: #{_lambda_.5} parent=11 // pred_check_branch
        %221 = sbr.rel (%p219) target = $region16
      $region15: #{_lambda_.5} parent=11 // pred_region
        _
      $region16: #{_lambda_.5} parent=11 // pred_fallthru
        _
      // Predicated region
      $region17: #{_lambda_.5} parent=11 // pred_check
        %p222 = pneg %p110
      $region18: #{_lambda_.5} parent=11 // pred_check_branch
        %224 = sbr.rel (%p222) target = $region20
      $region19: #{_lambda_.5} parent=11 // pred_region
        _
      $region20: #{_lambda_.5} parent=11 // pred_fallthru
        _
      // Predicated region
      $region21: #{_lambda_.5} parent=11 // pred_check
        %p225 = pneg %p131
      $region22: #{_lambda_.5} parent=11 // pred_check_branch
        %227 = sbr.rel (%p225) target = $region24
      $region23: #{_lambda_.5} parent=11 // pred_region
        _
      $region24: #{_lambda_.5} parent=11 // pred_fallthru
        _
      // Predicated region
      $region25: #{_lambda_.5} parent=11 // pred_check
        %p228 = pneg %p152
      $region26: #{_lambda_.5} parent=11 // pred_check_branch
        %230 = sbr.rel (%p228) target = $region28
      $region27: #{_lambda_.5} parent=11 // pred_region
        _
      $region28: #{_lambda_.5} parent=11 // pred_fallthru
        _
    $region12: #{_lambda_.5} parent=5 // pred_fallthru
      _
    %p231 = scmp.lt.s32.totalorder %s16, 2
    // Predicated region
    $region29: #{_lambda_.5} parent=5 // pred_check
      %p232 = pneg %p231
    $region30: #{_lambda_.5} parent=5 // pred_check_branch
      %234 = sbr.rel (%p232) target = $region32
    $region31: #{_lambda_.5} parent=5 // pred_region
      // Predicated region
      $region33: #{_lambda_.5} parent=31 // pred_check
        %p235 = pneg %p36
      $region34: #{_lambda_.5} parent=31 // pred_check_branch
        %237 = sbr.rel (%p235) target = $region36
      $region35: #{_lambda_.5} parent=31 // pred_region
        %p238 = scmp.lt.s32.totalorder %s16, 1
        %s239 = scalar_select %p238, %s16, 1
        %s240 = smul.addr %s239, 2
        %s241 = smul.addr %s240, 8
        %s242 = scalar_lea.vmem %s0, %s241
      $region36: #{_lambda_.5} parent=31 // pred_fallthru
        _
      // Predicated region
      $region37: #{_lambda_.5} parent=31 // pred_check
        %p243 = pneg %p62
      $region38: #{_lambda_.5} parent=31 // pred_check_branch
        %245 = sbr.rel (%p243) target = $region40
      $region39: #{_lambda_.5} parent=31 // pred_region
        %p246 = scmp.lt.s32.totalorder %s16, 1
        %s247 = scalar_select %p246, %s16, 1
        %s248 = smul.addr %s247, 2
        %s249 = smul.addr %s248, 4
        %s250 = scalar_lea.vmem %s1, %s249
      $region40: #{_lambda_.5} parent=31 // pred_fallthru
        _
    $region32: #{_lambda_.5} parent=5 // pred_fallthru
      _
    %p251 = scmp.le.s32.totalorder 1, %s16
    %p252 = scmp.lt.s32.totalorder %s16, 3
    %p253 = pnand %p251, %p252
    %p254 = pneg %p253
    // Predicated region
    $region41: #{_lambda_.5} parent=5 // pred_check
      _
    $region42: #{_lambda_.5} parent=5 // pred_check_branch
      %256 = sbr.rel (%p253) target = $region44
    $region43: #{_lambda_.5} parent=5 // pred_region
      %s257 = ssub.s32 %s16, 1
      %p258 = scmp.lt.s32.totalorder %s21, 1
      %s259 = scalar_select %p258, %s21, 1
      %s260 = smul.addr %s259, 2
      %s261 = smul.addr %s260, 8
      %s262 = scalar_lea.vmem %s0, %s261
      %p263 = pneg %p42
      %p264 = pneg %p39
      %p265 = scmp.lt.s32.totalorder %s21, 1
      %s266 = scalar_select %p265, %s21, 1
      %s267 = smul.addr %s266, 2
      %s268 = smul.addr %s267, 4
      %s269 = scalar_lea.vmem %s1, %s268
      %p270 = pneg %p68
      %p271 = pneg %p65
      %p272 = pneg %p89
      %p273 = pneg %p86
      %p274 = pneg %p110
      %p275 = pneg %p107
      %p276 = pneg %p131
      %p277 = pneg %p128
      %p278 = pneg %p152
      %p279 = pneg %p149
      %p280 = pneg %p178
      %p281 = pneg %p175
      %p282 = scmp.lt.s32.totalorder %s21, 1
      %s283 = scalar_select %p282, %s21, 1
      %s284 = smul.addr %s283, 2
      %s285 = smul.addr %s284, 8
      %s286 = scalar_lea.vmem %s6, %s285
      %p287 = pneg %p204
      %p288 = pneg %p201
      %p289 = scmp.lt.s32.totalorder %s21, 1
      %s290 = scalar_select %p289, %s21, 1
      %s291 = smul.addr %s290, 2
      %s292 = smul.addr %s291, 4
      %s293 = scalar_lea.vmem %s7, %s292
      %p294 = scmp.lt.s32.totalorder %s21, 1
      %s295 = scalar_select %p294, %s21, 1
      %s296 = smul.addr %s295, 2
      %s297 = smul.addr %s296, 8
      %s298 = scalar_lea.vmem %s0, %s297
      %p299 = scmp.lt.s32.totalorder %s21, 1
      %s300 = scalar_select %p299, %s21, 1
      %s301 = smul.addr %s300, 2
      %s302 = smul.addr %s301, 4
      %s303 = scalar_lea.vmem %s1, %s302
      %p304 = scmp.lt.s32.totalorder %s21, 1
      %s305 = scalar_select %p304, %s21, 1
      %s306 = smul.addr %s305, 2
      %s307 = smul.addr %s306, 8
      %s308 = scalar_lea.vmem %s6, %s307
      %p309 = scmp.lt.s32.totalorder %s21, 1
      %s310 = scalar_select %p309, %s21, 1
      %s311 = smul.addr %s310, 2
      %s312 = smul.addr %s311, 4
      %s313 = scalar_lea.vmem %s7, %s312
      %v316 = vld [vmem:[%s298] sm:$0xff]
      %v317 = vld [vmem:[%s298 + $0x8] sm:$0xff]
      %v318 = vpack.c.bf16 %v317, %v316
      %v319 = vld [vmem:[%s303] sm:$0xf]
      %v320 = vld [vmem:[%s303 + $0x4] sm:$0xf]
      %v323 = vunpack.c.l.b16 %v319
      %v324 = vunpack.c.l.b16 %v320
      %v325 = vpack.c.b16 %v324, %v323
      %vm327 = vcmask 130048
      %v329 = vsel %vm327, %v318, 0
      %331 = vmatprep.subr.bf16.mxu0 0
      %332 = vmatpush1.bf16.msra.mxu0 0
      %333 = vmatprep.subr.bf16.mxu0 0
      %334 = vmatpush1.bf16.msra.mxu0 0
      %335 = vmatprep.subr.bf16.mxu0 0
      %336 = vmatpush1.bf16.msra.mxu0 0
      %337 = vmatprep.subr.bf16.mxu0 0
      %338 = vmatpush1.bf16.msra.mxu0 0
      %339 = vmatprep.subr.bf16.mxu0 0
      %340 = vmatpush1.bf16.msra.mxu0 0
      %341 = vmatprep.subr.bf16.mxu0 0
      %342 = vmatpush1.bf16.msra.mxu0 0
      %343 = vmatprep.subr.bf16.mxu0 0
      %344 = vmatpush1.bf16.msra.mxu0 0
      %345 = vmatprep.subr.bf16.mxu0 0
      %346 = vmatpush1.bf16.msra.mxu0 %v325
      %347 = vmatprep.subr.bf16.mxu0 0
      %348 = vmatpush2.bf16.msra.mxu0 0
      %349 = vmatprep.subr.bf16.mxu0 0
      %350 = vmatpush2.bf16.msra.mxu0 0
      %351 = vmatprep.subr.bf16.mxu0 0
      %352 = vmatpush2.bf16.msra.mxu0 0
      %353 = vmatprep.subr.bf16.mxu0 0
      %354 = vmatpush2.bf16.msra.mxu0 0
      %355 = vmatprep.subr.bf16.mxu0 0
      %356 = vmatpush2.bf16.msra.mxu0 0
      %357 = vmatprep.subr.bf16.mxu0 0
      %358 = vmatpush2.bf16.msra.mxu0 0
      %359 = vmatprep.subr.bf16.mxu0 0
      %360 = vmatpush2.bf16.msra.mxu0 0
      %361 = vmatprep.subr.bf16.mxu0 0
      %362 = vmatpush2.bf16.msra.mxu0 0
      %363 = vmatprep.mubr.bf16.mxu0 0
      %364 = vmatmul.mubr.bf16.gmra.mxu0 %v329
      %v365 = vpop.f32.mrf.mxu0
      %v366 = vadd.f32 0.0, %v365
      %v367 = vpop.f32.mrf.mxu0
      %v368 = vpop.f32.mrf.mxu0
      %v369 = vadd.f32 0.0, %v368
      %v370 = vpop.f32.mrf.mxu0
      %371 = vdwg.mxu0
      %v372 = vpack.c.bf16 %v369, %v366
      %v373 = vld [vmem:[%s2] sm:$0xf]
      %v374 = vld [vmem:[%s2 + $0x4] sm:$0xf]
      %v375 = vld [vmem:[%s2 + $0x8] sm:$0xf]
      %v376 = vld [vmem:[%s2 + $0xc] sm:$0xf]
      %v377 = vld [vmem:[%s3] sm:$0x1]
      %v379 = vlaneseq
      %v380 = vshrl.u32 %v379, 7
      %v381 = vsub.s32 0, %v380
      %v382 = vrot.slane %v377, %v381
      %v388 = vunpack.c.l.b16 %v373
      %v389 = vunpack.c.l.b16 %v374
      %v390 = vunpack.c.l.b16 %v375
      %v391 = vunpack.c.l.b16 %v376
      %v392 = vpack.c.b16 %v389, %v388
      %v393 = vpack.c.b16 %v391, %v390
      %vm396 = vcmask 261120
      %v398 = vsel %vm396, %v372, 0
      %400 = vmatprep.subr.bf16.mxu0 0
      %401 = vmatpush1.bf16.msra.mxu0 0
      %402 = vmatprep.subr.bf16.mxu0 0
      %403 = vmatpush1.bf16.msra.mxu0 0
      %404 = vmatprep.subr.bf16.mxu0 0
      %405 = vmatpush1.bf16.msra.mxu0 0
      %406 = vmatprep.subr.bf16.mxu0 0
      %407 = vmatpush1.bf16.msra.mxu0 0
      %408 = vmatprep.subr.bf16.mxu0 0
      %409 = vmatpush1.bf16.msra.mxu0 0
      %410 = vmatprep.subr.bf16.mxu0 0
      %411 = vmatpush1.bf16.msra.mxu0 0
      %412 = vmatprep.subr.bf16.mxu0 0
      %413 = vmatpush1.bf16.msra.mxu0 %v393
      %414 = vmatprep.subr.bf16.mxu0 0
      %415 = vmatpush1.bf16.msra.mxu0 %v392
      %416 = vmatprep.subr.bf16.mxu0 0
      %417 = vmatpush2.bf16.msra.mxu0 0
      %418 = vmatprep.subr.bf16.mxu0 0
      %419 = vmatpush2.bf16.msra.mxu0 0
      %420 = vmatprep.subr.bf16.mxu0 0
      %421 = vmatpush2.bf16.msra.mxu0 0
      %422 = vmatprep.subr.bf16.mxu0 0
      %423 = vmatpush2.bf16.msra.mxu0 0
      %424 = vmatprep.subr.bf16.mxu0 0
      %425 = vmatpush2.bf16.msra.mxu0 0
      %426 = vmatprep.subr.bf16.mxu0 0
      %427 = vmatpush2.bf16.msra.mxu0 0
      %428 = vmatprep.subr.bf16.mxu0 0
      %429 = vmatpush2.bf16.msra.mxu0 0
      %430 = vmatprep.subr.bf16.mxu0 0
      %431 = vmatpush2.bf16.msra.mxu0 0
      %432 = vmatprep.mubr.bf16.mxu0 0
      %433 = vmatmul.mubr.bf16.gmra.mxu0 %v398
      %v434 = vpop.f32.mrf.mxu0
      %v435 = vadd.f32 %v382, %v434
      %v436 = vpop.f32.mrf.mxu0
      %v437 = vpop.f32.mrf.mxu0
      %v438 = vadd.f32 %v382, %v437
      %v439 = vpop.f32.mrf.mxu0
      %440 = vdwg.mxu0
      %v441 = vmax.f32 %v435, 0.0
      %v442 = vmax.f32 %v438, 0.0
      %v443 = vld [vmem:[%s4] sm:$0x1]
      %v444 = vld [vmem:[#allocation2] sm:$0x1]
      %446 = vset.pattern.permute.xlu0 0
      %447 = vperm.xlu0 %446, %v444
      %v448 = vpop.permute.xlu0 %447
      %v450 = vlaneseq
      %v451 = vshrl.u32 %v450, 7
      %v452 = vsub.s32 0, %v451
      %v453 = vrot.slane %v448, %v452
      %v455 = vsel %vm396, %v443, 0
      %v458 = vsel %vm396, %v441, 0
      %v461 = vsel %vm396, %v442, 0
      %463 = vmatprep.subr.mxu0 0.0
      %464 = vmatpush1.xpose.msra.mxu0 0.0
      %465 = vmatprep.subr.mxu0 0.0
      %466 = vmatpush1.xpose.msra.mxu0 0.0
      %467 = vmatprep.subr.mxu0 0.0
      %468 = vmatpush1.xpose.msra.mxu0 0.0
      %469 = vmatprep.subr.mxu0 0.0
      %470 = vmatpush1.xpose.msra.mxu0 0.0
      %471 = vmatprep.subr.mxu0 0.0
      %472 = vmatpush1.xpose.msra.mxu0 0.0
      %473 = vmatprep.subr.mxu0 0.0
      %474 = vmatpush1.xpose.msra.mxu0 0.0
      %475 = vmatprep.subr.mxu0 0.0
      %476 = vmatpush1.xpose.msra.mxu0 0.0
      %477 = vmatprep.subr.mxu0 0.0
      %478 = vmatpush1.xpose.msra.mxu0 0.0
      %479 = vmatprep.subr.mxu0 0.0
      %480 = vmatpush1.xpose.msra.mxu0 0.0
      %481 = vmatprep.subr.mxu0 0.0
      %482 = vmatpush1.xpose.msra.mxu0 0.0
      %483 = vmatprep.subr.mxu0 0.0
      %484 = vmatpush1.xpose.msra.mxu0 0.0
      %485 = vmatprep.subr.mxu0 0.0
      %486 = vmatpush1.xpose.msra.mxu0 0.0
      %487 = vmatprep.subr.mxu0 0.0
      %488 = vmatpush1.xpose.msra.mxu0 0.0
      %489 = vmatprep.subr.mxu0 0.0
      %490 = vmatpush1.xpose.msra.mxu0 0.0
      %491 = vmatprep.subr.mxu0 0.0
      %492 = vmatpush1.xpose.msra.mxu0 %v461
      %493 = vmatprep.subr.mxu0 0.0
      %494 = vmatpush1.xpose.msra.mxu0 %v458
      %495 = vmatprep.subr.mxu0 0.0
      %496 = vmatpush2.xpose.msra.mxu0 0.0
      %497 = vmatprep.subr.mxu0 0.0
      %498 = vmatpush2.xpose.msra.mxu0 0.0
      %499 = vmatprep.subr.mxu0 0.0
      %500 = vmatpush2.xpose.msra.mxu0 0.0
      %501 = vmatprep.subr.mxu0 0.0
      %502 = vmatpush2.xpose.msra.mxu0 0.0
      %503 = vmatprep.subr.mxu0 0.0
      %504 = vmatpush2.xpose.msra.mxu0 0.0
      %505 = vmatprep.subr.mxu0 0.0
      %506 = vmatpush2.xpose.msra.mxu0 0.0
      %507 = vmatprep.subr.mxu0 0.0
      %508 = vmatpush2.xpose.msra.mxu0 0.0
      %509 = vmatprep.subr.mxu0 0.0
      %510 = vmatpush2.xpose.msra.mxu0 0.0
      %511 = vmatprep.subr.mxu0 0.0
      %512 = vmatpush2.xpose.msra.mxu0 0.0
      %513 = vmatprep.subr.mxu0 0.0
      %514 = vmatpush2.xpose.msra.mxu0 0.0
      %515 = vmatprep.subr.mxu0 0.0
      %516 = vmatpush2.xpose.msra.mxu0 0.0
      %517 = vmatprep.subr.mxu0 0.0
      %518 = vmatpush2.xpose.msra.mxu0 0.0
      %519 = vmatprep.subr.mxu0 0.0
      %520 = vmatpush2.xpose.msra.mxu0 0.0
      %521 = vmatprep.subr.mxu0 0.0
      %522 = vmatpush2.xpose.msra.mxu0 0.0
      %523 = vmatprep.subr.mxu0 0.0
      %524 = vmatpush2.xpose.msra.mxu0 0.0
      %525 = vmatprep.subr.mxu0 0.0
      %526 = vmatpush2.xpose.msra.mxu0 0.0
      %527 = vmatprep.mubr.f32.mxu0 0.0
      %528 = vmatmul.mubr.f32.gmra.mxu0 %v455
      %v529 = vpop.f32.mrf.mxu0
      %v530 = vadd.f32 %v453, %v529
      %v531 = vpop.f32.mrf.mxu0
      %532 = vdwg.mxu0
      %v533 = vxor.u32 %v530, 2147483648
      %v534 = vmul.f32 %v533, 1.442695
      %v535 = vpow.pop %v534
      %v536 = vadd.f32 %v535, 1.0
      %v537 = vrcp.pop %v536
      %v538 = vmul.f32 1.0, %v537
      %v539 = vlaneseq
      %v540 = vand.u32 %v539, 127
      %v541 = vlaneseq
      %v542 = vshrl.u32 %v541, 7
      %v543 = vadd.s32 %v542, 8
      %vm544 = vcmask 122880
      %v545 = vsel %vm544, %v538, -inf
      %546 = vmax.xlane.f32.xlu0 %v545
      %v547 = vpop.xlane.xlu0 %546
      %vm548 = vcmp.ge.f32.partialorder %v538, %v547
      %v549 = vsel %vm548, %v540, 16
      %v550 = vsel %vm544, %v549, 2147483647
      %v551 = vand.u32 %v550, 65535
      %v552 = vshra.s32 %v550, 16
      %v553 = vcvt.s32.f32 %v551
      %v554 = vcvt.s32.f32 %v552
      %555 = vmin.xlane.f32.xlu0 %v554
      %v556 = vpop.xlane.xlu0 %555
      %vm557 = vcmp.eq.f32.partialorder %v554, %v556
      %v558 = vsel %vm557, %v553, inf
      %559 = vmin.xlane.f32.xlu0 %v558
      %v560 = vpop.xlane.xlu0 %559
      %v561 = vcvt.f32.s32 %v560
      %v562 = vcvt.f32.s32 %v556
      %v563 = vshll.u32 %v562, 16
      %v564 = vadd.s32 %v563, %v561
      %vm565 = vcmp.eq.s32.totalorder %v540, %v564
      %v566 = vsel %vm565, 1, 0
      %v567 = vcvt.s32.f32 %v566
      %vm568 = vcmp.eq.s32.totalorder %v542, 0
      %vm569 = vcmp.eq.s32.totalorder %v543, 0
      %v570 = vsel %vm568, 1, 0
      %v571 = vsel %vm569, 1, 0
      %vm572 = vcmp.eq.s32.totalorder %v570, 1
      %vm573 = vcmp.eq.s32.totalorder %v571, 1
      %v574 = vlaneseq
      %v575 = vshrl.u32 %v574, 7
      %v576 = vsub.s32 0, %v575
      %v577 = vrot.slane %v567, %v576
      %v578 = vsel %vm572, %v577, 0.0
      %v579 = vsel %vm573, %v577, 0.0
      %v580 = vsel %vm565, -1.0, %v538
      %v581 = vsel %vm544, %v580, -inf
      %582 = vmax.xlane.f32.xlu0 %v581
      %v583 = vpop.xlane.xlu0 %582
      %vm584 = vcmp.ge.f32.partialorder %v580, %v583
      %v585 = vsel %vm584, %v540, 16
      %v586 = vsel %vm544, %v585, 2147483647
      %v587 = vand.u32 %v586, 65535
      %v588 = vshra.s32 %v586, 16
      %v589 = vcvt.s32.f32 %v587
      %v590 = vcvt.s32.f32 %v588
      %591 = vmin.xlane.f32.xlu0 %v590
      %v592 = vpop.xlane.xlu0 %591
      %vm593 = vcmp.eq.f32.partialorder %v590, %v592
      %v594 = vsel %vm593, %v589, inf
      %595 = vmin.xlane.f32.xlu0 %v594
      %v596 = vpop.xlane.xlu0 %595
      %v597 = vcvt.f32.s32 %v596
      %v598 = vcvt.f32.s32 %v592
      %v599 = vshll.u32 %v598, 16
      %v600 = vadd.s32 %v599, %v597
      %vm601 = vcmp.eq.s32.totalorder %v540, %v600
      %v602 = vsel %vm601, 1, 0
      %v603 = vcvt.s32.f32 %v602
      %vm604 = vcmp.eq.s32.totalorder %v542, 1
      %vm605 = vcmp.eq.s32.totalorder %v543, 1
      %v606 = vsel %vm604, 1, 0
      %v607 = vsel %vm605, 1, 0
      %vm608 = vcmp.eq.s32.totalorder %v606, 1
      %vm609 = vcmp.eq.s32.totalorder %v607, 1
      %v610 = vlaneseq
      %v611 = vshrl.u32 %v610, 7
      %v612 = vsub.s32 0, %v611
      %v613 = vrot.slane %v603, %v612
      %v614 = vsel %vm608, %v613, %v578
      %v615 = vsel %vm609, %v613, %v579
      %v616 = vsel %vm601, -1.0, %v580
      %v617 = vsel %vm544, %v616, -inf
      %618 = vmax.xlane.f32.xlu0 %v617
      %v619 = vpop.xlane.xlu0 %618
      %vm620 = vcmp.ge.f32.partialorder %v616, %v619
      %v621 = vsel %vm620, %v540, 16
      %v622 = vsel %vm544, %v621, 2147483647
      %v623 = vand.u32 %v622, 65535
      %v624 = vshra.s32 %v622, 16
      %v625 = vcvt.s32.f32 %v623
      %v626 = vcvt.s32.f32 %v624
      %627 = vmin.xlane.f32.xlu0 %v626
      %v628 = vpop.xlane.xlu0 %627
      %vm629 = vcmp.eq.f32.partialorder %v626, %v628
      %v630 = vsel %vm629, %v625, inf
      %631 = vmin.xlane.f32.xlu0 %v630
      %v632 = vpop.xlane.xlu0 %631
      %v633 = vcvt.f32.s32 %v632
      %v634 = vcvt.f32.s32 %v628
      %v635 = vshll.u32 %v634, 16
      %v636 = vadd.s32 %v635, %v633
      %vm637 = vcmp.eq.s32.totalorder %v540, %v636
      %v638 = vsel %vm637, 1, 0
      %v639 = vcvt.s32.f32 %v638
      %vm640 = vcmp.eq.s32.totalorder %v542, 2
      %vm641 = vcmp.eq.s32.totalorder %v543, 2
      %v642 = vsel %vm640, 1, 0
      %v643 = vsel %vm641, 1, 0
      %vm644 = vcmp.eq.s32.totalorder %v642, 1
      %vm645 = vcmp.eq.s32.totalorder %v643, 1
      %v646 = vlaneseq
      %v647 = vshrl.u32 %v646, 7
      %v648 = vsub.s32 0, %v647
      %v649 = vrot.slane %v639, %v648
      %v650 = vsel %vm644, %v649, %v614
      %v651 = vsel %vm645, %v649, %v615
      %v652 = vsel %vm637, -1.0, %v616
      %v653 = vsel %vm544, %v652, -inf
      %654 = vmax.xlane.f32.xlu0 %v653
      %v655 = vpop.xlane.xlu0 %654
      %vm656 = vcmp.ge.f32.partialorder %v652, %v655
      %v657 = vsel %vm656, %v540, 16
      %v658 = vsel %vm544, %v657, 2147483647
      %v659 = vand.u32 %v658, 65535
      %v660 = vshra.s32 %v658, 16
      %v661 = vcvt.s32.f32 %v659
      %v662 = vcvt.s32.f32 %v660
      %663 = vmin.xlane.f32.xlu0 %v662
      %v664 = vpop.xlane.xlu0 %663
      %vm665 = vcmp.eq.f32.partialorder %v662, %v664
      %v666 = vsel %vm665, %v661, inf
      %667 = vmin.xlane.f32.xlu0 %v666
      %v668 = vpop.xlane.xlu0 %667
      %v669 = vcvt.f32.s32 %v668
      %v670 = vcvt.f32.s32 %v664
      %v671 = vshll.u32 %v670, 16
      %v672 = vadd.s32 %v671, %v669
      %vm673 = vcmp.eq.s32.totalorder %v540, %v672
      %v674 = vsel %vm673, 1, 0
      %v675 = vcvt.s32.f32 %v674
      %vm676 = vcmp.eq.s32.totalorder %v542, 3
      %vm677 = vcmp.eq.s32.totalorder %v543, 3
      %v678 = vsel %vm676, 1, 0
      %v679 = vsel %vm677, 1, 0
      %vm680 = vcmp.eq.s32.totalorder %v678, 1
      %vm681 = vcmp.eq.s32.totalorder %v679, 1
      %v682 = vlaneseq
      %v683 = vshrl.u32 %v682, 7
      %v684 = vsub.s32 0, %v683
      %v685 = vrot.slane %v675, %v684
      %v686 = vsel %vm680, %v685, %v650
      %v687 = vsel %vm681, %v685, %v651
      %v688 = vsel %vm673, -1.0, %v652
      %v689 = vsel %vm544, %v688, -inf
      %690 = vmax.xlane.f32.xlu0 %v689
      %v691 = vpop.xlane.xlu0 %690
      %vm692 = vcmp.ge.f32.partialorder %v688, %v691
      %v693 = vsel %vm692, %v540, 16
      %v694 = vsel %vm544, %v693, 2147483647
      %v695 = vand.u32 %v694, 65535
      %v696 = vshra.s32 %v694, 16
      %v697 = vcvt.s32.f32 %v695
      %v698 = vcvt.s32.f32 %v696
      %699 = vmin.xlane.f32.xlu0 %v698
      %v700 = vpop.xlane.xlu0 %699
      %vm701 = vcmp.eq.f32.partialorder %v698, %v700
      %v702 = vsel %vm701, %v697, inf
      %703 = vmin.xlane.f32.xlu0 %v702
      %v704 = vpop.xlane.xlu0 %703
      %v705 = vcvt.f32.s32 %v704
      %v706 = vcvt.f32.s32 %v700
      %v707 = vshll.u32 %v706, 16
      %v708 = vadd.s32 %v707, %v705
      %vm709 = vcmp.eq.s32.totalorder %v540, %v708
      %v710 = vsel %vm709, 1, 0
      %v711 = vcvt.s32.f32 %v710
      %vm712 = vcmp.eq.s32.totalorder %v542, 4
      %vm713 = vcmp.eq.s32.totalorder %v543, 4
      %v714 = vsel %vm712, 1, 0
      %v715 = vsel %vm713, 1, 0
      %vm716 = vcmp.eq.s32.totalorder %v714, 1
      %vm717 = vcmp.eq.s32.totalorder %v715, 1
      %v718 = vlaneseq
      %v719 = vshrl.u32 %v718, 7
      %v720 = vsub.s32 0, %v719
      %v721 = vrot.slane %v711, %v720
      %v722 = vsel %vm716, %v721, %v686
      %v723 = vsel %vm717, %v721, %v687
      %v724 = vsel %vm709, -1.0, %v688
      %v725 = vsel %vm544, %v724, -inf
      %726 = vmax.xlane.f32.xlu0 %v725
      %v727 = vpop.xlane.xlu0 %726
      %vm728 = vcmp.ge.f32.partialorder %v724, %v727
      %v729 = vsel %vm728, %v540, 16
      %v730 = vsel %vm544, %v729, 2147483647
      %v731 = vand.u32 %v730, 65535
      %v732 = vshra.s32 %v730, 16
      %v733 = vcvt.s32.f32 %v731
      %v734 = vcvt.s32.f32 %v732
      %735 = vmin.xlane.f32.xlu0 %v734
      %v736 = vpop.xlane.xlu0 %735
      %vm737 = vcmp.eq.f32.partialorder %v734, %v736
      %v738 = vsel %vm737, %v733, inf
      %739 = vmin.xlane.f32.xlu0 %v738
      %v740 = vpop.xlane.xlu0 %739
      %v741 = vcvt.f32.s32 %v740
      %v742 = vcvt.f32.s32 %v736
      %v743 = vshll.u32 %v742, 16
      %v744 = vadd.s32 %v743, %v741
      %vm745 = vcmp.eq.s32.totalorder %v540, %v744
      %v746 = vsel %vm745, 1, 0
      %v747 = vcvt.s32.f32 %v746
      %vm748 = vcmp.eq.s32.totalorder %v542, 5
      %vm749 = vcmp.eq.s32.totalorder %v543, 5
      %v750 = vsel %vm748, 1, 0
      %v751 = vsel %vm749, 1, 0
      %vm752 = vcmp.eq.s32.totalorder %v750, 1
      %vm753 = vcmp.eq.s32.totalorder %v751, 1
      %v754 = vlaneseq
      %v755 = vshrl.u32 %v754, 7
      %v756 = vsub.s32 0, %v755
      %v757 = vrot.slane %v747, %v756
      %v758 = vsel %vm752, %v757, %v722
      %v759 = vsel %vm753, %v757, %v723
      %v760 = vsel %vm745, -1.0, %v724
      %v761 = vsel %vm544, %v760, -inf
      %762 = vmax.xlane.f32.xlu0 %v761
      %v763 = vpop.xlane.xlu0 %762
      %vm764 = vcmp.ge.f32.partialorder %v760, %v763
      %v765 = vsel %vm764, %v540, 16
      %v766 = vsel %vm544, %v765, 2147483647
      %v767 = vand.u32 %v766, 65535
      %v768 = vshra.s32 %v766, 16
      %v769 = vcvt.s32.f32 %v767
      %v770 = vcvt.s32.f32 %v768
      %771 = vmin.xlane.f32.xlu0 %v770
      %v772 = vpop.xlane.xlu0 %771
      %vm773 = vcmp.eq.f32.partialorder %v770, %v772
      %v774 = vsel %vm773, %v769, inf
      %775 = vmin.xlane.f32.xlu0 %v774
      %v776 = vpop.xlane.xlu0 %775
      %v777 = vcvt.f32.s32 %v776
      %v778 = vcvt.f32.s32 %v772
      %v779 = vshll.u32 %v778, 16
      %v780 = vadd.s32 %v779, %v777
      %vm781 = vcmp.eq.s32.totalorder %v540, %v780
      %v782 = vsel %vm781, 1, 0
      %v783 = vcvt.s32.f32 %v782
      %vm784 = vcmp.eq.s32.totalorder %v542, 6
      %vm785 = vcmp.eq.s32.totalorder %v543, 6
      %v786 = vsel %vm784, 1, 0
      %v787 = vsel %vm785, 1, 0
      %vm788 = vcmp.eq.s32.totalorder %v786, 1
      %vm789 = vcmp.eq.s32.totalorder %v787, 1
      %v790 = vlaneseq
      %v791 = vshrl.u32 %v790, 7
      %v792 = vsub.s32 0, %v791
      %v793 = vrot.slane %v783, %v792
      %v794 = vsel %vm788, %v793, %v758
      %v795 = vsel %vm789, %v793, %v759
      %v796 = vsel %vm781, -1.0, %v760
      %v797 = vsel %vm544, %v796, -inf
      %798 = vmax.xlane.f32.xlu0 %v797
      %v799 = vpop.xlane.xlu0 %798
      %vm800 = vcmp.ge.f32.partialorder %v796, %v799
      %v801 = vsel %vm800, %v540, 16
      %v802 = vsel %vm544, %v801, 2147483647
      %v803 = vand.u32 %v802, 65535
      %v804 = vshra.s32 %v802, 16
      %v805 = vcvt.s32.f32 %v803
      %v806 = vcvt.s32.f32 %v804
      %807 = vmin.xlane.f32.xlu0 %v806
      %v808 = vpop.xlane.xlu0 %807
      %vm809 = vcmp.eq.f32.partialorder %v806, %v808
      %v810 = vsel %vm809, %v805, inf
      %811 = vmin.xlane.f32.xlu0 %v810
      %v812 = vpop.xlane.xlu0 %811
      %v813 = vcvt.f32.s32 %v812
      %v814 = vcvt.f32.s32 %v808
      %v815 = vshll.u32 %v814, 16
      %v816 = vadd.s32 %v815, %v813
      %vm817 = vcmp.eq.s32.totalorder %v540, %v816
      %v818 = vsel %vm817, 1, 0
      %v819 = vcvt.s32.f32 %v818
      %vm820 = vcmp.eq.s32.totalorder %v542, 7
      %vm821 = vcmp.eq.s32.totalorder %v543, 7
      %v822 = vsel %vm820, 1, 0
      %v823 = vsel %vm821, 1, 0
      %vm824 = vcmp.eq.s32.totalorder %v822, 1
      %vm825 = vcmp.eq.s32.totalorder %v823, 1
      %v826 = vlaneseq
      %v827 = vshrl.u32 %v826, 7
      %v828 = vsub.s32 0, %v827
      %v829 = vrot.slane %v819, %v828
      %v830 = vsel %vm824, %v829, %v794
      %v831 = vsel %vm825, %v829, %v795
      %v832 = vsel %vm817, -1.0, %v796
      %v833 = vsel %vm544, %v832, -inf
      %834 = vmax.xlane.f32.xlu0 %v833
      %v835 = vpop.xlane.xlu0 %834
      %vm836 = vcmp.ge.f32.partialorder %v832, %v835
      %v837 = vsel %vm836, %v540, 16
      %v838 = vsel %vm544, %v837, 2147483647
      %v839 = vand.u32 %v838, 65535
      %v840 = vshra.s32 %v838, 16
      %v841 = vcvt.s32.f32 %v839
      %v842 = vcvt.s32.f32 %v840
      %843 = vmin.xlane.f32.xlu0 %v842
      %v844 = vpop.xlane.xlu0 %843
      %vm845 = vcmp.eq.f32.partialorder %v842, %v844
      %v846 = vsel %vm845, %v841, inf
      %847 = vmin.xlane.f32.xlu0 %v846
      %v848 = vpop.xlane.xlu0 %847
      %v849 = vcvt.f32.s32 %v848
      %v850 = vcvt.f32.s32 %v844
      %v851 = vshll.u32 %v850, 16
      %v852 = vadd.s32 %v851, %v849
      %vm853 = vcmp.eq.s32.totalorder %v540, %v852
      %v854 = vsel %vm853, 1, 0
      %v855 = vcvt.s32.f32 %v854
      %vm856 = vcmp.eq.s32.totalorder %v542, 8
      %vm857 = vcmp.eq.s32.totalorder %v543, 8
      %v858 = vsel %vm856, 1, 0
      %v859 = vsel %vm857, 1, 0
      %vm860 = vcmp.eq.s32.totalorder %v858, 1
      %vm861 = vcmp.eq.s32.totalorder %v859, 1
      %v862 = vlaneseq
      %v863 = vshrl.u32 %v862, 7
      %v864 = vsub.s32 0, %v863
      %v865 = vrot.slane %v855, %v864
      %v866 = vsel %vm860, %v865, %v830
      %v867 = vsel %vm861, %v865, %v831
      %v868 = vsel %vm853, -1.0, %v832
      %v869 = vsel %vm544, %v868, -inf
      %870 = vmax.xlane.f32.xlu0 %v869
      %v871 = vpop.xlane.xlu0 %870
      %vm872 = vcmp.ge.f32.partialorder %v868, %v871
      %v873 = vsel %vm872, %v540, 16
      %v874 = vsel %vm544, %v873, 2147483647
      %v875 = vand.u32 %v874, 65535
      %v876 = vshra.s32 %v874, 16
      %v877 = vcvt.s32.f32 %v875
      %v878 = vcvt.s32.f32 %v876
      %879 = vmin.xlane.f32.xlu0 %v878
      %v880 = vpop.xlane.xlu0 %879
      %vm881 = vcmp.eq.f32.partialorder %v878, %v880
      %v882 = vsel %vm881, %v877, inf
      %883 = vmin.xlane.f32.xlu0 %v882
      %v884 = vpop.xlane.xlu0 %883
      %v885 = vcvt.f32.s32 %v884
      %v886 = vcvt.f32.s32 %v880
      %v887 = vshll.u32 %v886, 16
      %v888 = vadd.s32 %v887, %v885
      %vm889 = vcmp.eq.s32.totalorder %v540, %v888
      %v890 = vsel %vm889, 1, 0
      %v891 = vcvt.s32.f32 %v890
      %vm892 = vcmp.eq.s32.totalorder %v542, 9
      %vm893 = vcmp.eq.s32.totalorder %v543, 9
      %v894 = vsel %vm892, 1, 0
      %v895 = vsel %vm893, 1, 0
      %vm896 = vcmp.eq.s32.totalorder %v894, 1
      %vm897 = vcmp.eq.s32.totalorder %v895, 1
      %v898 = vlaneseq
      %v899 = vshrl.u32 %v898, 7
      %v900 = vsub.s32 0, %v899
      %v901 = vrot.slane %v891, %v900
      %v902 = vsel %vm896, %v901, %v866
      %v903 = vsel %vm897, %v901, %v867
      %v904 = vsel %vm889, -1.0, %v868
      %v905 = vsel %vm544, %v904, -inf
      %906 = vmax.xlane.f32.xlu0 %v905
      %v907 = vpop.xlane.xlu0 %906
      %vm908 = vcmp.ge.f32.partialorder %v904, %v907
      %v909 = vsel %vm908, %v540, 16
      %v910 = vsel %vm544, %v909, 2147483647
      %v911 = vand.u32 %v910, 65535
      %v912 = vshra.s32 %v910, 16
      %v913 = vcvt.s32.f32 %v911
      %v914 = vcvt.s32.f32 %v912
      %915 = vmin.xlane.f32.xlu0 %v914
      %v916 = vpop.xlane.xlu0 %915
      %vm917 = vcmp.eq.f32.partialorder %v914, %v916
      %v918 = vsel %vm917, %v913, inf
      %919 = vmin.xlane.f32.xlu0 %v918
      %v920 = vpop.xlane.xlu0 %919
      %v921 = vcvt.f32.s32 %v920
      %v922 = vcvt.f32.s32 %v916
      %v923 = vshll.u32 %v922, 16
      %v924 = vadd.s32 %v923, %v921
      %vm925 = vcmp.eq.s32.totalorder %v540, %v924
      %v926 = vsel %vm925, 1, 0
      %v927 = vcvt.s32.f32 %v926
      %vm928 = vcmp.eq.s32.totalorder %v542, 10
      %vm929 = vcmp.eq.s32.totalorder %v543, 10
      %v930 = vsel %vm928, 1, 0
      %v931 = vsel %vm929, 1, 0
      %vm932 = vcmp.eq.s32.totalorder %v930, 1
      %vm933 = vcmp.eq.s32.totalorder %v931, 1
      %v934 = vlaneseq
      %v935 = vshrl.u32 %v934, 7
      %v936 = vsub.s32 0, %v935
      %v937 = vrot.slane %v927, %v936
      %v938 = vsel %vm932, %v937, %v902
      %v939 = vsel %vm933, %v937, %v903
      %v940 = vsel %vm925, -1.0, %v904
      %v941 = vsel %vm544, %v940, -inf
      %942 = vmax.xlane.f32.xlu0 %v941
      %v943 = vpop.xlane.xlu0 %942
      %vm944 = vcmp.ge.f32.partialorder %v940, %v943
      %v945 = vsel %vm944, %v540, 16
      %v946 = vsel %vm544, %v945, 2147483647
      %v947 = vand.u32 %v946, 65535
      %v948 = vshra.s32 %v946, 16
      %v949 = vcvt.s32.f32 %v947
      %v950 = vcvt.s32.f32 %v948
      %951 = vmin.xlane.f32.xlu0 %v950
      %v952 = vpop.xlane.xlu0 %951
      %vm953 = vcmp.eq.f32.partialorder %v950, %v952
      %v954 = vsel %vm953, %v949, inf
      %955 = vmin.xlane.f32.xlu0 %v954
      %v956 = vpop.xlane.xlu0 %955
      %v957 = vcvt.f32.s32 %v956
      %v958 = vcvt.f32.s32 %v952
      %v959 = vshll.u32 %v958, 16
      %v960 = vadd.s32 %v959, %v957
      %vm961 = vcmp.eq.s32.totalorder %v540, %v960
      %v962 = vsel %vm961, 1, 0
      %v963 = vcvt.s32.f32 %v962
      %vm964 = vcmp.eq.s32.totalorder %v542, 11
      %vm965 = vcmp.eq.s32.totalorder %v543, 11
      %v966 = vsel %vm964, 1, 0
      %v967 = vsel %vm965, 1, 0
      %vm968 = vcmp.eq.s32.totalorder %v966, 1
      %vm969 = vcmp.eq.s32.totalorder %v967, 1
      %v970 = vlaneseq
      %v971 = vshrl.u32 %v970, 7
      %v972 = vsub.s32 0, %v971
      %v973 = vrot.slane %v963, %v972
      %v974 = vsel %vm968, %v973, %v938
      %v975 = vsel %vm969, %v973, %v939
      %v977 = vsel %vm327, %v974, 0
      %v980 = vsel %vm327, %v975, 0
      %982 = vmatprep.subr.mxu0 0.0
      %983 = vmatpush1.msra.mxu0 0.0
      %984 = vmatprep.subr.mxu0 0.0
      %985 = vmatpush1.msra.mxu0 0.0
      %986 = vmatprep.subr.mxu0 0.0
      %987 = vmatpush1.msra.mxu0 0.0
      %988 = vmatprep.subr.mxu0 0.0
      %989 = vmatpush1.msra.mxu0 0.0
      %990 = vmatprep.subr.mxu0 0.0
      %991 = vmatpush1.msra.mxu0 0.0
      %992 = vmatprep.subr.mxu0 0.0
      %993 = vmatpush1.msra.mxu0 0.0
      %994 = vmatprep.subr.mxu0 0.0
      %995 = vmatpush1.msra.mxu0 0.0
      %996 = vmatprep.subr.mxu0 0.0
      %997 = vmatpush1.msra.mxu0 0.0
      %998 = vmatprep.subr.mxu0 0.0
      %999 = vmatpush1.msra.mxu0 0.0
      %1000 = vmatprep.subr.mxu0 0.0
      %1001 = vmatpush1.msra.mxu0 0.0
      %1002 = vmatprep.subr.mxu0 0.0
      %1003 = vmatpush1.msra.mxu0 0.0
      %1004 = vmatprep.subr.mxu0 0.0
      %1005 = vmatpush1.msra.mxu0 0.0
      %1006 = vmatprep.subr.mxu0 0.0
      %1007 = vmatpush1.msra.mxu0 0.0
      %1008 = vmatprep.subr.mxu0 0.0
      %1009 = vmatpush1.msra.mxu0 0.0
      %1010 = vmatprep.subr.mxu0 0.0
      %1011 = vmatpush1.msra.mxu0 %v442
      %1012 = vmatprep.subr.mxu0 0.0
      %1013 = vmatpush1.msra.mxu0 %v441
      %1014 = vmatprep.subr.mxu0 0.0
      %1015 = vmatpush2.msra.mxu0 0.0
      %1016 = vmatprep.subr.mxu0 0.0
      %1017 = vmatpush2.msra.mxu0 0.0
      %1018 = vmatprep.subr.mxu0 0.0
      %1019 = vmatpush2.msra.mxu0 0.0
      %1020 = vmatprep.subr.mxu0 0.0
      %1021 = vmatpush2.msra.mxu0 0.0
      %1022 = vmatprep.subr.mxu0 0.0
      %1023 = vmatpush2.msra.mxu0 0.0
      %1024 = vmatprep.subr.mxu0 0.0
      %1025 = vmatpush2.msra.mxu0 0.0
      %1026 = vmatprep.subr.mxu0 0.0
      %1027 = vmatpush2.msra.mxu0 0.0
      %1028 = vmatprep.subr.mxu0 0.0
      %1029 = vmatpush2.msra.mxu0 0.0
      %1030 = vmatprep.subr.mxu0 0.0
      %1031 = vmatpush2.msra.mxu0 0.0
      %1032 = vmatprep.subr.mxu0 0.0
      %1033 = vmatpush2.msra.mxu0 0.0
      %1034 = vmatprep.subr.mxu0 0.0
      %1035 = vmatpush2.msra.mxu0 0.0
      %1036 = vmatprep.subr.mxu0 0.0
      %1037 = vmatpush2.msra.mxu0 0.0
      %1038 = vmatprep.subr.mxu0 0.0
      %1039 = vmatpush2.msra.mxu0 0.0
      %1040 = vmatprep.subr.mxu0 0.0
      %1041 = vmatpush2.msra.mxu0 0.0
      %1042 = vmatprep.subr.mxu0 0.0
      %1043 = vmatpush2.msra.mxu0 0.0
      %1044 = vmatprep.subr.mxu0 0.0
      %1045 = vmatpush2.msra.mxu0 0.0
      %1046 = vmatprep.mubr.f32.mxu0 0.0
      %1047 = vmatmul.mubr.f32.gmra.mxu0 %v977
      %v1048 = vpop.f32.mrf.mxu0
      %v1049 = vadd.f32 0.0, %v1048
      %v1050 = vpop.f32.mrf.mxu0
      %1051 = vmatprep.mubr.f32.mxu0 0.0
      %1052 = vmatmul.mubr.f32.gmra.mxu0 %v980
      %v1053 = vpop.f32.mrf.mxu0
      %v1054 = vadd.f32 0.0, %v1053
      %v1055 = vpop.f32.mrf.mxu0
      %1056 = vdwg.mxu0
      %v1057 = vlaneseq
      %v1058 = vshrl.u32 %v1057, 7
      %v1059 = vsub.s32 0, %v1058
      %v1060 = vrot.slane %v538, %v1059
      %v1061 = vmul.f32 %v974, %v1060
      %v1062 = vmul.f32 %v975, %v1060
      %v1063 = vsel %vm327, %v1061, 0.0
      %1064 = vadd.xlane.f32.xlu0 %v1063
      %v1065 = vpop.xlane.xlu0 %1064
      %vm1066 = vcmask 125952
      %v1067 = vsel %vm1066, %v1062, 0.0
      %1068 = vadd.xlane.f32.xlu0 %v1067
      %v1069 = vpop.xlane.xlu0 %1068
      %v1070 = vmul.f32 %v1049, %v1065
      %v1071 = vmul.f32 %v1054, %v1069
      %v1072 = vpack.c.bf16 %v1071, %v1070
      %v1074 = vunpack.c.l.b16 %v1072
      %v1075 = vunpack.c.h.b16 %v1072
      %v1076 = vpack.c.b16 %v1074, %v1074
      %v1077 = vpack.c.b16 %v1075, %v1075
      %vm1080 = vcmask 257024
      %1081 = vst.msk [vmem:[%s313] sm:$0xf] %vm1080, %v1076
      %vm1082 = vcmask 254976
      %1083 = vst.msk [vmem:[%s313 + $0x4] sm:$0x3] %vm1082, %v1077
      %vm1084 = vcmp.ne.f32.partialorder %v316, 0.0
      %vm1085 = vcmp.ne.f32.partialorder %v317, 0.0
      %v1086 = vsel %vm1084, 1, 0
      %v1087 = vsel %vm1085, 1, 0
      %v1088 = vcvt.s32.f32 %v1086
      %v1089 = vcvt.s32.f32 %v1087
      %v1090 = vpack.c.bf16 %v1089, %v1088
      %v1092 = vsel %vm327, %v1090, 0
      %1094 = vmatprep.subr.bf16.mxu0 0
      %1095 = vmatpush1.bf16.msra.mxu0 0
      %1096 = vmatprep.subr.bf16.mxu0 0
      %1097 = vmatpush1.bf16.msra.mxu0 0
      %1098 = vmatprep.subr.bf16.mxu0 0
      %1099 = vmatpush1.bf16.msra.mxu0 0
      %1100 = vmatprep.subr.bf16.mxu0 0
      %1101 = vmatpush1.bf16.msra.mxu0 0
      %1102 = vmatprep.subr.bf16.mxu0 0
      %1103 = vmatpush1.bf16.msra.mxu0 0
      %1104 = vmatprep.subr.bf16.mxu0 0
      %1105 = vmatpush1.bf16.msra.mxu0 0
      %1106 = vmatprep.subr.bf16.mxu0 0
      %1107 = vmatpush1.bf16.msra.mxu0 0
      %1108 = vmatprep.subr.bf16.mxu0 0
      %1109 = vmatpush1.bf16.msra.mxu0 %v1090
      %1110 = vmatprep.subr.bf16.mxu0 0
      %1111 = vmatpush2.bf16.msra.mxu0 0
      %1112 = vmatprep.subr.bf16.mxu0 0
      %1113 = vmatpush2.bf16.msra.mxu0 0
      %1114 = vmatprep.subr.bf16.mxu0 0
      %1115 = vmatpush2.bf16.msra.mxu0 0
      %1116 = vmatprep.subr.bf16.mxu0 0
      %1117 = vmatpush2.bf16.msra.mxu0 0
      %1118 = vmatprep.subr.bf16.mxu0 0
      %1119 = vmatpush2.bf16.msra.mxu0 0
      %1120 = vmatprep.subr.bf16.mxu0 0
      %1121 = vmatpush2.bf16.msra.mxu0 0
      %1122 = vmatprep.subr.bf16.mxu0 0
      %1123 = vmatpush2.bf16.msra.mxu0 0
      %1124 = vmatprep.subr.bf16.mxu0 0
      %1125 = vmatpush2.bf16.msra.mxu0 0
      %1126 = vmatprep.mubr.bf16.mxu0 0
      %1127 = vmatmul.mubr.bf16.gmra.mxu0 %v1092
      %v1128 = vpop.f32.mrf.mxu0
      %v1129 = vadd.f32 0.0, %v1128
      %v1130 = vpop.f32.mrf.mxu0
      %v1131 = vpop.f32.mrf.mxu0
      %v1132 = vadd.f32 0.0, %v1131
      %v1133 = vpop.f32.mrf.mxu0
      %1134 = vdwg.mxu0
      %vm1135 = vcmp.gt.f32.partialorder %v1129, 0.0
      %vm1136 = vcmp.gt.f32.partialorder %v1132, 0.0
      %v1137 = vsel %vm1135, 1, 0
      %v1138 = vsel %vm1136, 1, 0
      %v1139 = vcvt.s32.f32 %v1137
      %v1140 = vcvt.s32.f32 %v1138
      %v1141 = vpack.c.bf16 %v1140, %v1139
      %v1142 = vpack.c.bf16 %v975, %v974
      %v1144 = vsel %vm327, %v1142, 0
      %1146 = vmatprep.subr.bf16.mxu0 0
      %1147 = vmatpush1.bf16.msra.mxu0 0
      %1148 = vmatprep.subr.bf16.mxu0 0
      %1149 = vmatpush1.bf16.msra.mxu0 0
      %1150 = vmatprep.subr.bf16.mxu0 0
      %1151 = vmatpush1.bf16.msra.mxu0 0
      %1152 = vmatprep.subr.bf16.mxu0 0
      %1153 = vmatpush1.bf16.msra.mxu0 0
      %1154 = vmatprep.subr.bf16.mxu0 0
      %1155 = vmatpush1.bf16.msra.mxu0 0
      %1156 = vmatprep.subr.bf16.mxu0 0
      %1157 = vmatpush1.bf16.msra.mxu0 0
      %1158 = vmatprep.subr.bf16.mxu0 0
      %1159 = vmatpush1.bf16.msra.mxu0 0
      %1160 = vmatprep.subr.bf16.mxu0 0
      %1161 = vmatpush1.bf16.msra.mxu0 %v1141
      %1162 = vmatprep.subr.bf16.mxu0 0
      %1163 = vmatpush2.bf16.msra.mxu0 0
      %1164 = vmatprep.subr.bf16.mxu0 0
      %1165 = vmatpush2.bf16.msra.mxu0 0
      %1166 = vmatprep.subr.bf16.mxu0 0
      %1167 = vmatpush2.bf16.msra.mxu0 0
      %1168 = vmatprep.subr.bf16.mxu0 0
      %1169 = vmatpush2.bf16.msra.mxu0 0
      %1170 = vmatprep.subr.bf16.mxu0 0
      %1171 = vmatpush2.bf16.msra.mxu0 0
      %1172 = vmatprep.subr.bf16.mxu0 0
      %1173 = vmatpush2.bf16.msra.mxu0 0
      %1174 = vmatprep.subr.bf16.mxu0 0
      %1175 = vmatpush2.bf16.msra.mxu0 0
      %1176 = vmatprep.subr.bf16.mxu0 0
      %1177 = vmatpush2.bf16.msra.mxu0 0
      %1178 = vmatprep.mubr.bf16.mxu0 0
      %1179 = vmatmul.mubr.bf16.gmra.mxu0 %v1144
      %v1180 = vpop.f32.mrf.mxu0
      %v1181 = vadd.f32 0.0, %v1180
      %v1182 = vpop.f32.mrf.mxu0
      %v1183 = vpop.f32.mrf.mxu0
      %v1184 = vadd.f32 0.0, %v1183
      %v1185 = vpop.f32.mrf.mxu0
      %1186 = vdwg.mxu0
      %v1187 = vpack.c.bf16 %v1184, %v1181
      %v1189 = vsel %vm327, %v1187, 0
      %1191 = vmatprep.subr.bf16.mxu0 0
      %1192 = vmatpush1.bf16.xpose.msra.mxu0 0
      %1193 = vmatprep.subr.bf16.mxu0 0
      %1194 = vmatpush1.bf16.xpose.msra.mxu0 0
      %1195 = vmatprep.subr.bf16.mxu0 0
      %1196 = vmatpush1.bf16.xpose.msra.mxu0 0
      %1197 = vmatprep.subr.bf16.mxu0 0
      %1198 = vmatpush1.bf16.xpose.msra.mxu0 0
      %1199 = vmatprep.subr.bf16.mxu0 0
      %1200 = vmatpush1.bf16.xpose.msra.mxu0 0
      %1201 = vmatprep.subr.bf16.mxu0 0
      %1202 = vmatpush1.bf16.xpose.msra.mxu0 0
      %1203 = vmatprep.subr.bf16.mxu0 0
      %1204 = vmatpush1.bf16.xpose.msra.mxu0 0
      %1205 = vmatprep.subr.bf16.mxu0 0
      %1206 = vmatpush1.bf16.xpose.msra.mxu0 %v1144
      %1207 = vmatprep.subr.bf16.mxu0 0
      %1208 = vmatpush2.bf16.xpose.msra.mxu0 0
      %1209 = vmatprep.subr.bf16.mxu0 0
      %1210 = vmatpush2.bf16.xpose.msra.mxu0 0
      %1211 = vmatprep.subr.bf16.mxu0 0
      %1212 = vmatpush2.bf16.xpose.msra.mxu0 0
      %1213 = vmatprep.subr.bf16.mxu0 0
      %1214 = vmatpush2.bf16.xpose.msra.mxu0 0
      %1215 = vmatprep.subr.bf16.mxu0 0
      %1216 = vmatpush2.bf16.xpose.msra.mxu0 0
      %1217 = vmatprep.subr.bf16.mxu0 0
      %1218 = vmatpush2.bf16.xpose.msra.mxu0 0
      %1219 = vmatprep.subr.bf16.mxu0 0
      %1220 = vmatpush2.bf16.xpose.msra.mxu0 0
      %1221 = vmatprep.subr.bf16.mxu0 0
      %1222 = vmatpush2.bf16.xpose.msra.mxu0 0
      %1223 = vmatprep.mubr.bf16.mxu0 0
      %1224 = vmatmul.mubr.bf16.gmra.mxu0 %v1189
      %v1225 = vpop.f32.mrf.mxu0
      %v1226 = vadd.f32 0.0, %v1225
      %v1227 = vpop.f32.mrf.mxu0
      %v1228 = vpop.f32.mrf.mxu0
      %v1229 = vadd.f32 0.0, %v1228
      %v1230 = vpop.f32.mrf.mxu0
      %1231 = vdwg.mxu0
      %v1232 = vpack.c.bf16 %v1229, %v1226
      %vm1233 = vcmask 97280
      %v1235 = vsel %vm1233, 1065369472, 0
      %v1238 = vsel %vm1233, %v1232, 0
      %1240 = vmatprep.subr.bf16.mxu0 0
      %1241 = vmatpush1.bf16.xpose.msra.mxu0 0
      %1242 = vmatprep.subr.bf16.mxu0 0
      %1243 = vmatpush1.bf16.xpose.msra.mxu0 0
      %1244 = vmatprep.subr.bf16.mxu0 0
      %1245 = vmatpush1.bf16.xpose.msra.mxu0 0
      %1246 = vmatprep.subr.bf16.mxu0 0
      %1247 = vmatpush1.bf16.xpose.msra.mxu0 0
      %1248 = vmatprep.subr.bf16.mxu0 0
      %1249 = vmatpush1.bf16.xpose.msra.mxu0 0
      %1250 = vmatprep.subr.bf16.mxu0 0
      %1251 = vmatpush1.bf16.xpose.msra.mxu0 0
      %1252 = vmatprep.subr.bf16.mxu0 0
      %1253 = vmatpush1.bf16.xpose.msra.mxu0 0
      %1254 = vmatprep.subr.bf16.mxu0 0
      %1255 = vmatpush1.bf16.xpose.msra.mxu0 %v1238
      %1256 = vmatprep.subr.bf16.mxu0 0
      %1257 = vmatpush2.bf16.xpose.msra.mxu0 0
      %1258 = vmatprep.subr.bf16.mxu0 0
      %1259 = vmatpush2.bf16.xpose.msra.mxu0 0
      %1260 = vmatprep.subr.bf16.mxu0 0
      %1261 = vmatpush2.bf16.xpose.msra.mxu0 0
      %1262 = vmatprep.subr.bf16.mxu0 0
      %1263 = vmatpush2.bf16.xpose.msra.mxu0 0
      %1264 = vmatprep.subr.bf16.mxu0 0
      %1265 = vmatpush2.bf16.xpose.msra.mxu0 0
      %1266 = vmatprep.subr.bf16.mxu0 0
      %1267 = vmatpush2.bf16.xpose.msra.mxu0 0
      %1268 = vmatprep.subr.bf16.mxu0 0
      %1269 = vmatpush2.bf16.xpose.msra.mxu0 0
      %1270 = vmatprep.subr.bf16.mxu0 0
      %1271 = vmatpush2.bf16.xpose.msra.mxu0 0
      %1272 = vmatprep.mubr.bf16.mxu0 0
      %1273 = vmatmul.mubr.bf16.gmra.mxu0 %v1235
      %v1274 = vpop.f32.mrf.mxu0
      %v1275 = vadd.f32 0.0, %v1274
      %v1276 = vpop.f32.mrf.mxu0
      %v1277 = vpop.f32.mrf.mxu0
      %v1278 = vpop.f32.mrf.mxu0
      %1279 = vdwg.mxu0
      %v1280 = vrcp.pop %v1275
      %v1281 = vlaneseq
      %v1282 = vshrl.u32 %v1281, 7
      %v1283 = vsub.s32 0, %v1282
      %v1284 = vrot.slane %v1280, %v1283
      %v1285 = vmul.f32 %v1226, %v1284
      %v1286 = vmul.f32 %v1229, %v1284
      %1287 = vst.msk [vmem:[%s308] sm:$0xff] %vm1233, %v1285
      %vm1288 = vcmask 93184
      %1289 = vst.msk [vmem:[%s308 + $0x8] sm:$0xf] %vm1288, %v1286
      %p1290 = scmp.lt.s32.totalorder %s21, 1
      %s1291 = scalar_select %p1290, %s21, 1
      %s1292 = smul.addr %s1291, 2
      %s1293 = smul.addr %s1292, 8
      %s1294 = scalar_lea.vmem %s6, %s1293
      %p1295 = scmp.lt.s32.totalorder %s21, 1
      %s1296 = scalar_select %p1295, %s21, 1
      %s1297 = smul.addr %s1296, 2
      %s1298 = smul.addr %s1297, 4
      %s1299 = scalar_lea.vmem %s7, %s1298
      // Predicated region
      $region45: #{_lambda_.5} parent=43 // pred_check
        %p1300 = pneg %p175
      $region46: #{_lambda_.5} parent=43 // pred_check_branch
        %1302 = sbr.rel (%p1300) target = $region48
      $region47: #{_lambda_.5} parent=43 // pred_region
        _
      $region48: #{_lambda_.5} parent=43 // pred_fallthru
        _
      // Predicated region
      $region49: #{_lambda_.5} parent=43 // pred_check
        %p1303 = pneg %p201
      $region50: #{_lambda_.5} parent=43 // pred_check_branch
        %1305 = sbr.rel (%p1303) target = $region52
      $region51: #{_lambda_.5} parent=43 // pred_region
        _
      $region52: #{_lambda_.5} parent=43 // pred_fallthru
        _
    $region44: #{_lambda_.5} parent=5 // pred_fallthru
      _
    %p1306 = scmp.le.s32.totalorder 2, %s16
    // Predicated region
    $region53: #{_lambda_.5} parent=5 // pred_check
      %p1307 = pneg %p1306
    $region54: #{_lambda_.5} parent=5 // pred_check_branch
      %1309 = sbr.rel (%p1307) target = $region56
    $region55: #{_lambda_.5} parent=5 // pred_region
      %s1310 = ssub.s32 %s16, 2
      // Predicated region
      $region57: #{_lambda_.5} parent=55 // pred_check
        %p1311 = pneg %p181
      $region58: #{_lambda_.5} parent=55 // pred_check_branch
        %1313 = sbr.rel (%p1311) target = $region60
      $region59: #{_lambda_.5} parent=55 // pred_region
        %p1314 = scmp.lt.s32.totalorder %s22, 1
        %s1315 = scalar_select %p1314, %s22, 1
        %s1316 = smul.addr %s1315, 2
        %s1317 = smul.addr %s1316, 8
        %s1318 = scalar_lea.vmem %s6, %s1317
      $region60: #{_lambda_.5} parent=55 // pred_fallthru
        _
      // Predicated region
      $region61: #{_lambda_.5} parent=55 // pred_check
        %p1319 = pneg %p207
      $region62: #{_lambda_.5} parent=55 // pred_check_branch
        %1321 = sbr.rel (%p1319) target = $region64
      $region63: #{_lambda_.5} parent=55 // pred_region
        %p1322 = scmp.lt.s32.totalorder %s22, 1
        %s1323 = scalar_select %p1322, %s22, 1
        %s1324 = smul.addr %s1323, 2
        %s1325 = smul.addr %s1324, 4
        %s1326 = scalar_lea.vmem %s7, %s1325
      $region64: #{_lambda_.5} parent=55 // pred_fallthru
        _
    $region56: #{_lambda_.5} parent=5 // pred_fallthru
      _
  $region6: #{_lambda_.5} parent=0 // loop_footer
    %s20 = sadd.s32 1, %s16
  $region7: #{_lambda_.5} parent=0 // loop_footer_branch
    %15 = sbr.rel target = $region3
  $region8: #{_lambda_.5} parent=0 // loop_exit
    _

</llo_original>
